<compile_context>
chip_gen: v5e
topology: v5e:2x2
jax: 0.10.0
libtpu: 0.0.40
codegen_flags: <defaults>
</compile_context>

<pallas_src>
from functools import partial

import jax
import jax.numpy as jnp
from jax.experimental import pallas as pl
from jax.experimental.pallas import tpu as pltpu

LATENT_DIM = 20
IN_DIM = 28 * 28          # 784
HID_DIM = 400
MU_LANE0 = 0              # mu occupies lanes [0, 20) of the packed projection
LOGVAR_LANE0 = 128        # logvar occupies lanes [128, 148)
W2_PACK_N = 256           # packed encoder-head width (2 full vregs of lanes)


# --------------------------------------------------------------------------
# Kernel
# --------------------------------------------------------------------------
def _vae_kernel(x_ref, w1_ref, b1_ref, w2_ref, b2_ref, eps_ref,
                w3_ref, b3_ref, w4_ref, b4_ref, out_ref, *, bf16_sigmoid):
    # ----- encoder: Linear(784, 400) + ReLU -----
    x = x_ref[...]                                                # (TB, 784) bf16
    h = jnp.dot(x, w1_ref[...], preferred_element_type=jnp.float32) + b1_ref[...]
    h = jnp.maximum(h, 0.0)                                       # (TB, 400) f32

    # ----- encoder head: fused (mu | logvar) matmul, lane-aligned split -----
    hz = jnp.dot(h.astype(jnp.bfloat16), w2_ref[...],
                 preferred_element_type=jnp.float32) + b2_ref[...]  # (TB, 256)
    mu = hz[:, MU_LANE0:MU_LANE0 + LATENT_DIM]                    # lanes 0..19
    logvar = hz[:, LOGVAR_LANE0:LOGVAR_LANE0 + LATENT_DIM]        # lanes 128..147

    # ----- reparameterize: z = mu + eps * exp(0.5 * logvar) -----
    std = jnp.exp(0.5 * logvar)                                   # EUP
    z = mu + eps_ref[...] * std                                   # (TB, 20) f32

    # ----- decoder: Linear(20, 400) + ReLU -----
    d = jnp.dot(z.astype(jnp.bfloat16), w3_ref[...],
                preferred_element_type=jnp.float32) + b3_ref[...]
    d = jnp.maximum(d, 0.0)                                       # (TB, 400) f32

    # ----- decoder: Linear(400, 784) + Sigmoid, bf16 output stream -----
    logits = jnp.dot(d.astype(jnp.bfloat16), w4_ref[...],
                     preferred_element_type=jnp.float32) + b4_ref[...]
    if bf16_sigmoid:
        # v6e/v7x: bf16 EUP — halve transcendental element width.
        out_ref[...] = jax.nn.sigmoid(logits.astype(jnp.bfloat16))
    else:
        # v5e (no bf16 VPU/EUP): keep elementwise math in f32, cast for store.
        out_ref[...] = jax.nn.sigmoid(logits).astype(jnp.bfloat16)


# --------------------------------------------------------------------------
# Generation-aware configuration
# --------------------------------------------------------------------------
def _tpu_config():
    kind = ""
    try:
        kind = jax.devices()[0].device_kind.lower()
    except Exception:
        pass
    if "v7" in kind or "7x" in kind:
        # 64 MiB VMEM per TC, 2 TCs/chip -> keep tiles modest, force >=2 steps.
        return dict(max_tb=512, vmem_bytes=40 << 20, bf16_sigmoid=True, min_steps=2)
    if "v6" in kind:
        return dict(max_tb=1024, vmem_bytes=56 << 20, bf16_sigmoid=True, min_steps=1)
    if "v5" in kind:
        return dict(max_tb=1024, vmem_bytes=64 << 20, bf16_sigmoid=False, min_steps=1)
    # v4 / unknown backend: conservative defaults.
    return dict(max_tb=256, vmem_bytes=32 << 20, bf16_sigmoid=False, min_steps=1)


def _round_up(x, m):
    return ((x + m - 1) // m) * m


def _pick_batch_tile(B, max_tb, min_steps):
    """Pick a batch tile that satisfies the (8,128) rule.

    Block first dim must be == B (single full block) or a multiple of 8.
    On v7x we prefer >= min_steps grid steps so both TensorCores get work.
    """
    if B <= max_tb and (min_steps <= 1 or B < 16):
        return B                                  # single full-batch block
    steps = max(min_steps, pl.cdiv(B, max_tb))
    tb = min(max_tb, _round_up(pl.cdiv(B, steps), 8))
    return max(tb, 8)


# --------------------------------------------------------------------------
# Wrapper
# --------------------------------------------------------------------------
def vae_forward(x_nchw, params, eps):
    """x_nchw: (B, 1, 28, 28) float32; eps: (B, LATENT_DIM) standard normal."""
    B = x_nchw.shape[0]
    cfg = _tpu_config()

    # bf16 input stream (nn.Flatten == reshape, row-major).  In a real
    # pipeline the producer would already emit bf16; the cast here is the
    # pallas_call boundary contract.
    x_flat = x_nchw.reshape(B, -1).astype(jnp.bfloat16)
    eps = eps.astype(jnp.float32)

    w1, b1, w2, b2, w3, b3, w4, b4 = params

    # bf16 weights: halves the resident-weight DMA; MXU accumulates in f32.
    w1b = w1.astype(jnp.bfloat16)
    w3b = w3.astype(jnp.bfloat16)
    w4b = w4.astype(jnp.bfloat16)

    # Lane-aligned packing of the encoder head: mu cols -> lanes [0,20),
    # logvar cols -> lanes [128,148).  Padded lanes contribute zeros.
    w2p = jnp.zeros((HID_DIM, W2_PACK_N), jnp.bfloat16)
    w2p = w2p.at[:, MU_LANE0:MU_LANE0 + LATENT_DIM].set(
        w2[:, :LATENT_DIM].astype(jnp.bfloat16))
    w2p = w2p.at[:, LOGVAR_LANE0:LOGVAR_LANE0 + LATENT_DIM].set(
        w2[:, LATENT_DIM:].astype(jnp.bfloat16))
    b2p = jnp.zeros((1, W2_PACK_N), jnp.float32)
    b2p = b2p.at[:, MU_LANE0:MU_LANE0 + LATENT_DIM].set(b2[:, :LATENT_DIM])
    b2p = b2p.at[:, LOGVAR_LANE0:LOGVAR_LANE0 + LATENT_DIM].set(b2[:, LATENT_DIM:])

    TB = _pick_batch_tile(B, cfg["max_tb"], cfg["min_steps"])
    grid = (pl.cdiv(B, TB),)

    # Weights/biases: constant block index -> stay resident in VMEM across the
    # batch grid.  Activations / noise / output advance with the grid index.
    resident = lambda i: (0, 0)
    batched = lambda i: (i, 0)

    in_specs = [
        pl.BlockSpec((TB, IN_DIM), batched),                 # x (bf16)
        pl.BlockSpec((IN_DIM, HID_DIM), resident),           # w1 (bf16)
        pl.BlockSpec((1, HID_DIM), resident),                # b1 (f32)
        pl.BlockSpec((HID_DIM, W2_PACK_N), resident),        # w2 packed (bf16)
        pl.BlockSpec((1, W2_PACK_N), resident),              # b2 packed (f32)
        pl.BlockSpec((TB, LATENT_DIM), batched),             # eps (f32)
        pl.BlockSpec((LATENT_DIM, HID_DIM), resident),       # w3 (bf16)
        pl.BlockSpec((1, HID_DIM), resident),                # b3 (f32)
        pl.BlockSpec((HID_DIM, IN_DIM), resident),           # w4 (bf16)
        pl.BlockSpec((1, IN_DIM), resident),                 # b4 (f32)
    ]

    flops = 2 * B * (IN_DIM * HID_DIM + HID_DIM * W2_PACK_N
                     + LATENT_DIM * HID_DIM + HID_DIM * IN_DIM)
    transcendentals = B * (LATENT_DIM + IN_DIM)               # exp + sigmoid
    weight_bytes = 2 * (w1b.size + w2p.size + w3b.size + w4b.size)
    bias_bytes = 4 * (b1.size + b2p.size + b3.size + b4.size)
    act_bytes = 2 * x_flat.size + 4 * eps.size + 2 * B * IN_DIM   # bf16 in/out
    cost = pl.CostEstimate(flops=flops, transcendentals=transcendentals,
                           bytes_accessed=weight_bytes + bias_bytes + act_bytes)

    out_flat = pl.pallas_call(
        partial(_vae_kernel, bf16_sigmoid=cfg["bf16_sigmoid"]),
        out_shape=jax.ShapeDtypeStruct((B, IN_DIM), jnp.bfloat16),
        grid=grid,
        in_specs=in_specs,
        out_specs=pl.BlockSpec((TB, IN_DIM), batched),
        compiler_params=pltpu.CompilerParams(
            dimension_semantics=("parallel",),
            vmem_limit_bytes=cfg["vmem_bytes"],
        ),
        cost_estimate=cost,
    )(x_flat, w1b, b1, w2p, b2p, eps, w3b, b3, w4b, b4)

    # Keep the PyTorch-facing interface in f32 (drop this cast if a bf16
    # reconstruction is acceptable downstream).
    return out_flat.astype(jnp.float32).reshape(-1, 1, 28, 28)


# --------------------------------------------------------------------------
# Pure-JAX reference (same bf16-stream / f32-accumulate recipe)
# --------------------------------------------------------------------------
def _vae_reference(x_nchw, params, eps):
    B = x_nchw.shape[0]
    x = x_nchw.reshape(B, -1).astype(jnp.bfloat16)
    w1, b1, w2, b2, w3, b3, w4, b4 = params
    f32, bf16 = jnp.float32, jnp.bfloat16
    h = jnp.dot(x, w1.astype(bf16), preferred_element_type=f32) + b1
    h = jnp.maximum(h, 0.0)
    hz = jnp.dot(h.astype(bf16), w2.astype(bf16), preferred_element_type=f32) + b2
    mu, logvar = hz[:, :LATENT_DIM], hz[:, LATENT_DIM:]
    z = mu + eps * jnp.exp(0.5 * logvar)
    d = jnp.dot(z.astype(bf16), w3.astype(bf16), preferred_element_type=f32) + b3
    d = jnp.maximum(d, 0.0)
    logits = jnp.dot(d.astype(bf16), w4.astype(bf16), preferred_element_type=f32) + b4
    return jax.nn.sigmoid(logits).reshape(-1, 1, 28, 28)


def init_params(key):
    """Deterministic init mimicking PyTorch Linear default (U[-1/sqrt(fan_in), ...])."""
    def linear(k, fan_in, fan_out):
        kw, kb = jax.random.split(k)
        bound = 1.0 / jnp.sqrt(fan_in)
        # Stored transposed relative to torch (in, out) so the kernel does x @ W.
        w = jax.random.uniform(kw, (fan_in, fan_out), jnp.float32, -bound, bound)
        b = jax.random.uniform(kb, (1, fan_out), jnp.float32, -bound, bound)
        return w, b

    k1, k2, k3, k4 = jax.random.split(key, 4)
    w1, b1 = linear(k1, IN_DIM, HID_DIM)             # encoder Linear(784, 400)
    w2, b2 = linear(k2, HID_DIM, 2 * LATENT_DIM)     # encoder Linear(400, 40)
    w3, b3 = linear(k3, LATENT_DIM, HID_DIM)         # decoder Linear(20, 400)
    w4, b4 = linear(k4, HID_DIM, IN_DIM)             # decoder Linear(400, 784)
    return (w1, b1, w2, b2, w3, b3, w4, b4)


if __name__ == "__main__":
    key = jax.random.PRNGKey(0)
    k_params, k_x, k_eps = jax.random.split(key, 3)

    B = 4
    params = init_params(k_params)
    x = jax.random.uniform(k_x, (B, 1, 28, 28), jnp.float32)        # MNIST-like input
    eps = jax.random.normal(k_eps, (B, LATENT_DIM), jnp.float32)    # reparameterization noise

    x_recon = vae_forward(x, params, eps)
    jax.block_until_ready(x_recon)

    assert x_recon.shape == (B, 1, 28, 28)
    assert bool(jnp.all(jnp.isfinite(x_recon)))
    assert bool(jnp.all((x_recon >= 0.0) & (x_recon <= 1.0)))       # sigmoid range

    x_ref = _vae_reference(x, params, eps)
    assert bool(jnp.allclose(x_recon, x_ref, atol=5e-2)), "kernel/reference mismatch"

    print("KERNEL_OK")
</pallas_src>

<mosaic_0001>
module attributes {stable_mosaic.version = 11 : i64} {
  func.func @_vae_kernel(%arg0: i32, %arg1: memref<4x784xbf16, #tpu.memory_space<vmem>>, %arg2: memref<784x400xbf16, #tpu.memory_space<vmem>>, %arg3: memref<1x400xf32, #tpu.memory_space<vmem>>, %arg4: memref<400x256xbf16, #tpu.memory_space<vmem>>, %arg5: memref<1x256xf32, #tpu.memory_space<vmem>>, %arg6: memref<4x20xf32, #tpu.memory_space<vmem>>, %arg7: memref<20x400xbf16, #tpu.memory_space<vmem>>, %arg8: memref<1x400xf32, #tpu.memory_space<vmem>>, %arg9: memref<400x784xbf16, #tpu.memory_space<vmem>>, %arg10: memref<1x784xf32, #tpu.memory_space<vmem>>, %arg11: memref<4x784xbf16, #tpu.memory_space<vmem>>) attributes {dimension_semantics = [#tpu.dimension_semantics<parallel>], iteration_bounds = array<i64: 1>, scalar_prefetch = 0 : i64, scratch_operands = 0 : i64, tpu.core_type = #tpu.core_type<tc>, window_params = [{transform_indices = @transform_0, window_bounds = array<i64: 4, 784>}, {pipeline_mode = #tpu.pipeline_mode<synchronous>, transform_indices = @transform_1, window_bounds = array<i64: 784, 400>}, {pipeline_mode = #tpu.pipeline_mode<synchronous>, transform_indices = @transform_2, window_bounds = array<i64: 1, 400>}, {pipeline_mode = #tpu.pipeline_mode<synchronous>, transform_indices = @transform_3, window_bounds = array<i64: 400, 256>}, {pipeline_mode = #tpu.pipeline_mode<synchronous>, transform_indices = @transform_4, window_bounds = array<i64: 1, 256>}, {transform_indices = @transform_5, window_bounds = array<i64: 4, 20>}, {pipeline_mode = #tpu.pipeline_mode<synchronous>, transform_indices = @transform_6, window_bounds = array<i64: 20, 400>}, {pipeline_mode = #tpu.pipeline_mode<synchronous>, transform_indices = @transform_7, window_bounds = array<i64: 1, 400>}, {pipeline_mode = #tpu.pipeline_mode<synchronous>, transform_indices = @transform_8, window_bounds = array<i64: 400, 784>}, {pipeline_mode = #tpu.pipeline_mode<synchronous>, transform_indices = @transform_9, window_bounds = array<i64: 1, 784>}, {transform_indices = @transform_10, window_bounds = array<i64: 4, 784>}]} {
    %c0 = arith.constant 0 : index
    %c0_0 = arith.constant 0 : index
    %0 = vector.load %arg1[%c0, %c0_0] : memref<4x784xbf16, #tpu.memory_space<vmem>>, vector<4x784xbf16>
    %c0_1 = arith.constant 0 : index
    %c0_2 = arith.constant 0 : index
    %1 = vector.load %arg2[%c0_1, %c0_2] : memref<784x400xbf16, #tpu.memory_space<vmem>>, vector<784x400xbf16>
    %cst = arith.constant dense<0.000000e+00> : vector<4x400xf32>
    %2 = tpu.matmul %0, %1, %cst {dimension_numbers = #tpu.dot_dimension_numbers<[1], [0], [0], [1], [0, 0, 1, 1], [], []>} : vector<4x784xbf16>, vector<784x400xbf16>, vector<4x400xf32> -> vector<4x400xf32>
    %c0_3 = arith.constant 0 : index
    %c0_4 = arith.constant 0 : index
    %3 = vector.load %arg3[%c0_3, %c0_4] : memref<1x400xf32, #tpu.memory_space<vmem>>, vector<1x400xf32>
    %4 = vector.broadcast %3 : vector<1x400xf32> to vector<4x400xf32>
    %5 = arith.addf %2, %4 : vector<4x400xf32>
    %cst_5 = arith.constant 0.000000e+00 : f32
    %6 = vector.broadcast %cst_5 : f32 to vector<4x400xf32>
    %7 = arith.maximumf %5, %6 : vector<4x400xf32>
    %8 = arith.truncf %7 : vector<4x400xf32> to vector<4x400xbf16>
    %c0_6 = arith.constant 0 : index
    %c0_7 = arith.constant 0 : index
    %9 = vector.load %arg4[%c0_6, %c0_7] : memref<400x256xbf16, #tpu.memory_space<vmem>>, vector<400x256xbf16>
    %cst_8 = arith.constant dense<0.000000e+00> : vector<4x256xf32>
    %10 = tpu.matmul %8, %9, %cst_8 {dimension_numbers = #tpu.dot_dimension_numbers<[1], [0], [0], [1], [0, 0, 1, 1], [], []>} : vector<4x400xbf16>, vector<400x256xbf16>, vector<4x256xf32> -> vector<4x256xf32>
    %c0_9 = arith.constant 0 : index
    %c0_10 = arith.constant 0 : index
    %11 = vector.load %arg5[%c0_9, %c0_10] : memref<1x256xf32, #tpu.memory_space<vmem>>, vector<1x256xf32>
    %12 = vector.broadcast %11 : vector<1x256xf32> to vector<4x256xf32>
    %13 = arith.addf %10, %12 : vector<4x256xf32>
    %14 = vector.extract_strided_slice %13 {offsets = [0, 0], sizes = [4, 20], strides = [1, 1]} : vector<4x256xf32> to vector<4x20xf32>
    %15 = vector.extract_strided_slice %13 {offsets = [0, 128], sizes = [4, 20], strides = [1, 1]} : vector<4x256xf32> to vector<4x20xf32>
    %cst_11 = arith.constant 5.000000e-01 : f32
    %16 = vector.broadcast %cst_11 : f32 to vector<4x20xf32>
    %17 = arith.mulf %16, %15 : vector<4x20xf32>
    %18 = math.exp %17 : vector<4x20xf32>
    %c0_12 = arith.constant 0 : index
    %c0_13 = arith.constant 0 : index
    %19 = vector.load %arg6[%c0_12, %c0_13] : memref<4x20xf32, #tpu.memory_space<vmem>>, vector<4x20xf32>
    %20 = arith.mulf %19, %18 : vector<4x20xf32>
    %21 = arith.addf %14, %20 : vector<4x20xf32>
    %22 = arith.truncf %21 : vector<4x20xf32> to vector<4x20xbf16>
    %c0_14 = arith.constant 0 : index
    %c0_15 = arith.constant 0 : index
    %23 = vector.load %arg7[%c0_14, %c0_15] : memref<20x400xbf16, #tpu.memory_space<vmem>>, vector<20x400xbf16>
    %cst_16 = arith.constant dense<0.000000e+00> : vector<4x400xf32>
    %24 = tpu.matmul %22, %23, %cst_16 {dimension_numbers = #tpu.dot_dimension_numbers<[1], [0], [0], [1], [0, 0, 1, 1], [], []>} : vector<4x20xbf16>, vector<20x400xbf16>, vector<4x400xf32> -> vector<4x400xf32>
    %c0_17 = arith.constant 0 : index
    %c0_18 = arith.constant 0 : index
    %25 = vector.load %arg8[%c0_17, %c0_18] : memref<1x400xf32, #tpu.memory_space<vmem>>, vector<1x400xf32>
    %26 = vector.broadcast %25 : vector<1x400xf32> to vector<4x400xf32>
    %27 = arith.addf %24, %26 : vector<4x400xf32>
    %cst_19 = arith.constant 0.000000e+00 : f32
    %28 = vector.broadcast %cst_19 : f32 to vector<4x400xf32>
    %29 = arith.maximumf %27, %28 : vector<4x400xf32>
    %30 = arith.truncf %29 : vector<4x400xf32> to vector<4x400xbf16>
    %c0_20 = arith.constant 0 : index
    %c0_21 = arith.constant 0 : index
    %31 = vector.load %arg9[%c0_20, %c0_21] : memref<400x784xbf16, #tpu.memory_space<vmem>>, vector<400x784xbf16>
    %cst_22 = arith.constant dense<0.000000e+00> : vector<4x784xf32>
    %32 = tpu.matmul %30, %31, %cst_22 {dimension_numbers = #tpu.dot_dimension_numbers<[1], [0], [0], [1], [0, 0, 1, 1], [], []>} : vector<4x400xbf16>, vector<400x784xbf16>, vector<4x784xf32> -> vector<4x784xf32>
    %c0_23 = arith.constant 0 : index
    %c0_24 = arith.constant 0 : index
    %33 = vector.load %arg10[%c0_23, %c0_24] : memref<1x784xf32, #tpu.memory_space<vmem>>, vector<1x784xf32>
    %34 = vector.broadcast %33 : vector<1x784xf32> to vector<4x784xf32>
    %35 = arith.addf %32, %34 : vector<4x784xf32>
    %36 = arith.negf %35 : vector<4x784xf32>
    %37 = math.exp %36 : vector<4x784xf32>
    %cst_25 = arith.constant 1.000000e+00 : f32
    %38 = vector.broadcast %cst_25 : f32 to vector<4x784xf32>
    %39 = arith.addf %38, %37 : vector<4x784xf32>
    %40 = arith.divf %38, %39 : vector<4x784xf32>
    %41 = arith.truncf %40 : vector<4x784xf32> to vector<4x784xbf16>
    %c0_26 = arith.constant 0 : index
    %c0_27 = arith.constant 0 : index
    %42 = vector.load %arg11[%c0_26, %c0_27] : memref<4x784xbf16, #tpu.memory_space<vmem>>, vector<4x784xbf16>
    tpu.vector_store %arg11[%c0_26, %c0_27], %41 {strides = array<i32>} : memref<4x784xbf16, #tpu.memory_space<vmem>>, vector<4x784xbf16>,
    return
  }
  func.func @transform_0(%arg0: i32) -> (i32, i32) {
    %c0_i32 = arith.constant 0 : i32
    %c0_i32_0 = arith.constant 0 : i32
    return %arg0, %c0_i32 : i32, i32
  }
  func.func @transform_1(%arg0: i32) -> (i32, i32) {
    %c0_i32 = arith.constant 0 : i32
    %c0_i32_0 = arith.constant 0 : i32
    %c0_i32_1 = arith.constant 0 : i32
    return %c0_i32, %c0_i32_0 : i32, i32
  }
  func.func @transform_2(%arg0: i32) -> (i32, i32) {
    %c0_i32 = arith.constant 0 : i32
    %c0_i32_0 = arith.constant 0 : i32
    %c0_i32_1 = arith.constant 0 : i32
    return %c0_i32, %c0_i32_0 : i32, i32
  }
  func.func @transform_3(%arg0: i32) -> (i32, i32) {
    %c0_i32 = arith.constant 0 : i32
    %c0_i32_0 = arith.constant 0 : i32
    %c0_i32_1 = arith.constant 0 : i32
    return %c0_i32, %c0_i32_0 : i32, i32
  }
  func.func @transform_4(%arg0: i32) -> (i32, i32) {
    %c0_i32 = arith.constant 0 : i32
    %c0_i32_0 = arith.constant 0 : i32
    %c0_i32_1 = arith.constant 0 : i32
    return %c0_i32, %c0_i32_0 : i32, i32
  }
  func.func @transform_5(%arg0: i32) -> (i32, i32) {
    %c0_i32 = arith.constant 0 : i32
    %c0_i32_0 = arith.constant 0 : i32
    return %arg0, %c0_i32 : i32, i32
  }
  func.func @transform_6(%arg0: i32) -> (i32, i32) {
    %c0_i32 = arith.constant 0 : i32
    %c0_i32_0 = arith.constant 0 : i32
    %c0_i32_1 = arith.constant 0 : i32
    return %c0_i32, %c0_i32_0 : i32, i32
  }
  func.func @transform_7(%arg0: i32) -> (i32, i32) {
    %c0_i32 = arith.constant 0 : i32
    %c0_i32_0 = arith.constant 0 : i32
    %c0_i32_1 = arith.constant 0 : i32
    return %c0_i32, %c0_i32_0 : i32, i32
  }
  func.func @transform_8(%arg0: i32) -> (i32, i32) {
    %c0_i32 = arith.constant 0 : i32
    %c0_i32_0 = arith.constant 0 : i32
    %c0_i32_1 = arith.constant 0 : i32
    return %c0_i32, %c0_i32_0 : i32, i32
  }
  func.func @transform_9(%arg0: i32) -> (i32, i32) {
    %c0_i32 = arith.constant 0 : i32
    %c0_i32_0 = arith.constant 0 : i32
    %c0_i32_1 = arith.constant 0 : i32
    return %c0_i32, %c0_i32_0 : i32, i32
  }
  func.func @transform_10(%arg0: i32) -> (i32, i32) {
    %c0_i32 = arith.constant 0 : i32
    %c0_i32_0 = arith.constant 0 : i32
    return %arg0, %c0_i32 : i32, i32
  }
}

</mosaic_0001>

<llo_original>
// kernel: tpu_custom_call.1
$region0: #{tpu_custom_call.1}
  #allocation0 [shape = 'u32[]', space=smem, size = 0x4, offset = 0x4, fixed_abs, tag = 'smem constant byte address 0x4 - core index']
  #allocation1 [shape = 'u32[72,128]{1,0:T(1,128)}', space=vmem, size = 0x9000, scoped, tag = 'internal scratch']
  %s0 = inlined_call_operand.vmem [shape: bf16[4,784], index: 0, kind: input, shape index: {}]
  %s1 = inlined_call_operand.vmem [shape: bf16[784,400], index: 1, kind: input, shape index: {}]
  %s2 = inlined_call_operand.vmem [shape: f32[1,400], index: 2, kind: input, shape index: {}]
  %s3 = inlined_call_operand.vmem [shape: bf16[400,256], index: 3, kind: input, shape index: {}]
  %s4 = inlined_call_operand.vmem [shape: f32[1,256], index: 4, kind: input, shape index: {}]
  %s5 = inlined_call_operand.vmem [shape: f32[4,20], index: 5, kind: input, shape index: {}]
  %s6 = inlined_call_operand.vmem [shape: bf16[20,400], index: 6, kind: input, shape index: {}]
  %s7 = inlined_call_operand.vmem [shape: f32[1,400], index: 7, kind: input, shape index: {}]
  %s8 = inlined_call_operand.vmem [shape: bf16[400,784], index: 8, kind: input, shape index: {}]
  %s9 = inlined_call_operand.vmem [shape: f32[1,784], index: 9, kind: input, shape index: {}]
  %s10 = inlined_call_operand.hbm [shape: bf16[4,784], index: 10, kind: output, shape index: {}]
  %s11 = sld [smem:[#allocation0]]
  $region50: #{tpu_custom_call.1} parent=0
    _
  %s13 = ssub.s32 1, %s11
  %s14 = scalar_select 0, %s13, %s11
  $region1: #{tpu_custom_call.1} parent=0
    #allocation2 [shape = 'u8[7168]{0}', space=vmem, size = 0x1c00, scoped, tag = 'output window, operand 0, single buffered']
    #allocation3 [shape = 's32[1]{0}', space=sflag, size = 0x4, scoped, tag = 'scoped memory for tpu_custom_call.1']
    %15 = vsyncpa [#allocation3], 0
    // Predicated region
    $region2: #{tpu_custom_call.1} parent=1 // pred_check
      _
    $region3: #{tpu_custom_call.1} parent=1 // pred_check_branch
      %17 = sbr.rel (0) target = $region5
    $region4: #{tpu_custom_call.1} parent=1 // pred_region
      _
    $region5: #{tpu_custom_call.1} parent=1 // pred_fallthru
      _
    // Predicated region
    $region6: #{tpu_custom_call.1} parent=1 // pred_check
      _
    $region7: #{tpu_custom_call.1} parent=1 // pred_check_branch
      %19 = sbr.rel (0) target = $region9
    $region8: #{tpu_custom_call.1} parent=1 // pred_region
      _
    $region9: #{tpu_custom_call.1} parent=1 // pred_fallthru
      _
    // Predicated region
    $region10: #{tpu_custom_call.1} parent=1 // pred_check
      _
    $region11: #{tpu_custom_call.1} parent=1 // pred_check_branch
      %21 = sbr.rel (0) target = $region13
    $region12: #{tpu_custom_call.1} parent=1 // pred_region
      _
    $region13: #{tpu_custom_call.1} parent=1 // pred_fallthru
      _
    // Predicated region
    $region14: #{tpu_custom_call.1} parent=1 // pred_check
      _
    $region15: #{tpu_custom_call.1} parent=1 // pred_check_branch
      %23 = sbr.rel (0) target = $region17
    $region16: #{tpu_custom_call.1} parent=1 // pred_region
      _
    $region17: #{tpu_custom_call.1} parent=1 // pred_fallthru
      _
    // Predicated region
    $region18: #{tpu_custom_call.1} parent=1 // pred_check
      _
    $region19: #{tpu_custom_call.1} parent=1 // pred_check_branch
      %25 = sbr.rel (0) target = $region21
    $region20: #{tpu_custom_call.1} parent=1 // pred_region
      _
    $region21: #{tpu_custom_call.1} parent=1 // pred_fallthru
      _
    // Predicated region
    $region22: #{tpu_custom_call.1} parent=1 // pred_check
      _
    $region23: #{tpu_custom_call.1} parent=1 // pred_check_branch
      %27 = sbr.rel (0) target = $region25
    $region24: #{tpu_custom_call.1} parent=1 // pred_region
      _
    $region25: #{tpu_custom_call.1} parent=1 // pred_fallthru
      _
    // Predicated region
    $region26: #{tpu_custom_call.1} parent=1 // pred_check
      _
    $region27: #{tpu_custom_call.1} parent=1 // pred_check_branch
      %29 = sbr.rel (0) target = $region29
    $region28: #{tpu_custom_call.1} parent=1 // pred_region
      _
    $region29: #{tpu_custom_call.1} parent=1 // pred_fallthru
      _
    // Predicated region
    $region30: #{tpu_custom_call.1} parent=1 // pred_check
      _
    $region31: #{tpu_custom_call.1} parent=1 // pred_check_branch
      %31 = sbr.rel (0) target = $region33
    $region32: #{tpu_custom_call.1} parent=1 // pred_region
      _
    $region33: #{tpu_custom_call.1} parent=1 // pred_fallthru
      _
    // Predicated region
    $region34: #{tpu_custom_call.1} parent=1 // pred_check
      _
    $region35: #{tpu_custom_call.1} parent=1 // pred_check_branch
      %33 = sbr.rel (0) target = $region37
    $region36: #{tpu_custom_call.1} parent=1 // pred_region
      _
    $region37: #{tpu_custom_call.1} parent=1 // pred_fallthru
      _
    // Predicated region
    $region38: #{tpu_custom_call.1} parent=1 // pred_check
      _
    $region39: #{tpu_custom_call.1} parent=1 // pred_check_branch
      %35 = sbr.rel (0) target = $region41
    $region40: #{tpu_custom_call.1} parent=1 // pred_region
      _
    $region41: #{tpu_custom_call.1} parent=1 // pred_fallthru
      _
    %v37 = vld [vmem:[%s0] sm:$0xff]
    %v38 = vld [vmem:[%s0 + $0x8] sm:$0x3f]
    %v39 = vld [vmem:[%s1] sm:$0xff]
    %v40 = vld [vmem:[%s1 + $0x8] sm:$0xff]
    %v41 = vld [vmem:[%s1 + $0x10] sm:$0xff]
    %v42 = vld [vmem:[%s1 + $0x18] sm:$0xff]
    %v43 = vld [vmem:[%s1 + $0x20] sm:$0xff]
    %v44 = vld [vmem:[%s1 + $0x28] sm:$0xff]
    %v45 = vld [vmem:[%s1 + $0x30] sm:$0xff]
    %v46 = vld [vmem:[%s1 + $0x38] sm:$0xff]
    %v47 = vld [vmem:[%s1 + $0x40] sm:$0xff]
    %v48 = vld [vmem:[%s1 + $0x48] sm:$0xff]
    %v49 = vld [vmem:[%s1 + $0x50] sm:$0xff]
    %v50 = vld [vmem:[%s1 + $0x58] sm:$0xff]
    %v51 = vld [vmem:[%s1 + $0x60] sm:$0xff]
    %v52 = vld [vmem:[%s1 + $0x68] sm:$0xff]
    %v53 = vld [vmem:[%s1 + $0x70] sm:$0xff]
    %v54 = vld [vmem:[%s1 + $0x78] sm:$0xff]
    %v55 = vld [vmem:[%s1 + $0x80] sm:$0xff]
    %v56 = vld [vmem:[%s1 + $0x88] sm:$0xff]
    %v57 = vld [vmem:[%s1 + $0x90] sm:$0xff]
    %v58 = vld [vmem:[%s1 + $0x98] sm:$0xff]
    %v59 = vld [vmem:[%s1 + $0xa0] sm:$0xff]
    %v60 = vld [vmem:[%s1 + $0xa8] sm:$0xff]
    %v61 = vld [vmem:[%s1 + $0xb0] sm:$0xff]
    %v62 = vld [vmem:[%s1 + $0xb8] sm:$0xff]
    %v63 = vld [vmem:[%s1 + $0xc0] sm:$0xff]
    %v64 = vld [vmem:[%s1 + $0xc8] sm:$0xff]
    %v65 = vld [vmem:[%s1 + $0xd0] sm:$0xff]
    %v66 = vld [vmem:[%s1 + $0xd8] sm:$0xff]
    %v67 = vld [vmem:[%s1 + $0xe0] sm:$0xff]
    %v68 = vld [vmem:[%s1 + $0xe8] sm:$0xff]
    %v69 = vld [vmem:[%s1 + $0xf0] sm:$0xff]
    %v70 = vld [vmem:[%s1 + $0xf8] sm:$0xff]
    %v71 = vld [vmem:[%s1 + $0x100] sm:$0xff]
    %v72 = vld [vmem:[%s1 + $0x108] sm:$0xff]
    %v73 = vld [vmem:[%s1 + $0x110] sm:$0xff]
    %v74 = vld [vmem:[%s1 + $0x118] sm:$0xff]
    %v75 = vld [vmem:[%s1 + $0x120] sm:$0xff]
    %v76 = vld [vmem:[%s1 + $0x128] sm:$0xff]
    %v77 = vld [vmem:[%s1 + $0x130] sm:$0xff]
    %v78 = vld [vmem:[%s1 + $0x138] sm:$0xff]
    %v79 = vld [vmem:[%s1 + $0x140] sm:$0xff]
    %v80 = vld [vmem:[%s1 + $0x148] sm:$0xff]
    %v81 = vld [vmem:[%s1 + $0x150] sm:$0xff]
    %v82 = vld [vmem:[%s1 + $0x158] sm:$0xff]
    %v83 = vld [vmem:[%s1 + $0x160] sm:$0xff]
    %v84 = vld [vmem:[%s1 + $0x168] sm:$0xff]
    %v85 = vld [vmem:[%s1 + $0x170] sm:$0xff]
    %v86 = vld [vmem:[%s1 + $0x178] sm:$0xff]
    %v87 = vld [vmem:[%s1 + $0x180] sm:$0xff]
    %v88 = vld [vmem:[%s1 + $0x188] sm:$0xff]
    %v89 = vld [vmem:[%s1 + $0x190] sm:$0xff]
    %v90 = vld [vmem:[%s1 + $0x198] sm:$0xff]
    %v91 = vld [vmem:[%s1 + $0x1a0] sm:$0xff]
    %v92 = vld [vmem:[%s1 + $0x1a8] sm:$0xff]
    %v93 = vld [vmem:[%s1 + $0x1b0] sm:$0xff]
    %v94 = vld [vmem:[%s1 + $0x1b8] sm:$0xff]
    %v95 = vld [vmem:[%s1 + $0x1c0] sm:$0xff]
    %v96 = vld [vmem:[%s1 + $0x1c8] sm:$0xff]
    %v97 = vld [vmem:[%s1 + $0x1d0] sm:$0xff]
    %v98 = vld [vmem:[%s1 + $0x1d8] sm:$0xff]
    %v99 = vld [vmem:[%s1 + $0x1e0] sm:$0xff]
    %v100 = vld [vmem:[%s1 + $0x1e8] sm:$0xff]
    %v101 = vld [vmem:[%s1 + $0x1f0] sm:$0xff]
    %v102 = vld [vmem:[%s1 + $0x1f8] sm:$0xff]
    %v103 = vld [vmem:[%s1 + $0x200] sm:$0xff]
    %v104 = vld [vmem:[%s1 + $0x208] sm:$0xff]
    %v105 = vld [vmem:[%s1 + $0x210] sm:$0xff]
    %v106 = vld [vmem:[%s1 + $0x218] sm:$0xff]
    %v107 = vld [vmem:[%s1 + $0x220] sm:$0xff]
    %v108 = vld [vmem:[%s1 + $0x228] sm:$0xff]
    %v109 = vld [vmem:[%s1 + $0x230] sm:$0xff]
    %v110 = vld [vmem:[%s1 + $0x238] sm:$0xff]
    %v111 = vld [vmem:[%s1 + $0x240] sm:$0xff]
    %v112 = vld [vmem:[%s1 + $0x248] sm:$0xff]
    %v113 = vld [vmem:[%s1 + $0x250] sm:$0xff]
    %v114 = vld [vmem:[%s1 + $0x258] sm:$0xff]
    %v115 = vld [vmem:[%s1 + $0x260] sm:$0xff]
    %v116 = vld [vmem:[%s1 + $0x268] sm:$0xff]
    %v117 = vld [vmem:[%s1 + $0x270] sm:$0xff]
    %v118 = vld [vmem:[%s1 + $0x278] sm:$0xff]
    %v119 = vld [vmem:[%s1 + $0x280] sm:$0xff]
    %v120 = vld [vmem:[%s1 + $0x288] sm:$0xff]
    %v121 = vld [vmem:[%s1 + $0x290] sm:$0xff]
    %v122 = vld [vmem:[%s1 + $0x298] sm:$0xff]
    %v123 = vld [vmem:[%s1 + $0x2a0] sm:$0xff]
    %v124 = vld [vmem:[%s1 + $0x2a8] sm:$0xff]
    %v125 = vld [vmem:[%s1 + $0x2b0] sm:$0xff]
    %v126 = vld [vmem:[%s1 + $0x2b8] sm:$0xff]
    %v127 = vld [vmem:[%s1 + $0x2c0] sm:$0xff]
    %v128 = vld [vmem:[%s1 + $0x2c8] sm:$0xff]
    %v129 = vld [vmem:[%s1 + $0x2d0] sm:$0xff]
    %v130 = vld [vmem:[%s1 + $0x2d8] sm:$0xff]
    %v131 = vld [vmem:[%s1 + $0x2e0] sm:$0xff]
    %v132 = vld [vmem:[%s1 + $0x2e8] sm:$0xff]
    %v133 = vld [vmem:[%s1 + $0x2f0] sm:$0xff]
    %v134 = vld [vmem:[%s1 + $0x2f8] sm:$0xff]
    %v135 = vld [vmem:[%s1 + $0x300] sm:$0xff]
    %v136 = vld [vmem:[%s1 + $0x308] sm:$0xff]
    %v137 = vld [vmem:[%s1 + $0x310] sm:$0xff]
    %v138 = vld [vmem:[%s1 + $0x318] sm:$0xff]
    %v139 = vld [vmem:[%s1 + $0x320] sm:$0xff]
    %v140 = vld [vmem:[%s1 + $0x328] sm:$0xff]
    %v141 = vld [vmem:[%s1 + $0x330] sm:$0xff]
    %v142 = vld [vmem:[%s1 + $0x338] sm:$0xff]
    %v143 = vld [vmem:[%s1 + $0x340] sm:$0xff]
    %v144 = vld [vmem:[%s1 + $0x348] sm:$0xff]
    %v145 = vld [vmem:[%s1 + $0x350] sm:$0xff]
    %v146 = vld [vmem:[%s1 + $0x358] sm:$0xff]
    %v147 = vld [vmem:[%s1 + $0x360] sm:$0xff]
    %v148 = vld [vmem:[%s1 + $0x368] sm:$0xff]
    %v149 = vld [vmem:[%s1 + $0x370] sm:$0xff]
    %v150 = vld [vmem:[%s1 + $0x378] sm:$0xff]
    %v151 = vld [vmem:[%s1 + $0x380] sm:$0xff]
    %v152 = vld [vmem:[%s1 + $0x388] sm:$0xff]
    %v153 = vld [vmem:[%s1 + $0x390] sm:$0xff]
    %v154 = vld [vmem:[%s1 + $0x398] sm:$0xff]
    %v155 = vld [vmem:[%s1 + $0x3a0] sm:$0xff]
    %v156 = vld [vmem:[%s1 + $0x3a8] sm:$0xff]
    %v157 = vld [vmem:[%s1 + $0x3b0] sm:$0xff]
    %v158 = vld [vmem:[%s1 + $0x3b8] sm:$0xff]
    %v159 = vld [vmem:[%s1 + $0x3c0] sm:$0xff]
    %v160 = vld [vmem:[%s1 + $0x3c8] sm:$0xff]
    %v161 = vld [vmem:[%s1 + $0x3d0] sm:$0xff]
    %v162 = vld [vmem:[%s1 + $0x3d8] sm:$0xff]
    %v163 = vld [vmem:[%s1 + $0x3e0] sm:$0xff]
    %v164 = vld [vmem:[%s1 + $0x3e8] sm:$0xff]
    %v165 = vld [vmem:[%s1 + $0x3f0] sm:$0xff]
    %v166 = vld [vmem:[%s1 + $0x3f8] sm:$0xff]
    %v167 = vld [vmem:[%s1 + $0x400] sm:$0xff]
    %v168 = vld [vmem:[%s1 + $0x408] sm:$0xff]
    %v169 = vld [vmem:[%s1 + $0x410] sm:$0xff]
    %v170 = vld [vmem:[%s1 + $0x418] sm:$0xff]
    %v171 = vld [vmem:[%s1 + $0x420] sm:$0xff]
    %v172 = vld [vmem:[%s1 + $0x428] sm:$0xff]
    %v173 = vld [vmem:[%s1 + $0x430] sm:$0xff]
    %v174 = vld [vmem:[%s1 + $0x438] sm:$0xff]
    %v175 = vld [vmem:[%s1 + $0x440] sm:$0xff]
    %v176 = vld [vmem:[%s1 + $0x448] sm:$0xff]
    %v177 = vld [vmem:[%s1 + $0x450] sm:$0xff]
    %v178 = vld [vmem:[%s1 + $0x458] sm:$0xff]
    %v179 = vld [vmem:[%s1 + $0x460] sm:$0xff]
    %v180 = vld [vmem:[%s1 + $0x468] sm:$0xff]
    %v181 = vld [vmem:[%s1 + $0x470] sm:$0xff]
    %v182 = vld [vmem:[%s1 + $0x478] sm:$0xff]
    %v183 = vld [vmem:[%s1 + $0x480] sm:$0xff]
    %v184 = vld [vmem:[%s1 + $0x488] sm:$0xff]
    %v185 = vld [vmem:[%s1 + $0x490] sm:$0xff]
    %v186 = vld [vmem:[%s1 + $0x498] sm:$0xff]
    %v187 = vld [vmem:[%s1 + $0x4a0] sm:$0xff]
    %v188 = vld [vmem:[%s1 + $0x4a8] sm:$0xff]
    %v189 = vld [vmem:[%s1 + $0x4b0] sm:$0xff]
    %v190 = vld [vmem:[%s1 + $0x4b8] sm:$0xff]
    %v191 = vld [vmem:[%s1 + $0x4c0] sm:$0xff]
    %v192 = vld [vmem:[%s1 + $0x4c8] sm:$0xff]
    %v193 = vld [vmem:[%s1 + $0x4d0] sm:$0xff]
    %v194 = vld [vmem:[%s1 + $0x4d8] sm:$0xff]
    %v195 = vld [vmem:[%s1 + $0x4e0] sm:$0xff]
    %v196 = vld [vmem:[%s1 + $0x4e8] sm:$0xff]
    %v197 = vld [vmem:[%s1 + $0x4f0] sm:$0xff]
    %v198 = vld [vmem:[%s1 + $0x4f8] sm:$0xff]
    %v199 = vld [vmem:[%s1 + $0x500] sm:$0xff]
    %v200 = vld [vmem:[%s1 + $0x508] sm:$0xff]
    %v201 = vld [vmem:[%s1 + $0x510] sm:$0xff]
    %v202 = vld [vmem:[%s1 + $0x518] sm:$0xff]
    %v203 = vld [vmem:[%s1 + $0x520] sm:$0xff]
    %v204 = vld [vmem:[%s1 + $0x528] sm:$0xff]
    %v205 = vld [vmem:[%s1 + $0x530] sm:$0xff]
    %v206 = vld [vmem:[%s1 + $0x538] sm:$0xff]
    %v207 = vld [vmem:[%s1 + $0x540] sm:$0xff]
    %v208 = vld [vmem:[%s1 + $0x548] sm:$0xff]
    %v209 = vld [vmem:[%s1 + $0x550] sm:$0xff]
    %v210 = vld [vmem:[%s1 + $0x558] sm:$0xff]
    %v211 = vld [vmem:[%s1 + $0x560] sm:$0xff]
    %v212 = vld [vmem:[%s1 + $0x568] sm:$0xff]
    %v213 = vld [vmem:[%s1 + $0x570] sm:$0xff]
    %v214 = vld [vmem:[%s1 + $0x578] sm:$0xff]
    %v215 = vld [vmem:[%s1 + $0x580] sm:$0xff]
    %v216 = vld [vmem:[%s1 + $0x588] sm:$0xff]
    %v217 = vld [vmem:[%s1 + $0x590] sm:$0xff]
    %v218 = vld [vmem:[%s1 + $0x598] sm:$0xff]
    %v219 = vld [vmem:[%s1 + $0x5a0] sm:$0xff]
    %v220 = vld [vmem:[%s1 + $0x5a8] sm:$0xff]
    %v221 = vld [vmem:[%s1 + $0x5b0] sm:$0xff]
    %v222 = vld [vmem:[%s1 + $0x5b8] sm:$0xff]
    %v223 = vld [vmem:[%s1 + $0x5c0] sm:$0xff]
    %v224 = vld [vmem:[%s1 + $0x5c8] sm:$0xff]
    %v225 = vld [vmem:[%s1 + $0x5d0] sm:$0xff]
    %v226 = vld [vmem:[%s1 + $0x5d8] sm:$0xff]
    %v227 = vld [vmem:[%s1 + $0x5e0] sm:$0xff]
    %v228 = vld [vmem:[%s1 + $0x5e8] sm:$0xff]
    %v229 = vld [vmem:[%s1 + $0x5f0] sm:$0xff]
    %v230 = vld [vmem:[%s1 + $0x5f8] sm:$0xff]
    %v231 = vld [vmem:[%s1 + $0x600] sm:$0xff]
    %v232 = vld [vmem:[%s1 + $0x608] sm:$0xff]
    %v233 = vld [vmem:[%s1 + $0x610] sm:$0xff]
    %v234 = vld [vmem:[%s1 + $0x618] sm:$0xff]
    %v235 = vld [vmem:[%s2] sm:$0xf]
    %v237 = vperm.slane %v235, 0
    %v238 = vperm.slane %v235, 1
    %v239 = vperm.slane %v235, 2
    %v240 = vperm.slane %v235, 3
    %246 = vst [vmem:[#allocation1] ss:$4 sm:$0xff] %v37
    %s248 = scalar_lea.vmem [#allocation1], 32
    %249 = vst [vmem:[%s248] ss:$4 sm:$0xff] %v38
    %v250 = vld.sshfl [vmem:[#allocation1] sm:$0xff pattern:$0x73625140]
    %v251 = vld.sshfl [vmem:[#allocation1 + $0x8] sm:$0xff pattern:$0x73625140]
    %v252 = vld.sshfl [vmem:[#allocation1 + $0x10] sm:$0xff pattern:$0x73625140]
    %v253 = vld.sshfl [vmem:[#allocation1 + $0x18] sm:$0xff pattern:$0x73625140]
    %v254 = vld.sshfl [vmem:[#allocation1 + $0x20] sm:$0xff pattern:$0x73625140]
    %v255 = vld.sshfl [vmem:[#allocation1 + $0x28] sm:$0xff pattern:$0x73625140]
    %v256 = vld.sshfl [vmem:[#allocation1 + $0x30] sm:$0xff pattern:$0x73625140]
    %v459 = vunpack.c.l.b16 %v39
    %v460 = vunpack.c.h.b16 %v39
    %v461 = vunpack.c.l.b16 %v40
    %v462 = vunpack.c.h.b16 %v40
    %v463 = vunpack.c.l.b16 %v41
    %v464 = vunpack.c.h.b16 %v41
    %v465 = vunpack.c.l.b16 %v42
    %v466 = vunpack.c.h.b16 %v42
    %v467 = vunpack.c.l.b16 %v43
    %v468 = vunpack.c.h.b16 %v43
    %v469 = vunpack.c.l.b16 %v44
    %v470 = vunpack.c.h.b16 %v44
    %v471 = vunpack.c.l.b16 %v45
    %v472 = vunpack.c.h.b16 %v45
    %v473 = vunpack.c.l.b16 %v46
    %v474 = vunpack.c.h.b16 %v46
    %v475 = vunpack.c.l.b16 %v47
    %v476 = vunpack.c.h.b16 %v47
    %v477 = vunpack.c.l.b16 %v48
    %v478 = vunpack.c.h.b16 %v48
    %v479 = vunpack.c.l.b16 %v49
    %v480 = vunpack.c.h.b16 %v49
    %v481 = vunpack.c.l.b16 %v50
    %v482 = vunpack.c.h.b16 %v50
    %v483 = vunpack.c.l.b16 %v51
    %v484 = vunpack.c.h.b16 %v51
    %v485 = vunpack.c.l.b16 %v52
    %v486 = vunpack.c.h.b16 %v52
    %v487 = vunpack.c.l.b16 %v53
    %v488 = vunpack.c.h.b16 %v53
    %v489 = vunpack.c.l.b16 %v54
    %v490 = vunpack.c.h.b16 %v54
    %v491 = vunpack.c.l.b16 %v55
    %v492 = vunpack.c.h.b16 %v55
    %v493 = vunpack.c.l.b16 %v56
    %v494 = vunpack.c.h.b16 %v56
    %v495 = vunpack.c.l.b16 %v57
    %v496 = vunpack.c.h.b16 %v57
    %v497 = vunpack.c.l.b16 %v58
    %v498 = vunpack.c.h.b16 %v58
    %v499 = vunpack.c.l.b16 %v59
    %v500 = vunpack.c.h.b16 %v59
    %v501 = vunpack.c.l.b16 %v60
    %v502 = vunpack.c.h.b16 %v60
    %v503 = vunpack.c.l.b16 %v61
    %v504 = vunpack.c.h.b16 %v61
    %v505 = vunpack.c.l.b16 %v62
    %v506 = vunpack.c.h.b16 %v62
    %v507 = vunpack.c.l.b16 %v63
    %v508 = vunpack.c.h.b16 %v63
    %v509 = vunpack.c.l.b16 %v64
    %v510 = vunpack.c.h.b16 %v64
    %v511 = vunpack.c.l.b16 %v65
    %v512 = vunpack.c.h.b16 %v65
    %v513 = vunpack.c.l.b16 %v66
    %v514 = vunpack.c.h.b16 %v66
    %v515 = vunpack.c.l.b16 %v67
    %v516 = vunpack.c.h.b16 %v67
    %v517 = vunpack.c.l.b16 %v68
    %v518 = vunpack.c.h.b16 %v68
    %v519 = vunpack.c.l.b16 %v69
    %v520 = vunpack.c.h.b16 %v69
    %v521 = vunpack.c.l.b16 %v70
    %v522 = vunpack.c.h.b16 %v70
    %v523 = vunpack.c.l.b16 %v71
    %v524 = vunpack.c.h.b16 %v71
    %v525 = vunpack.c.l.b16 %v72
    %v526 = vunpack.c.h.b16 %v72
    %v527 = vunpack.c.l.b16 %v73
    %v528 = vunpack.c.h.b16 %v73
    %v529 = vunpack.c.l.b16 %v74
    %v530 = vunpack.c.h.b16 %v74
    %v531 = vunpack.c.l.b16 %v75
    %v532 = vunpack.c.h.b16 %v75
    %v533 = vunpack.c.l.b16 %v76
    %v534 = vunpack.c.h.b16 %v76
    %v535 = vunpack.c.l.b16 %v77
    %v536 = vunpack.c.h.b16 %v77
    %v537 = vunpack.c.l.b16 %v78
    %v538 = vunpack.c.h.b16 %v78
    %v539 = vunpack.c.l.b16 %v79
    %v540 = vunpack.c.h.b16 %v79
    %v541 = vunpack.c.l.b16 %v80
    %v542 = vunpack.c.h.b16 %v80
    %v543 = vunpack.c.l.b16 %v81
    %v544 = vunpack.c.h.b16 %v81
    %v545 = vunpack.c.l.b16 %v82
    %v546 = vunpack.c.h.b16 %v82
    %v547 = vunpack.c.l.b16 %v83
    %v548 = vunpack.c.h.b16 %v83
    %v549 = vunpack.c.l.b16 %v84
    %v550 = vunpack.c.h.b16 %v84
    %v551 = vunpack.c.l.b16 %v85
    %v552 = vunpack.c.h.b16 %v85
    %v553 = vunpack.c.l.b16 %v86
    %v554 = vunpack.c.h.b16 %v86
    %v555 = vunpack.c.l.b16 %v87
    %v556 = vunpack.c.h.b16 %v87
    %v557 = vunpack.c.l.b16 %v88
    %v558 = vunpack.c.h.b16 %v88
    %v559 = vunpack.c.l.b16 %v89
    %v560 = vunpack.c.h.b16 %v89
    %v561 = vunpack.c.l.b16 %v90
    %v562 = vunpack.c.h.b16 %v90
    %v563 = vunpack.c.l.b16 %v91
    %v564 = vunpack.c.h.b16 %v91
    %v565 = vunpack.c.l.b16 %v92
    %v566 = vunpack.c.h.b16 %v92
    %v567 = vunpack.c.l.b16 %v93
    %v568 = vunpack.c.h.b16 %v93
    %v569 = vunpack.c.l.b16 %v94
    %v570 = vunpack.c.h.b16 %v94
    %v571 = vunpack.c.l.b16 %v95
    %v572 = vunpack.c.h.b16 %v95
    %v573 = vunpack.c.l.b16 %v96
    %v574 = vunpack.c.h.b16 %v96
    %v575 = vunpack.c.l.b16 %v97
    %v576 = vunpack.c.h.b16 %v97
    %v577 = vunpack.c.l.b16 %v98
    %v578 = vunpack.c.h.b16 %v98
    %v579 = vunpack.c.l.b16 %v99
    %v580 = vunpack.c.h.b16 %v99
    %v581 = vunpack.c.l.b16 %v100
    %v582 = vunpack.c.h.b16 %v100
    %v583 = vunpack.c.l.b16 %v101
    %v584 = vunpack.c.h.b16 %v101
    %v585 = vunpack.c.l.b16 %v102
    %v586 = vunpack.c.h.b16 %v102
    %v587 = vunpack.c.l.b16 %v103
    %v588 = vunpack.c.h.b16 %v103
    %v589 = vunpack.c.l.b16 %v104
    %v590 = vunpack.c.h.b16 %v104
    %v591 = vunpack.c.l.b16 %v105
    %v592 = vunpack.c.h.b16 %v105
    %v593 = vunpack.c.l.b16 %v106
    %v594 = vunpack.c.h.b16 %v106
    %v595 = vunpack.c.l.b16 %v107
    %v596 = vunpack.c.h.b16 %v107
    %v597 = vunpack.c.l.b16 %v108
    %v598 = vunpack.c.h.b16 %v108
    %v599 = vunpack.c.l.b16 %v109
    %v600 = vunpack.c.h.b16 %v109
    %v601 = vunpack.c.l.b16 %v110
    %v602 = vunpack.c.h.b16 %v110
    %v603 = vunpack.c.l.b16 %v111
    %v604 = vunpack.c.h.b16 %v111
    %v605 = vunpack.c.l.b16 %v112
    %v606 = vunpack.c.h.b16 %v112
    %v607 = vunpack.c.l.b16 %v113
    %v608 = vunpack.c.h.b16 %v113
    %v609 = vunpack.c.l.b16 %v114
    %v610 = vunpack.c.h.b16 %v114
    %v611 = vunpack.c.l.b16 %v115
    %v612 = vunpack.c.h.b16 %v115
    %v613 = vunpack.c.l.b16 %v116
    %v614 = vunpack.c.h.b16 %v116
    %v615 = vunpack.c.l.b16 %v117
    %v616 = vunpack.c.h.b16 %v117
    %v617 = vunpack.c.l.b16 %v118
    %v618 = vunpack.c.h.b16 %v118
    %v619 = vunpack.c.l.b16 %v119
    %v620 = vunpack.c.h.b16 %v119
    %v621 = vunpack.c.l.b16 %v120
    %v622 = vunpack.c.h.b16 %v120
    %v623 = vunpack.c.l.b16 %v121
    %v624 = vunpack.c.h.b16 %v121
    %v625 = vunpack.c.l.b16 %v122
    %v626 = vunpack.c.h.b16 %v122
    %v627 = vunpack.c.l.b16 %v123
    %v628 = vunpack.c.h.b16 %v123
    %v629 = vunpack.c.l.b16 %v124
    %v630 = vunpack.c.h.b16 %v124
    %v631 = vunpack.c.l.b16 %v125
    %v632 = vunpack.c.h.b16 %v125
    %v633 = vunpack.c.l.b16 %v126
    %v634 = vunpack.c.h.b16 %v126
    %v635 = vunpack.c.l.b16 %v127
    %v636 = vunpack.c.h.b16 %v127
    %v637 = vunpack.c.l.b16 %v128
    %v638 = vunpack.c.h.b16 %v128
    %v639 = vunpack.c.l.b16 %v129
    %v640 = vunpack.c.h.b16 %v129
    %v641 = vunpack.c.l.b16 %v130
    %v642 = vunpack.c.h.b16 %v130
    %v643 = vunpack.c.l.b16 %v131
    %v644 = vunpack.c.h.b16 %v131
    %v645 = vunpack.c.l.b16 %v132
    %v646 = vunpack.c.h.b16 %v132
    %v647 = vunpack.c.l.b16 %v133
    %v648 = vunpack.c.h.b16 %v133
    %v649 = vunpack.c.l.b16 %v134
    %v650 = vunpack.c.h.b16 %v134
    %v651 = vunpack.c.l.b16 %v135
    %v652 = vunpack.c.h.b16 %v135
    %v653 = vunpack.c.l.b16 %v136
    %v654 = vunpack.c.h.b16 %v136
    %v655 = vunpack.c.l.b16 %v137
    %v656 = vunpack.c.h.b16 %v137
    %v657 = vunpack.c.l.b16 %v138
    %v658 = vunpack.c.h.b16 %v138
    %v659 = vunpack.c.l.b16 %v139
    %v660 = vunpack.c.h.b16 %v139
    %v661 = vunpack.c.l.b16 %v140
    %v662 = vunpack.c.h.b16 %v140
    %v663 = vunpack.c.l.b16 %v141
    %v664 = vunpack.c.h.b16 %v141
    %v665 = vunpack.c.l.b16 %v142
    %v666 = vunpack.c.h.b16 %v142
    %v667 = vunpack.c.l.b16 %v143
    %v668 = vunpack.c.h.b16 %v143
    %v669 = vunpack.c.l.b16 %v144
    %v670 = vunpack.c.h.b16 %v144
    %v671 = vunpack.c.l.b16 %v145
    %v672 = vunpack.c.h.b16 %v145
    %v673 = vunpack.c.l.b16 %v146
    %v674 = vunpack.c.h.b16 %v146
    %v675 = vunpack.c.l.b16 %v147
    %v676 = vunpack.c.h.b16 %v147
    %v677 = vunpack.c.l.b16 %v148
    %v678 = vunpack.c.h.b16 %v148
    %v679 = vunpack.c.l.b16 %v149
    %v680 = vunpack.c.h.b16 %v149
    %v681 = vunpack.c.l.b16 %v150
    %v682 = vunpack.c.h.b16 %v150
    %v683 = vunpack.c.l.b16 %v151
    %v684 = vunpack.c.h.b16 %v151
    %v685 = vunpack.c.l.b16 %v152
    %v686 = vunpack.c.h.b16 %v152
    %v687 = vunpack.c.l.b16 %v153
    %v688 = vunpack.c.h.b16 %v153
    %v689 = vunpack.c.l.b16 %v154
    %v690 = vunpack.c.h.b16 %v154
    %v691 = vunpack.c.l.b16 %v155
    %v692 = vunpack.c.h.b16 %v155
    %v693 = vunpack.c.l.b16 %v156
    %v694 = vunpack.c.h.b16 %v156
    %v695 = vunpack.c.l.b16 %v157
    %v696 = vunpack.c.h.b16 %v157
    %v697 = vunpack.c.l.b16 %v158
    %v698 = vunpack.c.h.b16 %v158
    %v699 = vunpack.c.l.b16 %v159
    %v700 = vunpack.c.h.b16 %v159
    %v701 = vunpack.c.l.b16 %v160
    %v702 = vunpack.c.h.b16 %v160
    %v703 = vunpack.c.l.b16 %v161
    %v704 = vunpack.c.h.b16 %v161
    %v705 = vunpack.c.l.b16 %v162
    %v706 = vunpack.c.h.b16 %v162
    %v707 = vunpack.c.l.b16 %v163
    %v708 = vunpack.c.h.b16 %v163
    %v709 = vunpack.c.l.b16 %v164
    %v710 = vunpack.c.h.b16 %v164
    %v711 = vunpack.c.l.b16 %v165
    %v712 = vunpack.c.h.b16 %v165
    %v713 = vunpack.c.l.b16 %v166
    %v714 = vunpack.c.h.b16 %v166
    %v715 = vunpack.c.l.b16 %v167
    %v716 = vunpack.c.h.b16 %v167
    %v717 = vunpack.c.l.b16 %v168
    %v718 = vunpack.c.h.b16 %v168
    %v719 = vunpack.c.l.b16 %v169
    %v720 = vunpack.c.h.b16 %v169
    %v721 = vunpack.c.l.b16 %v170
    %v722 = vunpack.c.h.b16 %v170
    %v723 = vunpack.c.l.b16 %v171
    %v724 = vunpack.c.h.b16 %v171
    %v725 = vunpack.c.l.b16 %v172
    %v726 = vunpack.c.h.b16 %v172
    %v727 = vunpack.c.l.b16 %v173
    %v728 = vunpack.c.h.b16 %v173
    %v729 = vunpack.c.l.b16 %v174
    %v730 = vunpack.c.h.b16 %v174
    %v731 = vunpack.c.l.b16 %v175
    %v732 = vunpack.c.h.b16 %v175
    %v733 = vunpack.c.l.b16 %v176
    %v734 = vunpack.c.h.b16 %v176
    %v735 = vunpack.c.l.b16 %v177
    %v736 = vunpack.c.h.b16 %v177
    %v737 = vunpack.c.l.b16 %v178
    %v738 = vunpack.c.h.b16 %v178
    %v739 = vunpack.c.l.b16 %v179
    %v740 = vunpack.c.h.b16 %v179
    %v741 = vunpack.c.l.b16 %v180
    %v742 = vunpack.c.h.b16 %v180
    %v743 = vunpack.c.l.b16 %v181
    %v744 = vunpack.c.h.b16 %v181
    %v745 = vunpack.c.l.b16 %v182
    %v746 = vunpack.c.h.b16 %v182
    %v747 = vunpack.c.l.b16 %v183
    %v748 = vunpack.c.h.b16 %v183
    %v749 = vunpack.c.l.b16 %v184
    %v750 = vunpack.c.h.b16 %v184
    %v751 = vunpack.c.l.b16 %v185
    %v752 = vunpack.c.h.b16 %v185
    %v753 = vunpack.c.l.b16 %v186
    %v754 = vunpack.c.h.b16 %v186
    %v755 = vunpack.c.l.b16 %v187
    %v756 = vunpack.c.h.b16 %v187
    %v757 = vunpack.c.l.b16 %v188
    %v758 = vunpack.c.h.b16 %v188
    %v759 = vunpack.c.l.b16 %v189
    %v760 = vunpack.c.h.b16 %v189
    %v761 = vunpack.c.l.b16 %v190
    %v762 = vunpack.c.h.b16 %v190
    %v763 = vunpack.c.l.b16 %v191
    %v764 = vunpack.c.h.b16 %v191
    %v765 = vunpack.c.l.b16 %v192
    %v766 = vunpack.c.h.b16 %v192
    %v767 = vunpack.c.l.b16 %v193
    %v768 = vunpack.c.h.b16 %v193
    %v769 = vunpack.c.l.b16 %v194
    %v770 = vunpack.c.h.b16 %v194
    %v771 = vunpack.c.l.b16 %v195
    %v772 = vunpack.c.h.b16 %v195
    %v773 = vunpack.c.l.b16 %v196
    %v774 = vunpack.c.h.b16 %v196
    %v775 = vunpack.c.l.b16 %v197
    %v776 = vunpack.c.h.b16 %v197
    %v777 = vunpack.c.l.b16 %v198
    %v778 = vunpack.c.h.b16 %v198
    %v779 = vunpack.c.l.b16 %v199
    %v780 = vunpack.c.h.b16 %v199
    %v781 = vunpack.c.l.b16 %v200
    %v782 = vunpack.c.h.b16 %v200
    %v783 = vunpack.c.l.b16 %v201
    %v784 = vunpack.c.h.b16 %v201
    %v785 = vunpack.c.l.b16 %v202
    %v786 = vunpack.c.h.b16 %v202
    %v787 = vunpack.c.l.b16 %v203
    %v788 = vunpack.c.h.b16 %v203
    %v789 = vunpack.c.l.b16 %v204
    %v790 = vunpack.c.h.b16 %v204
    %v791 = vunpack.c.l.b16 %v205
    %v792 = vunpack.c.h.b16 %v205
    %v793 = vunpack.c.l.b16 %v206
    %v794 = vunpack.c.h.b16 %v206
    %v795 = vunpack.c.l.b16 %v207
    %v796 = vunpack.c.h.b16 %v207
    %v797 = vunpack.c.l.b16 %v208
    %v798 = vunpack.c.h.b16 %v208
    %v799 = vunpack.c.l.b16 %v209
    %v800 = vunpack.c.h.b16 %v209
    %v801 = vunpack.c.l.b16 %v210
    %v802 = vunpack.c.h.b16 %v210
    %v803 = vunpack.c.l.b16 %v211
    %v804 = vunpack.c.h.b16 %v211
    %v805 = vunpack.c.l.b16 %v212
    %v806 = vunpack.c.h.b16 %v212
    %v807 = vunpack.c.l.b16 %v213
    %v808 = vunpack.c.h.b16 %v213
    %v809 = vunpack.c.l.b16 %v214
    %v810 = vunpack.c.h.b16 %v214
    %v811 = vunpack.c.l.b16 %v215
    %v812 = vunpack.c.h.b16 %v215
    %v813 = vunpack.c.l.b16 %v216
    %v814 = vunpack.c.h.b16 %v216
    %v815 = vunpack.c.l.b16 %v217
    %v816 = vunpack.c.h.b16 %v217
    %v817 = vunpack.c.l.b16 %v218
    %v818 = vunpack.c.h.b16 %v218
    %v819 = vunpack.c.l.b16 %v219
    %v820 = vunpack.c.h.b16 %v219
    %v821 = vunpack.c.l.b16 %v220
    %v822 = vunpack.c.h.b16 %v220
    %v823 = vunpack.c.l.b16 %v221
    %v824 = vunpack.c.h.b16 %v221
    %v825 = vunpack.c.l.b16 %v222
    %v826 = vunpack.c.h.b16 %v222
    %v827 = vunpack.c.l.b16 %v223
    %v828 = vunpack.c.h.b16 %v223
    %v829 = vunpack.c.l.b16 %v224
    %v830 = vunpack.c.h.b16 %v224
    %v831 = vunpack.c.l.b16 %v225
    %v832 = vunpack.c.h.b16 %v225
    %v833 = vunpack.c.l.b16 %v226
    %v834 = vunpack.c.h.b16 %v226
    %v835 = vunpack.c.l.b16 %v227
    %v836 = vunpack.c.h.b16 %v227
    %v837 = vunpack.c.l.b16 %v228
    %v838 = vunpack.c.h.b16 %v228
    %v839 = vunpack.c.l.b16 %v229
    %v840 = vunpack.c.h.b16 %v229
    %v841 = vunpack.c.l.b16 %v230
    %v842 = vunpack.c.h.b16 %v230
    %v843 = vunpack.c.l.b16 %v231
    %v844 = vunpack.c.h.b16 %v231
    %v845 = vunpack.c.l.b16 %v232
    %v846 = vunpack.c.h.b16 %v232
    %v847 = vunpack.c.l.b16 %v233
    %v848 = vunpack.c.h.b16 %v233
    %v849 = vunpack.c.l.b16 %v234
    %v850 = vunpack.c.h.b16 %v234
    %v851 = vpack.c.b16 %v463, %v459
    %v852 = vpack.c.b16 %v464, %v460
    %v853 = vpack.c.b16 %v465, %v461
    %v854 = vpack.c.b16 %v466, %v462
    %v855 = vpack.c.b16 %v471, %v467
    %v856 = vpack.c.b16 %v472, %v468
    %v857 = vpack.c.b16 %v473, %v469
    %v858 = vpack.c.b16 %v474, %v470
    %v859 = vpack.c.b16 %v479, %v475
    %v860 = vpack.c.b16 %v480, %v476
    %v861 = vpack.c.b16 %v481, %v477
    %v862 = vpack.c.b16 %v482, %v478
    %v863 = vpack.c.b16 %v487, %v483
    %v864 = vpack.c.b16 %v488, %v484
    %v865 = vpack.c.b16 %v489, %v485
    %v866 = vpack.c.b16 %v490, %v486
    %v867 = vpack.c.b16 %v495, %v491
    %v868 = vpack.c.b16 %v496, %v492
    %v869 = vpack.c.b16 %v497, %v493
    %v870 = vpack.c.b16 %v498, %v494
    %v871 = vpack.c.b16 %v503, %v499
    %v872 = vpack.c.b16 %v504, %v500
    %v873 = vpack.c.b16 %v505, %v501
    %v874 = vpack.c.b16 %v506, %v502
    %v875 = vpack.c.b16 %v511, %v507
    %v876 = vpack.c.b16 %v512, %v508
    %v877 = vpack.c.b16 %v513, %v509
    %v878 = vpack.c.b16 %v514, %v510
    %v879 = vpack.c.b16 %v519, %v515
    %v880 = vpack.c.b16 %v520, %v516
    %v881 = vpack.c.b16 %v521, %v517
    %v882 = vpack.c.b16 %v522, %v518
    %v883 = vpack.c.b16 %v527, %v523
    %v884 = vpack.c.b16 %v528, %v524
    %v885 = vpack.c.b16 %v529, %v525
    %v886 = vpack.c.b16 %v530, %v526
    %v887 = vpack.c.b16 %v535, %v531
    %v888 = vpack.c.b16 %v536, %v532
    %v889 = vpack.c.b16 %v537, %v533
    %v890 = vpack.c.b16 %v538, %v534
    %v891 = vpack.c.b16 %v543, %v539
    %v892 = vpack.c.b16 %v544, %v540
    %v893 = vpack.c.b16 %v545, %v541
    %v894 = vpack.c.b16 %v546, %v542
    %v895 = vpack.c.b16 %v551, %v547
    %v896 = vpack.c.b16 %v552, %v548
    %v897 = vpack.c.b16 %v553, %v549
    %v898 = vpack.c.b16 %v554, %v550
    %v899 = vpack.c.b16 %v559, %v555
    %v900 = vpack.c.b16 %v560, %v556
    %v901 = vpack.c.b16 %v561, %v557
    %v902 = vpack.c.b16 %v562, %v558
    %v903 = vpack.c.b16 %v567, %v563
    %v904 = vpack.c.b16 %v568, %v564
    %v905 = vpack.c.b16 %v569, %v565
    %v906 = vpack.c.b16 %v570, %v566
    %v907 = vpack.c.b16 %v575, %v571
    %v908 = vpack.c.b16 %v576, %v572
    %v909 = vpack.c.b16 %v577, %v573
    %v910 = vpack.c.b16 %v578, %v574
    %v911 = vpack.c.b16 %v583, %v579
    %v912 = vpack.c.b16 %v584, %v580
    %v913 = vpack.c.b16 %v585, %v581
    %v914 = vpack.c.b16 %v586, %v582
    %v915 = vpack.c.b16 %v591, %v587
    %v916 = vpack.c.b16 %v592, %v588
    %v917 = vpack.c.b16 %v593, %v589
    %v918 = vpack.c.b16 %v594, %v590
    %v919 = vpack.c.b16 %v599, %v595
    %v920 = vpack.c.b16 %v600, %v596
    %v921 = vpack.c.b16 %v601, %v597
    %v922 = vpack.c.b16 %v602, %v598
    %v923 = vpack.c.b16 %v607, %v603
    %v924 = vpack.c.b16 %v608, %v604
    %v925 = vpack.c.b16 %v609, %v605
    %v926 = vpack.c.b16 %v610, %v606
    %v927 = vpack.c.b16 %v615, %v611
    %v928 = vpack.c.b16 %v616, %v612
    %v929 = vpack.c.b16 %v617, %v613
    %v930 = vpack.c.b16 %v618, %v614
    %v931 = vpack.c.b16 %v623, %v619
    %v932 = vpack.c.b16 %v624, %v620
    %v933 = vpack.c.b16 %v625, %v621
    %v934 = vpack.c.b16 %v626, %v622
    %v935 = vpack.c.b16 %v631, %v627
    %v936 = vpack.c.b16 %v632, %v628
    %v937 = vpack.c.b16 %v633, %v629
    %v938 = vpack.c.b16 %v634, %v630
    %v939 = vpack.c.b16 %v639, %v635
    %v940 = vpack.c.b16 %v640, %v636
    %v941 = vpack.c.b16 %v641, %v637
    %v942 = vpack.c.b16 %v642, %v638
    %v943 = vpack.c.b16 %v647, %v643
    %v944 = vpack.c.b16 %v648, %v644
    %v945 = vpack.c.b16 %v649, %v645
    %v946 = vpack.c.b16 %v650, %v646
    %v947 = vpack.c.b16 %v655, %v651
    %v948 = vpack.c.b16 %v656, %v652
    %v949 = vpack.c.b16 %v657, %v653
    %v950 = vpack.c.b16 %v658, %v654
    %v951 = vpack.c.b16 %v663, %v659
    %v952 = vpack.c.b16 %v664, %v660
    %v953 = vpack.c.b16 %v665, %v661
    %v954 = vpack.c.b16 %v666, %v662
    %v955 = vpack.c.b16 %v671, %v667
    %v956 = vpack.c.b16 %v672, %v668
    %v957 = vpack.c.b16 %v673, %v669
    %v958 = vpack.c.b16 %v674, %v670
    %v959 = vpack.c.b16 %v679, %v675
    %v960 = vpack.c.b16 %v680, %v676
    %v961 = vpack.c.b16 %v681, %v677
    %v962 = vpack.c.b16 %v682, %v678
    %v963 = vpack.c.b16 %v687, %v683
    %v964 = vpack.c.b16 %v688, %v684
    %v965 = vpack.c.b16 %v689, %v685
    %v966 = vpack.c.b16 %v690, %v686
    %v967 = vpack.c.b16 %v695, %v691
    %v968 = vpack.c.b16 %v696, %v692
    %v969 = vpack.c.b16 %v697, %v693
    %v970 = vpack.c.b16 %v698, %v694
    %v971 = vpack.c.b16 %v703, %v699
    %v972 = vpack.c.b16 %v704, %v700
    %v973 = vpack.c.b16 %v705, %v701
    %v974 = vpack.c.b16 %v706, %v702
    %v975 = vpack.c.b16 %v711, %v707
    %v976 = vpack.c.b16 %v712, %v708
    %v977 = vpack.c.b16 %v713, %v709
    %v978 = vpack.c.b16 %v714, %v710
    %v979 = vpack.c.b16 %v719, %v715
    %v980 = vpack.c.b16 %v720, %v716
    %v981 = vpack.c.b16 %v721, %v717
    %v982 = vpack.c.b16 %v722, %v718
    %v983 = vpack.c.b16 %v727, %v723
    %v984 = vpack.c.b16 %v728, %v724
    %v985 = vpack.c.b16 %v729, %v725
    %v986 = vpack.c.b16 %v730, %v726
    %v987 = vpack.c.b16 %v735, %v731
    %v988 = vpack.c.b16 %v736, %v732
    %v989 = vpack.c.b16 %v737, %v733
    %v990 = vpack.c.b16 %v738, %v734
    %v991 = vpack.c.b16 %v743, %v739
    %v992 = vpack.c.b16 %v744, %v740
    %v993 = vpack.c.b16 %v745, %v741
    %v994 = vpack.c.b16 %v746, %v742
    %v995 = vpack.c.b16 %v751, %v747
    %v996 = vpack.c.b16 %v752, %v748
    %v997 = vpack.c.b16 %v753, %v749
    %v998 = vpack.c.b16 %v754, %v750
    %v999 = vpack.c.b16 %v759, %v755
    %v1000 = vpack.c.b16 %v760, %v756
    %v1001 = vpack.c.b16 %v761, %v757
    %v1002 = vpack.c.b16 %v762, %v758
    %v1003 = vpack.c.b16 %v767, %v763
    %v1004 = vpack.c.b16 %v768, %v764
    %v1005 = vpack.c.b16 %v769, %v765
    %v1006 = vpack.c.b16 %v770, %v766
    %v1007 = vpack.c.b16 %v775, %v771
    %v1008 = vpack.c.b16 %v776, %v772
    %v1009 = vpack.c.b16 %v777, %v773
    %v1010 = vpack.c.b16 %v778, %v774
    %v1011 = vpack.c.b16 %v783, %v779
    %v1012 = vpack.c.b16 %v784, %v780
    %v1013 = vpack.c.b16 %v785, %v781
    %v1014 = vpack.c.b16 %v786, %v782
    %v1015 = vpack.c.b16 %v791, %v787
    %v1016 = vpack.c.b16 %v792, %v788
    %v1017 = vpack.c.b16 %v793, %v789
    %v1018 = vpack.c.b16 %v794, %v790
    %v1019 = vpack.c.b16 %v799, %v795
    %v1020 = vpack.c.b16 %v800, %v796
    %v1021 = vpack.c.b16 %v801, %v797
    %v1022 = vpack.c.b16 %v802, %v798
    %v1023 = vpack.c.b16 %v807, %v803
    %v1024 = vpack.c.b16 %v808, %v804
    %v1025 = vpack.c.b16 %v809, %v805
    %v1026 = vpack.c.b16 %v810, %v806
    %v1027 = vpack.c.b16 %v815, %v811
    %v1028 = vpack.c.b16 %v816, %v812
    %v1029 = vpack.c.b16 %v817, %v813
    %v1030 = vpack.c.b16 %v818, %v814
    %v1031 = vpack.c.b16 %v823, %v819
    %v1032 = vpack.c.b16 %v824, %v820
    %v1033 = vpack.c.b16 %v825, %v821
    %v1034 = vpack.c.b16 %v826, %v822
    %v1035 = vpack.c.b16 %v831, %v827
    %v1036 = vpack.c.b16 %v832, %v828
    %v1037 = vpack.c.b16 %v833, %v829
    %v1038 = vpack.c.b16 %v834, %v830
    %v1039 = vpack.c.b16 %v839, %v835
    %v1040 = vpack.c.b16 %v840, %v836
    %v1041 = vpack.c.b16 %v841, %v837
    %v1042 = vpack.c.b16 %v842, %v838
    %v1043 = vpack.c.b16 %v847, %v843
    %v1044 = vpack.c.b16 %v848, %v844
    %v1045 = vpack.c.b16 %v849, %v845
    %v1046 = vpack.c.b16 %v850, %v846
    %vm1243 = vcmask 130048
    %v1244 = vsel %vm1243, %v256, 0
    %1246 = vmatpush.bf16.msra.mxu0 %v879
    %1247 = vmatpush.bf16.msra.mxu0 %v875
    %1248 = vmatpush.bf16.msra.mxu0 %v871
    %1249 = vmatpush.bf16.msra.mxu0 %v867
    %1250 = vmatpush.bf16.msra.mxu0 %v863
    %1251 = vmatpush.bf16.msra.mxu0 %v859
    %1252 = vmatpush.bf16.msra.mxu0 %v855
    %1253 = vmatpush.bf16.msra.mxu0 %v851
    %1254 = vmatmul.bf16.gmra.mxu0 %v250
    %v1255 = vpop.f32.mrf.mxu0
    %v1256 = vadd.f32 %v237, %v1255
    %v1257 = vpop.f32.mrf.mxu0
    %1258 = vdwg.mxu0
    %1259 = vmatpush.bf16.msra.mxu0 %v911
    %1260 = vmatpush.bf16.msra.mxu0 %v907
    %1261 = vmatpush.bf16.msra.mxu0 %v903
    %1262 = vmatpush.bf16.msra.mxu0 %v899
    %1263 = vmatpush.bf16.msra.mxu0 %v895
    %1264 = vmatpush.bf16.msra.mxu0 %v891
    %1265 = vmatpush.bf16.msra.mxu0 %v887
    %1266 = vmatpush.bf16.msra.mxu0 %v883
    %1267 = vmatmul.bf16.gmra.mxu0 %v251
    %v1268 = vpop.f32.mrf.mxu0
    %v1269 = vadd.f32 %v1256, %v1268
    %v1270 = vpop.f32.mrf.mxu0
    %1271 = vdwg.mxu0
    %1272 = vmatpush.bf16.msra.mxu0 %v943
    %1273 = vmatpush.bf16.msra.mxu0 %v939
    %1274 = vmatpush.bf16.msra.mxu0 %v935
    %1275 = vmatpush.bf16.msra.mxu0 %v931
    %1276 = vmatpush.bf16.msra.mxu0 %v927
    %1277 = vmatpush.bf16.msra.mxu0 %v923
    %1278 = vmatpush.bf16.msra.mxu0 %v919
    %1279 = vmatpush.bf16.msra.mxu0 %v915
    %1280 = vmatmul.bf16.gmra.mxu0 %v252
    %v1281 = vpop.f32.mrf.mxu0
    %v1282 = vadd.f32 %v1269, %v1281
    %v1283 = vpop.f32.mrf.mxu0
    %1284 = vdwg.mxu0
    %1285 = vmatpush.bf16.msra.mxu0 %v975
    %1286 = vmatpush.bf16.msra.mxu0 %v971
    %1287 = vmatpush.bf16.msra.mxu0 %v967
    %1288 = vmatpush.bf16.msra.mxu0 %v963
    %1289 = vmatpush.bf16.msra.mxu0 %v959
    %1290 = vmatpush.bf16.msra.mxu0 %v955
    %1291 = vmatpush.bf16.msra.mxu0 %v951
    %1292 = vmatpush.bf16.msra.mxu0 %v947
    %1293 = vmatmul.bf16.gmra.mxu0 %v253
    %v1294 = vpop.f32.mrf.mxu0
    %v1295 = vadd.f32 %v1282, %v1294
    %v1296 = vpop.f32.mrf.mxu0
    %1297 = vdwg.mxu0
    %1298 = vmatpush.bf16.msra.mxu0 %v1007
    %1299 = vmatpush.bf16.msra.mxu0 %v1003
    %1300 = vmatpush.bf16.msra.mxu0 %v999
    %1301 = vmatpush.bf16.msra.mxu0 %v995
    %1302 = vmatpush.bf16.msra.mxu0 %v991
    %1303 = vmatpush.bf16.msra.mxu0 %v987
    %1304 = vmatpush.bf16.msra.mxu0 %v983
    %1305 = vmatpush.bf16.msra.mxu0 %v979
    %1306 = vmatmul.bf16.gmra.mxu0 %v254
    %v1307 = vpop.f32.mrf.mxu0
    %v1308 = vadd.f32 %v1295, %v1307
    %v1309 = vpop.f32.mrf.mxu0
    %1310 = vdwg.mxu0
    %1311 = vmatpush.bf16.msra.mxu0 %v1039
    %1312 = vmatpush.bf16.msra.mxu0 %v1035
    %1313 = vmatpush.bf16.msra.mxu0 %v1031
    %1314 = vmatpush.bf16.msra.mxu0 %v1027
    %1315 = vmatpush.bf16.msra.mxu0 %v1023
    %1316 = vmatpush.bf16.msra.mxu0 %v1019
    %1317 = vmatpush.bf16.msra.mxu0 %v1015
    %1318 = vmatpush.bf16.msra.mxu0 %v1011
    %1319 = vmatmul.bf16.gmra.mxu0 %v255
    %v1320 = vpop.f32.mrf.mxu0
    %v1321 = vadd.f32 %v1308, %v1320
    %v1322 = vpop.f32.mrf.mxu0
    %1323 = vdwg.mxu0
    %1324 = vmatpush.bf16.msra.mxu0 0
    %1325 = vmatpush.bf16.msra.mxu0 0
    %1326 = vmatpush.bf16.msra.mxu0 0
    %1327 = vmatpush.bf16.msra.mxu0 0
    %1328 = vmatpush.bf16.msra.mxu0 0
    %1329 = vmatpush.bf16.msra.mxu0 0
    %1330 = vmatpush.bf16.msra.mxu0 0
    %1331 = vmatpush.bf16.msra.mxu0 %v1043
    %1332 = vmatmul.bf16.gmra.mxu0 %v1244
    %v1333 = vpop.f32.mrf.mxu0
    %v1334 = vadd.f32 %v1321, %v1333
    %v1335 = vpop.f32.mrf.mxu0
    %1336 = vdwg.mxu0
    %1337 = vmatpush.bf16.msra.mxu0 %v880
    %1338 = vmatpush.bf16.msra.mxu0 %v876
    %1339 = vmatpush.bf16.msra.mxu0 %v872
    %1340 = vmatpush.bf16.msra.mxu0 %v868
    %1341 = vmatpush.bf16.msra.mxu0 %v864
    %1342 = vmatpush.bf16.msra.mxu0 %v860
    %1343 = vmatpush.bf16.msra.mxu0 %v856
    %1344 = vmatpush.bf16.msra.mxu0 %v852
    %1345 = vmatmul.bf16.gmra.mxu0 %v250
    %v1346 = vpop.f32.mrf.mxu0
    %v1347 = vadd.f32 %v238, %v1346
    %v1348 = vpop.f32.mrf.mxu0
    %1349 = vdwg.mxu0
    %1350 = vmatpush.bf16.msra.mxu0 %v912
    %1351 = vmatpush.bf16.msra.mxu0 %v908
    %1352 = vmatpush.bf16.msra.mxu0 %v904
    %1353 = vmatpush.bf16.msra.mxu0 %v900
    %1354 = vmatpush.bf16.msra.mxu0 %v896
    %1355 = vmatpush.bf16.msra.mxu0 %v892
    %1356 = vmatpush.bf16.msra.mxu0 %v888
    %1357 = vmatpush.bf16.msra.mxu0 %v884
    %1358 = vmatmul.bf16.gmra.mxu0 %v251
    %v1359 = vpop.f32.mrf.mxu0
    %v1360 = vadd.f32 %v1347, %v1359
    %v1361 = vpop.f32.mrf.mxu0
    %1362 = vdwg.mxu0
    %1363 = vmatpush.bf16.msra.mxu0 %v944
    %1364 = vmatpush.bf16.msra.mxu0 %v940
    %1365 = vmatpush.bf16.msra.mxu0 %v936
    %1366 = vmatpush.bf16.msra.mxu0 %v932
    %1367 = vmatpush.bf16.msra.mxu0 %v928
    %1368 = vmatpush.bf16.msra.mxu0 %v924
    %1369 = vmatpush.bf16.msra.mxu0 %v920
    %1370 = vmatpush.bf16.msra.mxu0 %v916
    %1371 = vmatmul.bf16.gmra.mxu0 %v252
    %v1372 = vpop.f32.mrf.mxu0
    %v1373 = vadd.f32 %v1360, %v1372
    %v1374 = vpop.f32.mrf.mxu0
    %1375 = vdwg.mxu0
    %1376 = vmatpush.bf16.msra.mxu0 %v976
    %1377 = vmatpush.bf16.msra.mxu0 %v972
    %1378 = vmatpush.bf16.msra.mxu0 %v968
    %1379 = vmatpush.bf16.msra.mxu0 %v964
    %1380 = vmatpush.bf16.msra.mxu0 %v960
    %1381 = vmatpush.bf16.msra.mxu0 %v956
    %1382 = vmatpush.bf16.msra.mxu0 %v952
    %1383 = vmatpush.bf16.msra.mxu0 %v948
    %1384 = vmatmul.bf16.gmra.mxu0 %v253
    %v1385 = vpop.f32.mrf.mxu0
    %v1386 = vadd.f32 %v1373, %v1385
    %v1387 = vpop.f32.mrf.mxu0
    %1388 = vdwg.mxu0
    %1389 = vmatpush.bf16.msra.mxu0 %v1008
    %1390 = vmatpush.bf16.msra.mxu0 %v1004
    %1391 = vmatpush.bf16.msra.mxu0 %v1000
    %1392 = vmatpush.bf16.msra.mxu0 %v996
    %1393 = vmatpush.bf16.msra.mxu0 %v992
    %1394 = vmatpush.bf16.msra.mxu0 %v988
    %1395 = vmatpush.bf16.msra.mxu0 %v984
    %1396 = vmatpush.bf16.msra.mxu0 %v980
    %1397 = vmatmul.bf16.gmra.mxu0 %v254
    %v1398 = vpop.f32.mrf.mxu0
    %v1399 = vadd.f32 %v1386, %v1398
    %v1400 = vpop.f32.mrf.mxu0
    %1401 = vdwg.mxu0
    %1402 = vmatpush.bf16.msra.mxu0 %v1040
    %1403 = vmatpush.bf16.msra.mxu0 %v1036
    %1404 = vmatpush.bf16.msra.mxu0 %v1032
    %1405 = vmatpush.bf16.msra.mxu0 %v1028
    %1406 = vmatpush.bf16.msra.mxu0 %v1024
    %1407 = vmatpush.bf16.msra.mxu0 %v1020
    %1408 = vmatpush.bf16.msra.mxu0 %v1016
    %1409 = vmatpush.bf16.msra.mxu0 %v1012
    %1410 = vmatmul.bf16.gmra.mxu0 %v255
    %v1411 = vpop.f32.mrf.mxu0
    %v1412 = vadd.f32 %v1399, %v1411
    %v1413 = vpop.f32.mrf.mxu0
    %1414 = vdwg.mxu0
    %1415 = vmatpush.bf16.msra.mxu0 0
    %1416 = vmatpush.bf16.msra.mxu0 0
    %1417 = vmatpush.bf16.msra.mxu0 0
    %1418 = vmatpush.bf16.msra.mxu0 0
    %1419 = vmatpush.bf16.msra.mxu0 0
    %1420 = vmatpush.bf16.msra.mxu0 0
    %1421 = vmatpush.bf16.msra.mxu0 0
    %1422 = vmatpush.bf16.msra.mxu0 %v1044
    %1423 = vmatmul.bf16.gmra.mxu0 %v1244
    %v1424 = vpop.f32.mrf.mxu0
    %v1425 = vadd.f32 %v1412, %v1424
    %v1426 = vpop.f32.mrf.mxu0
    %1427 = vdwg.mxu0
    %1428 = vmatpush.bf16.msra.mxu0 %v881
    %1429 = vmatpush.bf16.msra.mxu0 %v877
    %1430 = vmatpush.bf16.msra.mxu0 %v873
    %1431 = vmatpush.bf16.msra.mxu0 %v869
    %1432 = vmatpush.bf16.msra.mxu0 %v865
    %1433 = vmatpush.bf16.msra.mxu0 %v861
    %1434 = vmatpush.bf16.msra.mxu0 %v857
    %1435 = vmatpush.bf16.msra.mxu0 %v853
    %1436 = vmatmul.bf16.gmra.mxu0 %v250
    %v1437 = vpop.f32.mrf.mxu0
    %v1438 = vadd.f32 %v239, %v1437
    %v1439 = vpop.f32.mrf.mxu0
    %1440 = vdwg.mxu0
    %1441 = vmatpush.bf16.msra.mxu0 %v913
    %1442 = vmatpush.bf16.msra.mxu0 %v909
    %1443 = vmatpush.bf16.msra.mxu0 %v905
    %1444 = vmatpush.bf16.msra.mxu0 %v901
    %1445 = vmatpush.bf16.msra.mxu0 %v897
    %1446 = vmatpush.bf16.msra.mxu0 %v893
    %1447 = vmatpush.bf16.msra.mxu0 %v889
    %1448 = vmatpush.bf16.msra.mxu0 %v885
    %1449 = vmatmul.bf16.gmra.mxu0 %v251
    %v1450 = vpop.f32.mrf.mxu0
    %v1451 = vadd.f32 %v1438, %v1450
    %v1452 = vpop.f32.mrf.mxu0
    %1453 = vdwg.mxu0
    %1454 = vmatpush.bf16.msra.mxu0 %v945
    %1455 = vmatpush.bf16.msra.mxu0 %v941
    %1456 = vmatpush.bf16.msra.mxu0 %v937
    %1457 = vmatpush.bf16.msra.mxu0 %v933
    %1458 = vmatpush.bf16.msra.mxu0 %v929
    %1459 = vmatpush.bf16.msra.mxu0 %v925
    %1460 = vmatpush.bf16.msra.mxu0 %v921
    %1461 = vmatpush.bf16.msra.mxu0 %v917
    %1462 = vmatmul.bf16.gmra.mxu0 %v252
    %v1463 = vpop.f32.mrf.mxu0
    %v1464 = vadd.f32 %v1451, %v1463
    %v1465 = vpop.f32.mrf.mxu0
    %1466 = vdwg.mxu0
    %1467 = vmatpush.bf16.msra.mxu0 %v977
    %1468 = vmatpush.bf16.msra.mxu0 %v973
    %1469 = vmatpush.bf16.msra.mxu0 %v969
    %1470 = vmatpush.bf16.msra.mxu0 %v965
    %1471 = vmatpush.bf16.msra.mxu0 %v961
    %1472 = vmatpush.bf16.msra.mxu0 %v957
    %1473 = vmatpush.bf16.msra.mxu0 %v953
    %1474 = vmatpush.bf16.msra.mxu0 %v949
    %1475 = vmatmul.bf16.gmra.mxu0 %v253
    %v1476 = vpop.f32.mrf.mxu0
    %v1477 = vadd.f32 %v1464, %v1476
    %v1478 = vpop.f32.mrf.mxu0
    %1479 = vdwg.mxu0
    %1480 = vmatpush.bf16.msra.mxu0 %v1009
    %1481 = vmatpush.bf16.msra.mxu0 %v1005
    %1482 = vmatpush.bf16.msra.mxu0 %v1001
    %1483 = vmatpush.bf16.msra.mxu0 %v997
    %1484 = vmatpush.bf16.msra.mxu0 %v993
    %1485 = vmatpush.bf16.msra.mxu0 %v989
    %1486 = vmatpush.bf16.msra.mxu0 %v985
    %1487 = vmatpush.bf16.msra.mxu0 %v981
    %1488 = vmatmul.bf16.gmra.mxu0 %v254
    %v1489 = vpop.f32.mrf.mxu0
    %v1490 = vadd.f32 %v1477, %v1489
    %v1491 = vpop.f32.mrf.mxu0
    %1492 = vdwg.mxu0
    %1493 = vmatpush.bf16.msra.mxu0 %v1041
    %1494 = vmatpush.bf16.msra.mxu0 %v1037
    %1495 = vmatpush.bf16.msra.mxu0 %v1033
    %1496 = vmatpush.bf16.msra.mxu0 %v1029
    %1497 = vmatpush.bf16.msra.mxu0 %v1025
    %1498 = vmatpush.bf16.msra.mxu0 %v1021
    %1499 = vmatpush.bf16.msra.mxu0 %v1017
    %1500 = vmatpush.bf16.msra.mxu0 %v1013
    %1501 = vmatmul.bf16.gmra.mxu0 %v255
    %v1502 = vpop.f32.mrf.mxu0
    %v1503 = vadd.f32 %v1490, %v1502
    %v1504 = vpop.f32.mrf.mxu0
    %1505 = vdwg.mxu0
    %1506 = vmatpush.bf16.msra.mxu0 0
    %1507 = vmatpush.bf16.msra.mxu0 0
    %1508 = vmatpush.bf16.msra.mxu0 0
    %1509 = vmatpush.bf16.msra.mxu0 0
    %1510 = vmatpush.bf16.msra.mxu0 0
    %1511 = vmatpush.bf16.msra.mxu0 0
    %1512 = vmatpush.bf16.msra.mxu0 0
    %1513 = vmatpush.bf16.msra.mxu0 %v1045
    %1514 = vmatmul.bf16.gmra.mxu0 %v1244
    %v1515 = vpop.f32.mrf.mxu0
    %v1516 = vadd.f32 %v1503, %v1515
    %v1517 = vpop.f32.mrf.mxu0
    %1518 = vdwg.mxu0
    %1519 = vmatpush.bf16.msra.mxu0 %v882
    %1520 = vmatpush.bf16.msra.mxu0 %v878
    %1521 = vmatpush.bf16.msra.mxu0 %v874
    %1522 = vmatpush.bf16.msra.mxu0 %v870
    %1523 = vmatpush.bf16.msra.mxu0 %v866
    %1524 = vmatpush.bf16.msra.mxu0 %v862
    %1525 = vmatpush.bf16.msra.mxu0 %v858
    %1526 = vmatpush.bf16.msra.mxu0 %v854
    %1527 = vmatmul.bf16.gmra.mxu0 %v250
    %v1528 = vpop.f32.mrf.mxu0
    %v1529 = vadd.f32 %v240, %v1528
    %v1530 = vpop.f32.mrf.mxu0
    %1531 = vdwg.mxu0
    %1532 = vmatpush.bf16.msra.mxu0 %v914
    %1533 = vmatpush.bf16.msra.mxu0 %v910
    %1534 = vmatpush.bf16.msra.mxu0 %v906
    %1535 = vmatpush.bf16.msra.mxu0 %v902
    %1536 = vmatpush.bf16.msra.mxu0 %v898
    %1537 = vmatpush.bf16.msra.mxu0 %v894
    %1538 = vmatpush.bf16.msra.mxu0 %v890
    %1539 = vmatpush.bf16.msra.mxu0 %v886
    %1540 = vmatmul.bf16.gmra.mxu0 %v251
    %v1541 = vpop.f32.mrf.mxu0
    %v1542 = vadd.f32 %v1529, %v1541
    %v1543 = vpop.f32.mrf.mxu0
    %1544 = vdwg.mxu0
    %1545 = vmatpush.bf16.msra.mxu0 %v946
    %1546 = vmatpush.bf16.msra.mxu0 %v942
    %1547 = vmatpush.bf16.msra.mxu0 %v938
    %1548 = vmatpush.bf16.msra.mxu0 %v934
    %1549 = vmatpush.bf16.msra.mxu0 %v930
    %1550 = vmatpush.bf16.msra.mxu0 %v926
    %1551 = vmatpush.bf16.msra.mxu0 %v922
    %1552 = vmatpush.bf16.msra.mxu0 %v918
    %1553 = vmatmul.bf16.gmra.mxu0 %v252
    %v1554 = vpop.f32.mrf.mxu0
    %v1555 = vadd.f32 %v1542, %v1554
    %v1556 = vpop.f32.mrf.mxu0
    %1557 = vdwg.mxu0
    %1558 = vmatpush.bf16.msra.mxu0 %v978
    %1559 = vmatpush.bf16.msra.mxu0 %v974
    %1560 = vmatpush.bf16.msra.mxu0 %v970
    %1561 = vmatpush.bf16.msra.mxu0 %v966
    %1562 = vmatpush.bf16.msra.mxu0 %v962
    %1563 = vmatpush.bf16.msra.mxu0 %v958
    %1564 = vmatpush.bf16.msra.mxu0 %v954
    %1565 = vmatpush.bf16.msra.mxu0 %v950
    %1566 = vmatmul.bf16.gmra.mxu0 %v253
    %v1567 = vpop.f32.mrf.mxu0
    %v1568 = vadd.f32 %v1555, %v1567
    %v1569 = vpop.f32.mrf.mxu0
    %1570 = vdwg.mxu0
    %1571 = vmatpush.bf16.msra.mxu0 %v1010
    %1572 = vmatpush.bf16.msra.mxu0 %v1006
    %1573 = vmatpush.bf16.msra.mxu0 %v1002
    %1574 = vmatpush.bf16.msra.mxu0 %v998
    %1575 = vmatpush.bf16.msra.mxu0 %v994
    %1576 = vmatpush.bf16.msra.mxu0 %v990
    %1577 = vmatpush.bf16.msra.mxu0 %v986
    %1578 = vmatpush.bf16.msra.mxu0 %v982
    %1579 = vmatmul.bf16.gmra.mxu0 %v254
    %v1580 = vpop.f32.mrf.mxu0
    %v1581 = vadd.f32 %v1568, %v1580
    %v1582 = vpop.f32.mrf.mxu0
    %1583 = vdwg.mxu0
    %1584 = vmatpush.bf16.msra.mxu0 %v1042
    %1585 = vmatpush.bf16.msra.mxu0 %v1038
    %1586 = vmatpush.bf16.msra.mxu0 %v1034
    %1587 = vmatpush.bf16.msra.mxu0 %v1030
    %1588 = vmatpush.bf16.msra.mxu0 %v1026
    %1589 = vmatpush.bf16.msra.mxu0 %v1022
    %1590 = vmatpush.bf16.msra.mxu0 %v1018
    %1591 = vmatpush.bf16.msra.mxu0 %v1014
    %1592 = vmatmul.bf16.gmra.mxu0 %v255
    %v1593 = vpop.f32.mrf.mxu0
    %v1594 = vadd.f32 %v1581, %v1593
    %v1595 = vpop.f32.mrf.mxu0
    %1596 = vdwg.mxu0
    %1597 = vmatpush.bf16.msra.mxu0 0
    %1598 = vmatpush.bf16.msra.mxu0 0
    %1599 = vmatpush.bf16.msra.mxu0 0
    %1600 = vmatpush.bf16.msra.mxu0 0
    %1601 = vmatpush.bf16.msra.mxu0 0
    %1602 = vmatpush.bf16.msra.mxu0 0
    %1603 = vmatpush.bf16.msra.mxu0 0
    %1604 = vmatpush.bf16.msra.mxu0 %v1046
    %1605 = vmatmul.bf16.gmra.mxu0 %v1244
    %v1606 = vpop.f32.mrf.mxu0
    %v1607 = vadd.f32 %v1594, %v1606
    %v1608 = vpop.f32.mrf.mxu0
    %1609 = vdwg.mxu0
    %v1610 = vmax.f32 %v1334, 0.0
    %v1611 = vmax.f32 %v1425, 0.0
    %v1612 = vmax.f32 %v1516, 0.0
    %v1613 = vmax.f32 %v1607, 0.0
    %v1614 = vpack.c.bf16 %v1610, %v1610
    %v1615 = vpack.c.bf16 %v1611, %v1611
    %v1616 = vpack.c.bf16 %v1612, %v1612
    %v1617 = vpack.c.bf16 %v1613, %v1613
    %v1618 = vld [vmem:[%s3] sm:$0xff]
    %v1619 = vld [vmem:[%s3 + $0x8] sm:$0xff]
    %v1620 = vld [vmem:[%s3 + $0x10] sm:$0xff]
    %v1621 = vld [vmem:[%s3 + $0x18] sm:$0xff]
    %v1622 = vld [vmem:[%s3 + $0x20] sm:$0xff]
    %v1623 = vld [vmem:[%s3 + $0x28] sm:$0xff]
    %v1624 = vld [vmem:[%s3 + $0x30] sm:$0xff]
    %v1625 = vld [vmem:[%s3 + $0x38] sm:$0xff]
    %v1626 = vld [vmem:[%s3 + $0x40] sm:$0xff]
    %v1627 = vld [vmem:[%s3 + $0x48] sm:$0xff]
    %v1628 = vld [vmem:[%s3 + $0x50] sm:$0xff]
    %v1629 = vld [vmem:[%s3 + $0x58] sm:$0xff]
    %v1630 = vld [vmem:[%s3 + $0x60] sm:$0xff]
    %v1631 = vld [vmem:[%s3 + $0x68] sm:$0xff]
    %v1632 = vld [vmem:[%s3 + $0x70] sm:$0xff]
    %v1633 = vld [vmem:[%s3 + $0x78] sm:$0xff]
    %v1634 = vld [vmem:[%s3 + $0x80] sm:$0xff]
    %v1635 = vld [vmem:[%s3 + $0x88] sm:$0xff]
    %v1636 = vld [vmem:[%s3 + $0x90] sm:$0xff]
    %v1637 = vld [vmem:[%s3 + $0x98] sm:$0xff]
    %v1638 = vld [vmem:[%s3 + $0xa0] sm:$0xff]
    %v1639 = vld [vmem:[%s3 + $0xa8] sm:$0xff]
    %v1640 = vld [vmem:[%s3 + $0xb0] sm:$0xff]
    %v1641 = vld [vmem:[%s3 + $0xb8] sm:$0xff]
    %v1642 = vld [vmem:[%s3 + $0xc0] sm:$0xff]
    %v1643 = vld [vmem:[%s3 + $0xc8] sm:$0xff]
    %v1644 = vld [vmem:[%s3 + $0xd0] sm:$0xff]
    %v1645 = vld [vmem:[%s3 + $0xd8] sm:$0xff]
    %v1646 = vld [vmem:[%s3 + $0xe0] sm:$0xff]
    %v1647 = vld [vmem:[%s3 + $0xe8] sm:$0xff]
    %v1648 = vld [vmem:[%s3 + $0xf0] sm:$0xff]
    %v1649 = vld [vmem:[%s3 + $0xf8] sm:$0xff]
    %v1650 = vld [vmem:[%s3 + $0x100] sm:$0xff]
    %v1651 = vld [vmem:[%s3 + $0x108] sm:$0xff]
    %v1652 = vld [vmem:[%s3 + $0x110] sm:$0xff]
    %v1653 = vld [vmem:[%s3 + $0x118] sm:$0xff]
    %v1654 = vld [vmem:[%s3 + $0x120] sm:$0xff]
    %v1655 = vld [vmem:[%s3 + $0x128] sm:$0xff]
    %v1656 = vld [vmem:[%s3 + $0x130] sm:$0xff]
    %v1657 = vld [vmem:[%s3 + $0x138] sm:$0xff]
    %v1658 = vld [vmem:[%s3 + $0x140] sm:$0xff]
    %v1659 = vld [vmem:[%s3 + $0x148] sm:$0xff]
    %v1660 = vld [vmem:[%s3 + $0x150] sm:$0xff]
    %v1661 = vld [vmem:[%s3 + $0x158] sm:$0xff]
    %v1662 = vld [vmem:[%s3 + $0x160] sm:$0xff]
    %v1663 = vld [vmem:[%s3 + $0x168] sm:$0xff]
    %v1664 = vld [vmem:[%s3 + $0x170] sm:$0xff]
    %v1665 = vld [vmem:[%s3 + $0x178] sm:$0xff]
    %v1666 = vld [vmem:[%s3 + $0x180] sm:$0xff]
    %v1667 = vld [vmem:[%s3 + $0x188] sm:$0xff]
    %v1668 = vld [vmem:[%s4] sm:$0x3]
    %v1670 = vperm.slane %v1668, 0
    %v1671 = vperm.slane %v1668, 1
    %v1724 = vunpack.c.l.b16 %v1618
    %v1725 = vunpack.c.h.b16 %v1618
    %v1726 = vunpack.c.l.b16 %v1619
    %v1727 = vunpack.c.h.b16 %v1619
    %v1728 = vunpack.c.l.b16 %v1620
    %v1729 = vunpack.c.h.b16 %v1620
    %v1730 = vunpack.c.l.b16 %v1621
    %v1731 = vunpack.c.h.b16 %v1621
    %v1732 = vunpack.c.l.b16 %v1622
    %v1733 = vunpack.c.h.b16 %v1622
    %v1734 = vunpack.c.l.b16 %v1623
    %v1735 = vunpack.c.h.b16 %v1623
    %v1736 = vunpack.c.l.b16 %v1624
    %v1737 = vunpack.c.h.b16 %v1624
    %v1738 = vunpack.c.l.b16 %v1625
    %v1739 = vunpack.c.h.b16 %v1625
    %v1740 = vunpack.c.l.b16 %v1626
    %v1741 = vunpack.c.h.b16 %v1626
    %v1742 = vunpack.c.l.b16 %v1627
    %v1743 = vunpack.c.h.b16 %v1627
    %v1744 = vunpack.c.l.b16 %v1628
    %v1745 = vunpack.c.h.b16 %v1628
    %v1746 = vunpack.c.l.b16 %v1629
    %v1747 = vunpack.c.h.b16 %v1629
    %v1748 = vunpack.c.l.b16 %v1630
    %v1749 = vunpack.c.h.b16 %v1630
    %v1750 = vunpack.c.l.b16 %v1631
    %v1751 = vunpack.c.h.b16 %v1631
    %v1752 = vunpack.c.l.b16 %v1632
    %v1753 = vunpack.c.h.b16 %v1632
    %v1754 = vunpack.c.l.b16 %v1633
    %v1755 = vunpack.c.h.b16 %v1633
    %v1756 = vunpack.c.l.b16 %v1634
    %v1757 = vunpack.c.h.b16 %v1634
    %v1758 = vunpack.c.l.b16 %v1635
    %v1759 = vunpack.c.h.b16 %v1635
    %v1760 = vunpack.c.l.b16 %v1636
    %v1761 = vunpack.c.h.b16 %v1636
    %v1762 = vunpack.c.l.b16 %v1637
    %v1763 = vunpack.c.h.b16 %v1637
    %v1764 = vunpack.c.l.b16 %v1638
    %v1765 = vunpack.c.h.b16 %v1638
    %v1766 = vunpack.c.l.b16 %v1639
    %v1767 = vunpack.c.h.b16 %v1639
    %v1768 = vunpack.c.l.b16 %v1640
    %v1769 = vunpack.c.h.b16 %v1640
    %v1770 = vunpack.c.l.b16 %v1641
    %v1771 = vunpack.c.h.b16 %v1641
    %v1772 = vunpack.c.l.b16 %v1642
    %v1773 = vunpack.c.h.b16 %v1642
    %v1774 = vunpack.c.l.b16 %v1643
    %v1775 = vunpack.c.h.b16 %v1643
    %v1776 = vunpack.c.l.b16 %v1644
    %v1777 = vunpack.c.h.b16 %v1644
    %v1778 = vunpack.c.l.b16 %v1645
    %v1779 = vunpack.c.h.b16 %v1645
    %v1780 = vunpack.c.l.b16 %v1646
    %v1781 = vunpack.c.h.b16 %v1646
    %v1782 = vunpack.c.l.b16 %v1647
    %v1783 = vunpack.c.h.b16 %v1647
    %v1784 = vunpack.c.l.b16 %v1648
    %v1785 = vunpack.c.h.b16 %v1648
    %v1786 = vunpack.c.l.b16 %v1649
    %v1787 = vunpack.c.h.b16 %v1649
    %v1788 = vunpack.c.l.b16 %v1650
    %v1789 = vunpack.c.h.b16 %v1650
    %v1790 = vunpack.c.l.b16 %v1651
    %v1791 = vunpack.c.h.b16 %v1651
    %v1792 = vunpack.c.l.b16 %v1652
    %v1793 = vunpack.c.h.b16 %v1652
    %v1794 = vunpack.c.l.b16 %v1653
    %v1795 = vunpack.c.h.b16 %v1653
    %v1796 = vunpack.c.l.b16 %v1654
    %v1797 = vunpack.c.h.b16 %v1654
    %v1798 = vunpack.c.l.b16 %v1655
    %v1799 = vunpack.c.h.b16 %v1655
    %v1800 = vunpack.c.l.b16 %v1656
    %v1801 = vunpack.c.h.b16 %v1656
    %v1802 = vunpack.c.l.b16 %v1657
    %v1803 = vunpack.c.h.b16 %v1657
    %v1804 = vunpack.c.l.b16 %v1658
    %v1805 = vunpack.c.h.b16 %v1658
    %v1806 = vunpack.c.l.b16 %v1659
    %v1807 = vunpack.c.h.b16 %v1659
    %v1808 = vunpack.c.l.b16 %v1660
    %v1809 = vunpack.c.h.b16 %v1660
    %v1810 = vunpack.c.l.b16 %v1661
    %v1811 = vunpack.c.h.b16 %v1661
    %v1812 = vunpack.c.l.b16 %v1662
    %v1813 = vunpack.c.h.b16 %v1662
    %v1814 = vunpack.c.l.b16 %v1663
    %v1815 = vunpack.c.h.b16 %v1663
    %v1816 = vunpack.c.l.b16 %v1664
    %v1817 = vunpack.c.h.b16 %v1664
    %v1818 = vunpack.c.l.b16 %v1665
    %v1819 = vunpack.c.h.b16 %v1665
    %v1820 = vunpack.c.l.b16 %v1666
    %v1821 = vunpack.c.h.b16 %v1666
    %v1822 = vunpack.c.l.b16 %v1667
    %v1823 = vunpack.c.h.b16 %v1667
    %v1824 = vpack.c.b16 %v1726, %v1724
    %v1825 = vpack.c.b16 %v1727, %v1725
    %v1826 = vpack.c.b16 %v1730, %v1728
    %v1827 = vpack.c.b16 %v1731, %v1729
    %v1828 = vpack.c.b16 %v1734, %v1732
    %v1829 = vpack.c.b16 %v1735, %v1733
    %v1830 = vpack.c.b16 %v1738, %v1736
    %v1831 = vpack.c.b16 %v1739, %v1737
    %v1832 = vpack.c.b16 %v1742, %v1740
    %v1833 = vpack.c.b16 %v1743, %v1741
    %v1834 = vpack.c.b16 %v1746, %v1744
    %v1835 = vpack.c.b16 %v1747, %v1745
    %v1836 = vpack.c.b16 %v1750, %v1748
    %v1837 = vpack.c.b16 %v1751, %v1749
    %v1838 = vpack.c.b16 %v1754, %v1752
    %v1839 = vpack.c.b16 %v1755, %v1753
    %v1840 = vpack.c.b16 %v1758, %v1756
    %v1841 = vpack.c.b16 %v1759, %v1757
    %v1842 = vpack.c.b16 %v1762, %v1760
    %v1843 = vpack.c.b16 %v1763, %v1761
    %v1844 = vpack.c.b16 %v1766, %v1764
    %v1845 = vpack.c.b16 %v1767, %v1765
    %v1846 = vpack.c.b16 %v1770, %v1768
    %v1847 = vpack.c.b16 %v1771, %v1769
    %v1848 = vpack.c.b16 %v1774, %v1772
    %v1849 = vpack.c.b16 %v1775, %v1773
    %v1850 = vpack.c.b16 %v1778, %v1776
    %v1851 = vpack.c.b16 %v1779, %v1777
    %v1852 = vpack.c.b16 %v1782, %v1780
    %v1853 = vpack.c.b16 %v1783, %v1781
    %v1854 = vpack.c.b16 %v1786, %v1784
    %v1855 = vpack.c.b16 %v1787, %v1785
    %v1856 = vpack.c.b16 %v1790, %v1788
    %v1857 = vpack.c.b16 %v1791, %v1789
    %v1858 = vpack.c.b16 %v1794, %v1792
    %v1859 = vpack.c.b16 %v1795, %v1793
    %v1860 = vpack.c.b16 %v1798, %v1796
    %v1861 = vpack.c.b16 %v1799, %v1797
    %v1862 = vpack.c.b16 %v1802, %v1800
    %v1863 = vpack.c.b16 %v1803, %v1801
    %v1864 = vpack.c.b16 %v1806, %v1804
    %v1865 = vpack.c.b16 %v1807, %v1805
    %v1866 = vpack.c.b16 %v1810, %v1808
    %v1867 = vpack.c.b16 %v1811, %v1809
    %v1868 = vpack.c.b16 %v1814, %v1812
    %v1869 = vpack.c.b16 %v1815, %v1813
    %v1870 = vpack.c.b16 %v1818, %v1816
    %v1871 = vpack.c.b16 %v1819, %v1817
    %v1872 = vpack.c.b16 %v1822, %v1820
    %v1873 = vpack.c.b16 %v1823, %v1821
    %v1925 = vsel %vm1243, %v1617, 0
    %1927 = vmatpush.bf16.msra.mxu0 %v1838
    %1928 = vmatpush.bf16.msra.mxu0 %v1836
    %1929 = vmatpush.bf16.msra.mxu0 %v1834
    %1930 = vmatpush.bf16.msra.mxu0 %v1832
    %1931 = vmatpush.bf16.msra.mxu0 %v1830
    %1932 = vmatpush.bf16.msra.mxu0 %v1828
    %1933 = vmatpush.bf16.msra.mxu0 %v1826
    %1934 = vmatpush.bf16.msra.mxu0 %v1824
    %1935 = vmatmul.bf16.gmra.mxu0 %v1614
    %v1936 = vpop.f32.mrf.mxu0
    %v1937 = vadd.f32 %v1670, %v1936
    %v1938 = vpop.f32.mrf.mxu0
    %1939 = vdwg.mxu0
    %1940 = vmatpush.bf16.msra.mxu0 %v1854
    %1941 = vmatpush.bf16.msra.mxu0 %v1852
    %1942 = vmatpush.bf16.msra.mxu0 %v1850
    %1943 = vmatpush.bf16.msra.mxu0 %v1848
    %1944 = vmatpush.bf16.msra.mxu0 %v1846
    %1945 = vmatpush.bf16.msra.mxu0 %v1844
    %1946 = vmatpush.bf16.msra.mxu0 %v1842
    %1947 = vmatpush.bf16.msra.mxu0 %v1840
    %1948 = vmatmul.bf16.gmra.mxu0 %v1615
    %v1949 = vpop.f32.mrf.mxu0
    %v1950 = vadd.f32 %v1937, %v1949
    %v1951 = vpop.f32.mrf.mxu0
    %1952 = vdwg.mxu0
    %1953 = vmatpush.bf16.msra.mxu0 %v1870
    %1954 = vmatpush.bf16.msra.mxu0 %v1868
    %1955 = vmatpush.bf16.msra.mxu0 %v1866
    %1956 = vmatpush.bf16.msra.mxu0 %v1864
    %1957 = vmatpush.bf16.msra.mxu0 %v1862
    %1958 = vmatpush.bf16.msra.mxu0 %v1860
    %1959 = vmatpush.bf16.msra.mxu0 %v1858
    %1960 = vmatpush.bf16.msra.mxu0 %v1856
    %1961 = vmatmul.bf16.gmra.mxu0 %v1616
    %v1962 = vpop.f32.mrf.mxu0
    %v1963 = vadd.f32 %v1950, %v1962
    %v1964 = vpop.f32.mrf.mxu0
    %1965 = vdwg.mxu0
    %1966 = vmatpush.bf16.msra.mxu0 0
    %1967 = vmatpush.bf16.msra.mxu0 0
    %1968 = vmatpush.bf16.msra.mxu0 0
    %1969 = vmatpush.bf16.msra.mxu0 0
    %1970 = vmatpush.bf16.msra.mxu0 0
    %1971 = vmatpush.bf16.msra.mxu0 0
    %1972 = vmatpush.bf16.msra.mxu0 0
    %1973 = vmatpush.bf16.msra.mxu0 %v1872
    %1974 = vmatmul.bf16.gmra.mxu0 %v1925
    %v1975 = vpop.f32.mrf.mxu0
    %v1976 = vadd.f32 %v1963, %v1975
    %v1977 = vpop.f32.mrf.mxu0
    %1978 = vdwg.mxu0
    %1979 = vmatpush.bf16.msra.mxu0 %v1839
    %1980 = vmatpush.bf16.msra.mxu0 %v1837
    %1981 = vmatpush.bf16.msra.mxu0 %v1835
    %1982 = vmatpush.bf16.msra.mxu0 %v1833
    %1983 = vmatpush.bf16.msra.mxu0 %v1831
    %1984 = vmatpush.bf16.msra.mxu0 %v1829
    %1985 = vmatpush.bf16.msra.mxu0 %v1827
    %1986 = vmatpush.bf16.msra.mxu0 %v1825
    %1987 = vmatmul.bf16.gmra.mxu0 %v1614
    %v1988 = vpop.f32.mrf.mxu0
    %v1989 = vadd.f32 %v1671, %v1988
    %v1990 = vpop.f32.mrf.mxu0
    %1991 = vdwg.mxu0
    %1992 = vmatpush.bf16.msra.mxu0 %v1855
    %1993 = vmatpush.bf16.msra.mxu0 %v1853
    %1994 = vmatpush.bf16.msra.mxu0 %v1851
    %1995 = vmatpush.bf16.msra.mxu0 %v1849
    %1996 = vmatpush.bf16.msra.mxu0 %v1847
    %1997 = vmatpush.bf16.msra.mxu0 %v1845
    %1998 = vmatpush.bf16.msra.mxu0 %v1843
    %1999 = vmatpush.bf16.msra.mxu0 %v1841
    %2000 = vmatmul.bf16.gmra.mxu0 %v1615
    %v2001 = vpop.f32.mrf.mxu0
    %v2002 = vadd.f32 %v1989, %v2001
    %v2003 = vpop.f32.mrf.mxu0
    %2004 = vdwg.mxu0
    %2005 = vmatpush.bf16.msra.mxu0 %v1871
    %2006 = vmatpush.bf16.msra.mxu0 %v1869
    %2007 = vmatpush.bf16.msra.mxu0 %v1867
    %2008 = vmatpush.bf16.msra.mxu0 %v1865
    %2009 = vmatpush.bf16.msra.mxu0 %v1863
    %2010 = vmatpush.bf16.msra.mxu0 %v1861
    %2011 = vmatpush.bf16.msra.mxu0 %v1859
    %2012 = vmatpush.bf16.msra.mxu0 %v1857
    %2013 = vmatmul.bf16.gmra.mxu0 %v1616
    %v2014 = vpop.f32.mrf.mxu0
    %v2015 = vadd.f32 %v2002, %v2014
    %v2016 = vpop.f32.mrf.mxu0
    %2017 = vdwg.mxu0
    %2018 = vmatpush.bf16.msra.mxu0 0
    %2019 = vmatpush.bf16.msra.mxu0 0
    %2020 = vmatpush.bf16.msra.mxu0 0
    %2021 = vmatpush.bf16.msra.mxu0 0
    %2022 = vmatpush.bf16.msra.mxu0 0
    %2023 = vmatpush.bf16.msra.mxu0 0
    %2024 = vmatpush.bf16.msra.mxu0 0
    %2025 = vmatpush.bf16.msra.mxu0 %v1873
    %2026 = vmatmul.bf16.gmra.mxu0 %v1925
    %v2027 = vpop.f32.mrf.mxu0
    %v2028 = vadd.f32 %v2015, %v2027
    %v2029 = vpop.f32.mrf.mxu0
    %2030 = vdwg.mxu0
    %v2031 = vmul.f32 %v2028, 0.5
    %v2032 = vmul.f32 %v2031, 1.442695
    %v2033 = vpow.pop %v2032
    %v2034 = vld [vmem:[%s5] sm:$0xf]
    %v2035 = vmul.f32 %v2034, %v2033
    %v2036 = vadd.f32 %v1976, %v2035
    %v2037 = vpack.c.bf16 %v2036, %v2036
    %v2038 = vld [vmem:[%s6] sm:$0xff]
    %v2039 = vld [vmem:[%s6 + $0x8] sm:$0xff]
    %v2040 = vld [vmem:[%s6 + $0x10] sm:$0xff]
    %v2041 = vld [vmem:[%s6 + $0x18] sm:$0xff]
    %v2042 = vld [vmem:[%s6 + $0x20] sm:$0x33]
    %v2043 = vld [vmem:[%s6 + $0x28] sm:$0x33]
    %v2044 = vld [vmem:[%s7] sm:$0xf]
    %v2046 = vperm.slane %v2044, 0
    %v2047 = vperm.slane %v2044, 1
    %v2048 = vperm.slane %v2044, 2
    %v2049 = vperm.slane %v2044, 3
    %v2060 = vunpack.c.l.b16 %v2038
    %v2061 = vunpack.c.h.b16 %v2038
    %v2062 = vunpack.c.l.b16 %v2039
    %v2063 = vunpack.c.h.b16 %v2039
    %v2064 = vunpack.c.l.b16 %v2040
    %v2065 = vunpack.c.h.b16 %v2040
    %v2066 = vunpack.c.l.b16 %v2041
    %v2067 = vunpack.c.h.b16 %v2041
    %v2068 = vunpack.c.l.b16 %v2042
    %v2069 = vunpack.c.h.b16 %v2042
    %v2070 = vunpack.c.l.b16 %v2043
    %v2071 = vunpack.c.h.b16 %v2043
    %v2072 = vpack.c.b16 %v2064, %v2060
    %v2073 = vpack.c.b16 %v2065, %v2061
    %v2074 = vpack.c.b16 %v2066, %v2062
    %v2075 = vpack.c.b16 %v2067, %v2063
    %v2076 = vpack.c.b16 %v2068, %v2068
    %v2077 = vpack.c.b16 %v2069, %v2069
    %v2078 = vpack.c.b16 %v2070, %v2070
    %v2079 = vpack.c.b16 %v2071, %v2071
    %vm2084 = vcmask 162816
    %v2086 = vsel %vm2084, %v2037, 0
    %vm2088 = vcmask 1041408
    %v2090 = vsel %vm2088, %v2076, 0
    %v2093 = vsel %vm2088, %v2077, 0
    %v2096 = vsel %vm2088, %v2078, 0
    %v2099 = vsel %vm2088, %v2079, 0
    %2101 = vmatpush.bf16.msra.mxu0 0
    %2102 = vmatpush.bf16.msra.mxu0 0
    %2103 = vmatpush.bf16.msra.mxu0 0
    %2104 = vmatpush.bf16.msra.mxu0 0
    %2105 = vmatpush.bf16.msra.mxu0 0
    %2106 = vmatpush.bf16.msra.mxu0 0
    %2107 = vmatpush.bf16.msra.mxu0 %v2090
    %2108 = vmatpush.bf16.msra.mxu0 %v2072
    %2109 = vmatmul.bf16.gmra.mxu0 %v2086
    %v2110 = vpop.f32.mrf.mxu0
    %v2111 = vadd.f32 %v2046, %v2110
    %v2112 = vpop.f32.mrf.mxu0
    %2113 = vdwg.mxu0
    %2114 = vmatpush.bf16.msra.mxu0 0
    %2115 = vmatpush.bf16.msra.mxu0 0
    %2116 = vmatpush.bf16.msra.mxu0 0
    %2117 = vmatpush.bf16.msra.mxu0 0
    %2118 = vmatpush.bf16.msra.mxu0 0
    %2119 = vmatpush.bf16.msra.mxu0 0
    %2120 = vmatpush.bf16.msra.mxu0 %v2093
    %2121 = vmatpush.bf16.msra.mxu0 %v2073
    %2122 = vmatmul.bf16.gmra.mxu0 %v2086
    %v2123 = vpop.f32.mrf.mxu0
    %v2124 = vadd.f32 %v2047, %v2123
    %v2125 = vpop.f32.mrf.mxu0
    %2126 = vdwg.mxu0
    %2127 = vmatpush.bf16.msra.mxu0 0
    %2128 = vmatpush.bf16.msra.mxu0 0
    %2129 = vmatpush.bf16.msra.mxu0 0
    %2130 = vmatpush.bf16.msra.mxu0 0
    %2131 = vmatpush.bf16.msra.mxu0 0
    %2132 = vmatpush.bf16.msra.mxu0 0
    %2133 = vmatpush.bf16.msra.mxu0 %v2096
    %2134 = vmatpush.bf16.msra.mxu0 %v2074
    %2135 = vmatmul.bf16.gmra.mxu0 %v2086
    %v2136 = vpop.f32.mrf.mxu0
    %v2137 = vadd.f32 %v2048, %v2136
    %v2138 = vpop.f32.mrf.mxu0
    %2139 = vdwg.mxu0
    %2140 = vmatpush.bf16.msra.mxu0 0
    %2141 = vmatpush.bf16.msra.mxu0 0
    %2142 = vmatpush.bf16.msra.mxu0 0
    %2143 = vmatpush.bf16.msra.mxu0 0
    %2144 = vmatpush.bf16.msra.mxu0 0
    %2145 = vmatpush.bf16.msra.mxu0 0
    %2146 = vmatpush.bf16.msra.mxu0 %v2099
    %2147 = vmatpush.bf16.msra.mxu0 %v2075
    %2148 = vmatmul.bf16.gmra.mxu0 %v2086
    %v2149 = vpop.f32.mrf.mxu0
    %v2150 = vadd.f32 %v2049, %v2149
    %v2151 = vpop.f32.mrf.mxu0
    %2152 = vdwg.mxu0
    %v2153 = vmax.f32 %v2111, 0.0
    %v2154 = vmax.f32 %v2124, 0.0
    %v2155 = vmax.f32 %v2137, 0.0
    %v2156 = vmax.f32 %v2150, 0.0
    %v2157 = vpack.c.bf16 %v2153, %v2153
    %v2158 = vpack.c.bf16 %v2154, %v2154
    %v2159 = vpack.c.bf16 %v2155, %v2155
    %v2160 = vpack.c.bf16 %v2156, %v2156
    %v2161 = vld [vmem:[%s8] sm:$0xff]
    %v2162 = vld [vmem:[%s8 + $0x8] sm:$0xff]
    %v2163 = vld [vmem:[%s8 + $0x10] sm:$0xff]
    %v2164 = vld [vmem:[%s8 + $0x18] sm:$0xf]
    %v2165 = vld [vmem:[%s8 + $0x1c] sm:$0xff]
    %v2166 = vld [vmem:[%s8 + $0x24] sm:$0xff]
    %v2167 = vld [vmem:[%s8 + $0x2c] sm:$0xff]
    %v2168 = vld [vmem:[%s8 + $0x34] sm:$0xf]
    %v2169 = vld [vmem:[%s8 + $0x38] sm:$0xff]
    %v2170 = vld [vmem:[%s8 + $0x40] sm:$0xff]
    %v2171 = vld [vmem:[%s8 + $0x48] sm:$0xff]
    %v2172 = vld [vmem:[%s8 + $0x50] sm:$0xf]
    %v2173 = vld [vmem:[%s8 + $0x54] sm:$0xff]
    %v2174 = vld [vmem:[%s8 + $0x5c] sm:$0xff]
    %v2175 = vld [vmem:[%s8 + $0x64] sm:$0xff]
    %v2176 = vld [vmem:[%s8 + $0x6c] sm:$0xf]
    %v2177 = vld [vmem:[%s8 + $0x70] sm:$0xff]
    %v2178 = vld [vmem:[%s8 + $0x78] sm:$0xff]
    %v2179 = vld [vmem:[%s8 + $0x80] sm:$0xff]
    %v2180 = vld [vmem:[%s8 + $0x88] sm:$0xf]
    %v2181 = vld [vmem:[%s8 + $0x8c] sm:$0xff]
    %v2182 = vld [vmem:[%s8 + $0x94] sm:$0xff]
    %v2183 = vld [vmem:[%s8 + $0x9c] sm:$0xff]
    %v2184 = vld [vmem:[%s8 + $0xa4] sm:$0xf]
    %v2185 = vld [vmem:[%s8 + $0xa8] sm:$0xff]
    %v2186 = vld [vmem:[%s8 + $0xb0] sm:$0xff]
    %v2187 = vld [vmem:[%s8 + $0xb8] sm:$0xff]
    %v2188 = vld [vmem:[%s8 + $0xc0] sm:$0xf]
    %v2189 = vld [vmem:[%s8 + $0xc4] sm:$0xff]
    %v2190 = vld [vmem:[%s8 + $0xcc] sm:$0xff]
    %v2191 = vld [vmem:[%s8 + $0xd4] sm:$0xff]
    %v2192 = vld [vmem:[%s8 + $0xdc] sm:$0xf]
    %v2193 = vld [vmem:[%s8 + $0xe0] sm:$0xff]
    %v2194 = vld [vmem:[%s8 + $0xe8] sm:$0xff]
    %v2195 = vld [vmem:[%s8 + $0xf0] sm:$0xff]
    %v2196 = vld [vmem:[%s8 + $0xf8] sm:$0xf]
    %v2197 = vld [vmem:[%s8 + $0xfc] sm:$0xff]
    %v2198 = vld [vmem:[%s8 + $0x104] sm:$0xff]
    %v2199 = vld [vmem:[%s8 + $0x10c] sm:$0xff]
    %v2200 = vld [vmem:[%s8 + $0x114] sm:$0xf]
    %v2201 = vld [vmem:[%s8 + $0x118] sm:$0xff]
    %v2202 = vld [vmem:[%s8 + $0x120] sm:$0xff]
    %v2203 = vld [vmem:[%s8 + $0x128] sm:$0xff]
    %v2204 = vld [vmem:[%s8 + $0x130] sm:$0xf]
    %v2205 = vld [vmem:[%s8 + $0x134] sm:$0xff]
    %v2206 = vld [vmem:[%s8 + $0x13c] sm:$0xff]
    %v2207 = vld [vmem:[%s8 + $0x144] sm:$0xff]
    %v2208 = vld [vmem:[%s8 + $0x14c] sm:$0xf]
    %v2209 = vld [vmem:[%s8 + $0x150] sm:$0xff]
    %v2210 = vld [vmem:[%s8 + $0x158] sm:$0xff]
    %v2211 = vld [vmem:[%s8 + $0x160] sm:$0xff]
    %v2212 = vld [vmem:[%s8 + $0x168] sm:$0xf]
    %v2213 = vld [vmem:[%s8 + $0x16c] sm:$0xff]
    %v2214 = vld [vmem:[%s8 + $0x174] sm:$0xff]
    %v2215 = vld [vmem:[%s8 + $0x17c] sm:$0xff]
    %v2216 = vld [vmem:[%s8 + $0x184] sm:$0xf]
    %v2217 = vld [vmem:[%s8 + $0x188] sm:$0xff]
    %v2218 = vld [vmem:[%s8 + $0x190] sm:$0xff]
    %v2219 = vld [vmem:[%s8 + $0x198] sm:$0xff]
    %v2220 = vld [vmem:[%s8 + $0x1a0] sm:$0xf]
    %v2221 = vld [vmem:[%s8 + $0x1a4] sm:$0xff]
    %v2222 = vld [vmem:[%s8 + $0x1ac] sm:$0xff]
    %v2223 = vld [vmem:[%s8 + $0x1b4] sm:$0xff]
    %v2224 = vld [vmem:[%s8 + $0x1bc] sm:$0xf]
    %v2225 = vld [vmem:[%s8 + $0x1c0] sm:$0xff]
    %v2226 = vld [vmem:[%s8 + $0x1c8] sm:$0xff]
    %v2227 = vld [vmem:[%s8 + $0x1d0] sm:$0xff]
    %v2228 = vld [vmem:[%s8 + $0x1d8] sm:$0xf]
    %v2229 = vld [vmem:[%s8 + $0x1dc] sm:$0xff]
    %v2230 = vld [vmem:[%s8 + $0x1e4] sm:$0xff]
    %v2231 = vld [vmem:[%s8 + $0x1ec] sm:$0xff]
    %v2232 = vld [vmem:[%s8 + $0x1f4] sm:$0xf]
    %v2233 = vld [vmem:[%s8 + $0x1f8] sm:$0xff]
    %v2234 = vld [vmem:[%s8 + $0x200] sm:$0xff]
    %v2235 = vld [vmem:[%s8 + $0x208] sm:$0xff]
    %v2236 = vld [vmem:[%s8 + $0x210] sm:$0xf]
    %v2237 = vld [vmem:[%s8 + $0x214] sm:$0xff]
    %v2238 = vld [vmem:[%s8 + $0x21c] sm:$0xff]
    %v2239 = vld [vmem:[%s8 + $0x224] sm:$0xff]
    %v2240 = vld [vmem:[%s8 + $0x22c] sm:$0xf]
    %v2241 = vld [vmem:[%s8 + $0x230] sm:$0xff]
    %v2242 = vld [vmem:[%s8 + $0x238] sm:$0xff]
    %v2243 = vld [vmem:[%s8 + $0x240] sm:$0xff]
    %v2244 = vld [vmem:[%s8 + $0x248] sm:$0xf]
    %v2245 = vld [vmem:[%s8 + $0x24c] sm:$0xff]
    %v2246 = vld [vmem:[%s8 + $0x254] sm:$0xff]
    %v2247 = vld [vmem:[%s8 + $0x25c] sm:$0xff]
    %v2248 = vld [vmem:[%s8 + $0x264] sm:$0xf]
    %v2249 = vld [vmem:[%s8 + $0x268] sm:$0xff]
    %v2250 = vld [vmem:[%s8 + $0x270] sm:$0xff]
    %v2251 = vld [vmem:[%s8 + $0x278] sm:$0xff]
    %v2252 = vld [vmem:[%s8 + $0x280] sm:$0xf]
    %v2253 = vld [vmem:[%s8 + $0x284] sm:$0xff]
    %v2254 = vld [vmem:[%s8 + $0x28c] sm:$0xff]
    %v2255 = vld [vmem:[%s8 + $0x294] sm:$0xff]
    %v2256 = vld [vmem:[%s8 + $0x29c] sm:$0xf]
    %v2257 = vld [vmem:[%s8 + $0x2a0] sm:$0xff]
    %v2258 = vld [vmem:[%s8 + $0x2a8] sm:$0xff]
    %v2259 = vld [vmem:[%s8 + $0x2b0] sm:$0xff]
    %v2260 = vld [vmem:[%s8 + $0x2b8] sm:$0xf]
    %v2261 = vld [vmem:[%s8 + $0x2bc] sm:$0xff]
    %v2262 = vld [vmem:[%s8 + $0x2c4] sm:$0xff]
    %v2263 = vld [vmem:[%s8 + $0x2cc] sm:$0xff]
    %v2264 = vld [vmem:[%s8 + $0x2d4] sm:$0xf]
    %v2265 = vld [vmem:[%s8 + $0x2d8] sm:$0xff]
    %v2266 = vld [vmem:[%s8 + $0x2e0] sm:$0xff]
    %v2267 = vld [vmem:[%s8 + $0x2e8] sm:$0xff]
    %v2268 = vld [vmem:[%s8 + $0x2f0] sm:$0xf]
    %v2269 = vld [vmem:[%s8 + $0x2f4] sm:$0xff]
    %v2270 = vld [vmem:[%s8 + $0x2fc] sm:$0xff]
    %v2271 = vld [vmem:[%s8 + $0x304] sm:$0xff]
    %v2272 = vld [vmem:[%s8 + $0x30c] sm:$0xf]
    %v2273 = vld [vmem:[%s8 + $0x310] sm:$0xff]
    %v2274 = vld [vmem:[%s8 + $0x318] sm:$0xff]
    %v2275 = vld [vmem:[%s8 + $0x320] sm:$0xff]
    %v2276 = vld [vmem:[%s8 + $0x328] sm:$0xf]
    %v2277 = vld [vmem:[%s8 + $0x32c] sm:$0xff]
    %v2278 = vld [vmem:[%s8 + $0x334] sm:$0xff]
    %v2279 = vld [vmem:[%s8 + $0x33c] sm:$0xff]
    %v2280 = vld [vmem:[%s8 + $0x344] sm:$0xf]
    %v2281 = vld [vmem:[%s8 + $0x348] sm:$0xff]
    %v2282 = vld [vmem:[%s8 + $0x350] sm:$0xff]
    %v2283 = vld [vmem:[%s8 + $0x358] sm:$0xff]
    %v2284 = vld [vmem:[%s8 + $0x360] sm:$0xf]
    %v2285 = vld [vmem:[%s8 + $0x364] sm:$0xff]
    %v2286 = vld [vmem:[%s8 + $0x36c] sm:$0xff]
    %v2287 = vld [vmem:[%s8 + $0x374] sm:$0xff]
    %v2288 = vld [vmem:[%s8 + $0x37c] sm:$0xf]
    %v2289 = vld [vmem:[%s8 + $0x380] sm:$0xff]
    %v2290 = vld [vmem:[%s8 + $0x388] sm:$0xff]
    %v2291 = vld [vmem:[%s8 + $0x390] sm:$0xff]
    %v2292 = vld [vmem:[%s8 + $0x398] sm:$0xf]
    %v2293 = vld [vmem:[%s8 + $0x39c] sm:$0xff]
    %v2294 = vld [vmem:[%s8 + $0x3a4] sm:$0xff]
    %v2295 = vld [vmem:[%s8 + $0x3ac] sm:$0xff]
    %v2296 = vld [vmem:[%s8 + $0x3b4] sm:$0xf]
    %v2297 = vld [vmem:[%s8 + $0x3b8] sm:$0xff]
    %v2298 = vld [vmem:[%s8 + $0x3c0] sm:$0xff]
    %v2299 = vld [vmem:[%s8 + $0x3c8] sm:$0xff]
    %v2300 = vld [vmem:[%s8 + $0x3d0] sm:$0xf]
    %v2301 = vld [vmem:[%s8 + $0x3d4] sm:$0xff]
    %v2302 = vld [vmem:[%s8 + $0x3dc] sm:$0xff]
    %v2303 = vld [vmem:[%s8 + $0x3e4] sm:$0xff]
    %v2304 = vld [vmem:[%s8 + $0x3ec] sm:$0xf]
    %v2305 = vld [vmem:[%s8 + $0x3f0] sm:$0xff]
    %v2306 = vld [vmem:[%s8 + $0x3f8] sm:$0xff]
    %v2307 = vld [vmem:[%s8 + $0x400] sm:$0xff]
    %v2308 = vld [vmem:[%s8 + $0x408] sm:$0xf]
    %v2309 = vld [vmem:[%s8 + $0x40c] sm:$0xff]
    %v2310 = vld [vmem:[%s8 + $0x414] sm:$0xff]
    %v2311 = vld [vmem:[%s8 + $0x41c] sm:$0xff]
    %v2312 = vld [vmem:[%s8 + $0x424] sm:$0xf]
    %v2313 = vld [vmem:[%s8 + $0x428] sm:$0xff]
    %v2314 = vld [vmem:[%s8 + $0x430] sm:$0xff]
    %v2315 = vld [vmem:[%s8 + $0x438] sm:$0xff]
    %v2316 = vld [vmem:[%s8 + $0x440] sm:$0xf]
    %v2317 = vld [vmem:[%s8 + $0x444] sm:$0xff]
    %v2318 = vld [vmem:[%s8 + $0x44c] sm:$0xff]
    %v2319 = vld [vmem:[%s8 + $0x454] sm:$0xff]
    %v2320 = vld [vmem:[%s8 + $0x45c] sm:$0xf]
    %v2321 = vld [vmem:[%s8 + $0x460] sm:$0xff]
    %v2322 = vld [vmem:[%s8 + $0x468] sm:$0xff]
    %v2323 = vld [vmem:[%s8 + $0x470] sm:$0xff]
    %v2324 = vld [vmem:[%s8 + $0x478] sm:$0xf]
    %v2325 = vld [vmem:[%s8 + $0x47c] sm:$0xff]
    %v2326 = vld [vmem:[%s8 + $0x484] sm:$0xff]
    %v2327 = vld [vmem:[%s8 + $0x48c] sm:$0xff]
    %v2328 = vld [vmem:[%s8 + $0x494] sm:$0xf]
    %v2329 = vld [vmem:[%s8 + $0x498] sm:$0xff]
    %v2330 = vld [vmem:[%s8 + $0x4a0] sm:$0xff]
    %v2331 = vld [vmem:[%s8 + $0x4a8] sm:$0xff]
    %v2332 = vld [vmem:[%s8 + $0x4b0] sm:$0xf]
    %v2333 = vld [vmem:[%s8 + $0x4b4] sm:$0xff]
    %v2334 = vld [vmem:[%s8 + $0x4bc] sm:$0xff]
    %v2335 = vld [vmem:[%s8 + $0x4c4] sm:$0xff]
    %v2336 = vld [vmem:[%s8 + $0x4cc] sm:$0xf]
    %v2337 = vld [vmem:[%s8 + $0x4d0] sm:$0xff]
    %v2338 = vld [vmem:[%s8 + $0x4d8] sm:$0xff]
    %v2339 = vld [vmem:[%s8 + $0x4e0] sm:$0xff]
    %v2340 = vld [vmem:[%s8 + $0x4e8] sm:$0xf]
    %v2341 = vld [vmem:[%s8 + $0x4ec] sm:$0xff]
    %v2342 = vld [vmem:[%s8 + $0x4f4] sm:$0xff]
    %v2343 = vld [vmem:[%s8 + $0x4fc] sm:$0xff]
    %v2344 = vld [vmem:[%s8 + $0x504] sm:$0xf]
    %v2345 = vld [vmem:[%s8 + $0x508] sm:$0xff]
    %v2346 = vld [vmem:[%s8 + $0x510] sm:$0xff]
    %v2347 = vld [vmem:[%s8 + $0x518] sm:$0xff]
    %v2348 = vld [vmem:[%s8 + $0x520] sm:$0xf]
    %v2349 = vld [vmem:[%s8 + $0x524] sm:$0xff]
    %v2350 = vld [vmem:[%s8 + $0x52c] sm:$0xff]
    %v2351 = vld [vmem:[%s8 + $0x534] sm:$0xff]
    %v2352 = vld [vmem:[%s8 + $0x53c] sm:$0xf]
    %v2353 = vld [vmem:[%s8 + $0x540] sm:$0xff]
    %v2354 = vld [vmem:[%s8 + $0x548] sm:$0xff]
    %v2355 = vld [vmem:[%s8 + $0x550] sm:$0xff]
    %v2356 = vld [vmem:[%s8 + $0x558] sm:$0xf]
    %v2357 = vld [vmem:[%s8 + $0x55c] sm:$0xff]
    %v2358 = vld [vmem:[%s8 + $0x564] sm:$0xff]
    %v2359 = vld [vmem:[%s8 + $0x56c] sm:$0xff]
    %v2360 = vld [vmem:[%s8 + $0x574] sm:$0xf]
    %v2361 = vld [vmem:[%s9] sm:$0x7f]
    %v2363 = vperm.slane %v2361, 0
    %v2364 = vperm.slane %v2361, 1
    %v2365 = vperm.slane %v2361, 2
    %v2366 = vperm.slane %v2361, 3
    %v2367 = vperm.slane %v2361, 4
    %v2368 = vperm.slane %v2361, 5
    %v2369 = vperm.slane %v2361, 6
    %v2577 = vunpack.c.l.b16 %v2161
    %v2578 = vunpack.c.h.b16 %v2161
    %v2579 = vunpack.c.l.b16 %v2162
    %v2580 = vunpack.c.h.b16 %v2162
    %v2581 = vunpack.c.l.b16 %v2163
    %v2582 = vunpack.c.h.b16 %v2163
    %v2583 = vunpack.c.l.b16 %v2164
    %v2584 = vunpack.c.l.b16 %v2165
    %v2585 = vunpack.c.h.b16 %v2165
    %v2586 = vunpack.c.l.b16 %v2166
    %v2587 = vunpack.c.h.b16 %v2166
    %v2588 = vunpack.c.l.b16 %v2167
    %v2589 = vunpack.c.h.b16 %v2167
    %v2590 = vunpack.c.l.b16 %v2168
    %v2591 = vunpack.c.l.b16 %v2169
    %v2592 = vunpack.c.h.b16 %v2169
    %v2593 = vunpack.c.l.b16 %v2170
    %v2594 = vunpack.c.h.b16 %v2170
    %v2595 = vunpack.c.l.b16 %v2171
    %v2596 = vunpack.c.h.b16 %v2171
    %v2597 = vunpack.c.l.b16 %v2172
    %v2598 = vunpack.c.l.b16 %v2173
    %v2599 = vunpack.c.h.b16 %v2173
    %v2600 = vunpack.c.l.b16 %v2174
    %v2601 = vunpack.c.h.b16 %v2174
    %v2602 = vunpack.c.l.b16 %v2175
    %v2603 = vunpack.c.h.b16 %v2175
    %v2604 = vunpack.c.l.b16 %v2176
    %v2605 = vunpack.c.l.b16 %v2177
    %v2606 = vunpack.c.h.b16 %v2177
    %v2607 = vunpack.c.l.b16 %v2178
    %v2608 = vunpack.c.h.b16 %v2178
    %v2609 = vunpack.c.l.b16 %v2179
    %v2610 = vunpack.c.h.b16 %v2179
    %v2611 = vunpack.c.l.b16 %v2180
    %v2612 = vunpack.c.l.b16 %v2181
    %v2613 = vunpack.c.h.b16 %v2181
    %v2614 = vunpack.c.l.b16 %v2182
    %v2615 = vunpack.c.h.b16 %v2182
    %v2616 = vunpack.c.l.b16 %v2183
    %v2617 = vunpack.c.h.b16 %v2183
    %v2618 = vunpack.c.l.b16 %v2184
    %v2619 = vunpack.c.l.b16 %v2185
    %v2620 = vunpack.c.h.b16 %v2185
    %v2621 = vunpack.c.l.b16 %v2186
    %v2622 = vunpack.c.h.b16 %v2186
    %v2623 = vunpack.c.l.b16 %v2187
    %v2624 = vunpack.c.h.b16 %v2187
    %v2625 = vunpack.c.l.b16 %v2188
    %v2626 = vunpack.c.l.b16 %v2189
    %v2627 = vunpack.c.h.b16 %v2189
    %v2628 = vunpack.c.l.b16 %v2190
    %v2629 = vunpack.c.h.b16 %v2190
    %v2630 = vunpack.c.l.b16 %v2191
    %v2631 = vunpack.c.h.b16 %v2191
    %v2632 = vunpack.c.l.b16 %v2192
    %v2633 = vunpack.c.l.b16 %v2193
    %v2634 = vunpack.c.h.b16 %v2193
    %v2635 = vunpack.c.l.b16 %v2194
    %v2636 = vunpack.c.h.b16 %v2194
    %v2637 = vunpack.c.l.b16 %v2195
    %v2638 = vunpack.c.h.b16 %v2195
    %v2639 = vunpack.c.l.b16 %v2196
    %v2640 = vunpack.c.l.b16 %v2197
    %v2641 = vunpack.c.h.b16 %v2197
    %v2642 = vunpack.c.l.b16 %v2198
    %v2643 = vunpack.c.h.b16 %v2198
    %v2644 = vunpack.c.l.b16 %v2199
    %v2645 = vunpack.c.h.b16 %v2199
    %v2646 = vunpack.c.l.b16 %v2200
    %v2647 = vunpack.c.l.b16 %v2201
    %v2648 = vunpack.c.h.b16 %v2201
    %v2649 = vunpack.c.l.b16 %v2202
    %v2650 = vunpack.c.h.b16 %v2202
    %v2651 = vunpack.c.l.b16 %v2203
    %v2652 = vunpack.c.h.b16 %v2203
    %v2653 = vunpack.c.l.b16 %v2204
    %v2654 = vunpack.c.l.b16 %v2205
    %v2655 = vunpack.c.h.b16 %v2205
    %v2656 = vunpack.c.l.b16 %v2206
    %v2657 = vunpack.c.h.b16 %v2206
    %v2658 = vunpack.c.l.b16 %v2207
    %v2659 = vunpack.c.h.b16 %v2207
    %v2660 = vunpack.c.l.b16 %v2208
    %v2661 = vunpack.c.l.b16 %v2209
    %v2662 = vunpack.c.h.b16 %v2209
    %v2663 = vunpack.c.l.b16 %v2210
    %v2664 = vunpack.c.h.b16 %v2210
    %v2665 = vunpack.c.l.b16 %v2211
    %v2666 = vunpack.c.h.b16 %v2211
    %v2667 = vunpack.c.l.b16 %v2212
    %v2668 = vunpack.c.l.b16 %v2213
    %v2669 = vunpack.c.h.b16 %v2213
    %v2670 = vunpack.c.l.b16 %v2214
    %v2671 = vunpack.c.h.b16 %v2214
    %v2672 = vunpack.c.l.b16 %v2215
    %v2673 = vunpack.c.h.b16 %v2215
    %v2674 = vunpack.c.l.b16 %v2216
    %v2675 = vunpack.c.l.b16 %v2217
    %v2676 = vunpack.c.h.b16 %v2217
    %v2677 = vunpack.c.l.b16 %v2218
    %v2678 = vunpack.c.h.b16 %v2218
    %v2679 = vunpack.c.l.b16 %v2219
    %v2680 = vunpack.c.h.b16 %v2219
    %v2681 = vunpack.c.l.b16 %v2220
    %v2682 = vunpack.c.l.b16 %v2221
    %v2683 = vunpack.c.h.b16 %v2221
    %v2684 = vunpack.c.l.b16 %v2222
    %v2685 = vunpack.c.h.b16 %v2222
    %v2686 = vunpack.c.l.b16 %v2223
    %v2687 = vunpack.c.h.b16 %v2223
    %v2688 = vunpack.c.l.b16 %v2224
    %v2689 = vunpack.c.l.b16 %v2225
    %v2690 = vunpack.c.h.b16 %v2225
    %v2691 = vunpack.c.l.b16 %v2226
    %v2692 = vunpack.c.h.b16 %v2226
    %v2693 = vunpack.c.l.b16 %v2227
    %v2694 = vunpack.c.h.b16 %v2227
    %v2695 = vunpack.c.l.b16 %v2228
    %v2696 = vunpack.c.l.b16 %v2229
    %v2697 = vunpack.c.h.b16 %v2229
    %v2698 = vunpack.c.l.b16 %v2230
    %v2699 = vunpack.c.h.b16 %v2230
    %v2700 = vunpack.c.l.b16 %v2231
    %v2701 = vunpack.c.h.b16 %v2231
    %v2702 = vunpack.c.l.b16 %v2232
    %v2703 = vunpack.c.l.b16 %v2233
    %v2704 = vunpack.c.h.b16 %v2233
    %v2705 = vunpack.c.l.b16 %v2234
    %v2706 = vunpack.c.h.b16 %v2234
    %v2707 = vunpack.c.l.b16 %v2235
    %v2708 = vunpack.c.h.b16 %v2235
    %v2709 = vunpack.c.l.b16 %v2236
    %v2710 = vunpack.c.l.b16 %v2237
    %v2711 = vunpack.c.h.b16 %v2237
    %v2712 = vunpack.c.l.b16 %v2238
    %v2713 = vunpack.c.h.b16 %v2238
    %v2714 = vunpack.c.l.b16 %v2239
    %v2715 = vunpack.c.h.b16 %v2239
    %v2716 = vunpack.c.l.b16 %v2240
    %v2717 = vunpack.c.l.b16 %v2241
    %v2718 = vunpack.c.h.b16 %v2241
    %v2719 = vunpack.c.l.b16 %v2242
    %v2720 = vunpack.c.h.b16 %v2242
    %v2721 = vunpack.c.l.b16 %v2243
    %v2722 = vunpack.c.h.b16 %v2243
    %v2723 = vunpack.c.l.b16 %v2244
    %v2724 = vunpack.c.l.b16 %v2245
    %v2725 = vunpack.c.h.b16 %v2245
    %v2726 = vunpack.c.l.b16 %v2246
    %v2727 = vunpack.c.h.b16 %v2246
    %v2728 = vunpack.c.l.b16 %v2247
    %v2729 = vunpack.c.h.b16 %v2247
    %v2730 = vunpack.c.l.b16 %v2248
    %v2731 = vunpack.c.l.b16 %v2249
    %v2732 = vunpack.c.h.b16 %v2249
    %v2733 = vunpack.c.l.b16 %v2250
    %v2734 = vunpack.c.h.b16 %v2250
    %v2735 = vunpack.c.l.b16 %v2251
    %v2736 = vunpack.c.h.b16 %v2251
    %v2737 = vunpack.c.l.b16 %v2252
    %v2738 = vunpack.c.l.b16 %v2253
    %v2739 = vunpack.c.h.b16 %v2253
    %v2740 = vunpack.c.l.b16 %v2254
    %v2741 = vunpack.c.h.b16 %v2254
    %v2742 = vunpack.c.l.b16 %v2255
    %v2743 = vunpack.c.h.b16 %v2255
    %v2744 = vunpack.c.l.b16 %v2256
    %v2745 = vunpack.c.l.b16 %v2257
    %v2746 = vunpack.c.h.b16 %v2257
    %v2747 = vunpack.c.l.b16 %v2258
    %v2748 = vunpack.c.h.b16 %v2258
    %v2749 = vunpack.c.l.b16 %v2259
    %v2750 = vunpack.c.h.b16 %v2259
    %v2751 = vunpack.c.l.b16 %v2260
    %v2752 = vunpack.c.l.b16 %v2261
    %v2753 = vunpack.c.h.b16 %v2261
    %v2754 = vunpack.c.l.b16 %v2262
    %v2755 = vunpack.c.h.b16 %v2262
    %v2756 = vunpack.c.l.b16 %v2263
    %v2757 = vunpack.c.h.b16 %v2263
    %v2758 = vunpack.c.l.b16 %v2264
    %v2759 = vunpack.c.l.b16 %v2265
    %v2760 = vunpack.c.h.b16 %v2265
    %v2761 = vunpack.c.l.b16 %v2266
    %v2762 = vunpack.c.h.b16 %v2266
    %v2763 = vunpack.c.l.b16 %v2267
    %v2764 = vunpack.c.h.b16 %v2267
    %v2765 = vunpack.c.l.b16 %v2268
    %v2766 = vunpack.c.l.b16 %v2269
    %v2767 = vunpack.c.h.b16 %v2269
    %v2768 = vunpack.c.l.b16 %v2270
    %v2769 = vunpack.c.h.b16 %v2270
    %v2770 = vunpack.c.l.b16 %v2271
    %v2771 = vunpack.c.h.b16 %v2271
    %v2772 = vunpack.c.l.b16 %v2272
    %v2773 = vunpack.c.l.b16 %v2273
    %v2774 = vunpack.c.h.b16 %v2273
    %v2775 = vunpack.c.l.b16 %v2274
    %v2776 = vunpack.c.h.b16 %v2274
    %v2777 = vunpack.c.l.b16 %v2275
    %v2778 = vunpack.c.h.b16 %v2275
    %v2779 = vunpack.c.l.b16 %v2276
    %v2780 = vunpack.c.l.b16 %v2277
    %v2781 = vunpack.c.h.b16 %v2277
    %v2782 = vunpack.c.l.b16 %v2278
    %v2783 = vunpack.c.h.b16 %v2278
    %v2784 = vunpack.c.l.b16 %v2279
    %v2785 = vunpack.c.h.b16 %v2279
    %v2786 = vunpack.c.l.b16 %v2280
    %v2787 = vunpack.c.l.b16 %v2281
    %v2788 = vunpack.c.h.b16 %v2281
    %v2789 = vunpack.c.l.b16 %v2282
    %v2790 = vunpack.c.h.b16 %v2282
    %v2791 = vunpack.c.l.b16 %v2283
    %v2792 = vunpack.c.h.b16 %v2283
    %v2793 = vunpack.c.l.b16 %v2284
    %v2794 = vunpack.c.l.b16 %v2285
    %v2795 = vunpack.c.h.b16 %v2285
    %v2796 = vunpack.c.l.b16 %v2286
    %v2797 = vunpack.c.h.b16 %v2286
    %v2798 = vunpack.c.l.b16 %v2287
    %v2799 = vunpack.c.h.b16 %v2287
    %v2800 = vunpack.c.l.b16 %v2288
    %v2801 = vunpack.c.l.b16 %v2289
    %v2802 = vunpack.c.h.b16 %v2289
    %v2803 = vunpack.c.l.b16 %v2290
    %v2804 = vunpack.c.h.b16 %v2290
    %v2805 = vunpack.c.l.b16 %v2291
    %v2806 = vunpack.c.h.b16 %v2291
    %v2807 = vunpack.c.l.b16 %v2292
    %v2808 = vunpack.c.l.b16 %v2293
    %v2809 = vunpack.c.h.b16 %v2293
    %v2810 = vunpack.c.l.b16 %v2294
    %v2811 = vunpack.c.h.b16 %v2294
    %v2812 = vunpack.c.l.b16 %v2295
    %v2813 = vunpack.c.h.b16 %v2295
    %v2814 = vunpack.c.l.b16 %v2296
    %v2815 = vunpack.c.l.b16 %v2297
    %v2816 = vunpack.c.h.b16 %v2297
    %v2817 = vunpack.c.l.b16 %v2298
    %v2818 = vunpack.c.h.b16 %v2298
    %v2819 = vunpack.c.l.b16 %v2299
    %v2820 = vunpack.c.h.b16 %v2299
    %v2821 = vunpack.c.l.b16 %v2300
    %v2822 = vunpack.c.l.b16 %v2301
    %v2823 = vunpack.c.h.b16 %v2301
    %v2824 = vunpack.c.l.b16 %v2302
    %v2825 = vunpack.c.h.b16 %v2302
    %v2826 = vunpack.c.l.b16 %v2303
    %v2827 = vunpack.c.h.b16 %v2303
    %v2828 = vunpack.c.l.b16 %v2304
    %v2829 = vunpack.c.l.b16 %v2305
    %v2830 = vunpack.c.h.b16 %v2305
    %v2831 = vunpack.c.l.b16 %v2306
    %v2832 = vunpack.c.h.b16 %v2306
    %v2833 = vunpack.c.l.b16 %v2307
    %v2834 = vunpack.c.h.b16 %v2307
    %v2835 = vunpack.c.l.b16 %v2308
    %v2836 = vunpack.c.l.b16 %v2309
    %v2837 = vunpack.c.h.b16 %v2309
    %v2838 = vunpack.c.l.b16 %v2310
    %v2839 = vunpack.c.h.b16 %v2310
    %v2840 = vunpack.c.l.b16 %v2311
    %v2841 = vunpack.c.h.b16 %v2311
    %v2842 = vunpack.c.l.b16 %v2312
    %v2843 = vunpack.c.l.b16 %v2313
    %v2844 = vunpack.c.h.b16 %v2313
    %v2845 = vunpack.c.l.b16 %v2314
    %v2846 = vunpack.c.h.b16 %v2314
    %v2847 = vunpack.c.l.b16 %v2315
    %v2848 = vunpack.c.h.b16 %v2315
    %v2849 = vunpack.c.l.b16 %v2316
    %v2850 = vunpack.c.l.b16 %v2317
    %v2851 = vunpack.c.h.b16 %v2317
    %v2852 = vunpack.c.l.b16 %v2318
    %v2853 = vunpack.c.h.b16 %v2318
    %v2854 = vunpack.c.l.b16 %v2319
    %v2855 = vunpack.c.h.b16 %v2319
    %v2856 = vunpack.c.l.b16 %v2320
    %v2857 = vunpack.c.l.b16 %v2321
    %v2858 = vunpack.c.h.b16 %v2321
    %v2859 = vunpack.c.l.b16 %v2322
    %v2860 = vunpack.c.h.b16 %v2322
    %v2861 = vunpack.c.l.b16 %v2323
    %v2862 = vunpack.c.h.b16 %v2323
    %v2863 = vunpack.c.l.b16 %v2324
    %v2864 = vunpack.c.l.b16 %v2325
    %v2865 = vunpack.c.h.b16 %v2325
    %v2866 = vunpack.c.l.b16 %v2326
    %v2867 = vunpack.c.h.b16 %v2326
    %v2868 = vunpack.c.l.b16 %v2327
    %v2869 = vunpack.c.h.b16 %v2327
    %v2870 = vunpack.c.l.b16 %v2328
    %v2871 = vunpack.c.l.b16 %v2329
    %v2872 = vunpack.c.h.b16 %v2329
    %v2873 = vunpack.c.l.b16 %v2330
    %v2874 = vunpack.c.h.b16 %v2330
    %v2875 = vunpack.c.l.b16 %v2331
    %v2876 = vunpack.c.h.b16 %v2331
    %v2877 = vunpack.c.l.b16 %v2332
    %v2878 = vunpack.c.l.b16 %v2333
    %v2879 = vunpack.c.h.b16 %v2333
    %v2880 = vunpack.c.l.b16 %v2334
    %v2881 = vunpack.c.h.b16 %v2334
    %v2882 = vunpack.c.l.b16 %v2335
    %v2883 = vunpack.c.h.b16 %v2335
    %v2884 = vunpack.c.l.b16 %v2336
    %v2885 = vunpack.c.l.b16 %v2337
    %v2886 = vunpack.c.h.b16 %v2337
    %v2887 = vunpack.c.l.b16 %v2338
    %v2888 = vunpack.c.h.b16 %v2338
    %v2889 = vunpack.c.l.b16 %v2339
    %v2890 = vunpack.c.h.b16 %v2339
    %v2891 = vunpack.c.l.b16 %v2340
    %v2892 = vunpack.c.l.b16 %v2341
    %v2893 = vunpack.c.h.b16 %v2341
    %v2894 = vunpack.c.l.b16 %v2342
    %v2895 = vunpack.c.h.b16 %v2342
    %v2896 = vunpack.c.l.b16 %v2343
    %v2897 = vunpack.c.h.b16 %v2343
    %v2898 = vunpack.c.l.b16 %v2344
    %v2899 = vunpack.c.l.b16 %v2345
    %v2900 = vunpack.c.h.b16 %v2345
    %v2901 = vunpack.c.l.b16 %v2346
    %v2902 = vunpack.c.h.b16 %v2346
    %v2903 = vunpack.c.l.b16 %v2347
    %v2904 = vunpack.c.h.b16 %v2347
    %v2905 = vunpack.c.l.b16 %v2348
    %v2906 = vunpack.c.l.b16 %v2349
    %v2907 = vunpack.c.h.b16 %v2349
    %v2908 = vunpack.c.l.b16 %v2350
    %v2909 = vunpack.c.h.b16 %v2350
    %v2910 = vunpack.c.l.b16 %v2351
    %v2911 = vunpack.c.h.b16 %v2351
    %v2912 = vunpack.c.l.b16 %v2352
    %v2913 = vunpack.c.l.b16 %v2353
    %v2914 = vunpack.c.h.b16 %v2353
    %v2915 = vunpack.c.l.b16 %v2354
    %v2916 = vunpack.c.h.b16 %v2354
    %v2917 = vunpack.c.l.b16 %v2355
    %v2918 = vunpack.c.h.b16 %v2355
    %v2919 = vunpack.c.l.b16 %v2356
    %v2920 = vunpack.c.l.b16 %v2357
    %v2921 = vunpack.c.h.b16 %v2357
    %v2922 = vunpack.c.l.b16 %v2358
    %v2923 = vunpack.c.h.b16 %v2358
    %v2924 = vunpack.c.l.b16 %v2359
    %v2925 = vunpack.c.h.b16 %v2359
    %v2926 = vunpack.c.l.b16 %v2360
    %v2927 = vpack.c.b16 %v2584, %v2577
    %v2928 = vpack.c.b16 %v2585, %v2578
    %v2929 = vpack.c.b16 %v2586, %v2579
    %v2930 = vpack.c.b16 %v2587, %v2580
    %v2931 = vpack.c.b16 %v2588, %v2581
    %v2932 = vpack.c.b16 %v2589, %v2582
    %v2933 = vpack.c.b16 %v2590, %v2583
    %v2934 = vpack.c.b16 %v2598, %v2591
    %v2935 = vpack.c.b16 %v2599, %v2592
    %v2936 = vpack.c.b16 %v2600, %v2593
    %v2937 = vpack.c.b16 %v2601, %v2594
    %v2938 = vpack.c.b16 %v2602, %v2595
    %v2939 = vpack.c.b16 %v2603, %v2596
    %v2940 = vpack.c.b16 %v2604, %v2597
    %v2941 = vpack.c.b16 %v2612, %v2605
    %v2942 = vpack.c.b16 %v2613, %v2606
    %v2943 = vpack.c.b16 %v2614, %v2607
    %v2944 = vpack.c.b16 %v2615, %v2608
    %v2945 = vpack.c.b16 %v2616, %v2609
    %v2946 = vpack.c.b16 %v2617, %v2610
    %v2947 = vpack.c.b16 %v2618, %v2611
    %v2948 = vpack.c.b16 %v2626, %v2619
    %v2949 = vpack.c.b16 %v2627, %v2620
    %v2950 = vpack.c.b16 %v2628, %v2621
    %v2951 = vpack.c.b16 %v2629, %v2622
    %v2952 = vpack.c.b16 %v2630, %v2623
    %v2953 = vpack.c.b16 %v2631, %v2624
    %v2954 = vpack.c.b16 %v2632, %v2625
    %v2955 = vpack.c.b16 %v2640, %v2633
    %v2956 = vpack.c.b16 %v2641, %v2634
    %v2957 = vpack.c.b16 %v2642, %v2635
    %v2958 = vpack.c.b16 %v2643, %v2636
    %v2959 = vpack.c.b16 %v2644, %v2637
    %v2960 = vpack.c.b16 %v2645, %v2638
    %v2961 = vpack.c.b16 %v2646, %v2639
    %v2962 = vpack.c.b16 %v2654, %v2647
    %v2963 = vpack.c.b16 %v2655, %v2648
    %v2964 = vpack.c.b16 %v2656, %v2649
    %v2965 = vpack.c.b16 %v2657, %v2650
    %v2966 = vpack.c.b16 %v2658, %v2651
    %v2967 = vpack.c.b16 %v2659, %v2652
    %v2968 = vpack.c.b16 %v2660, %v2653
    %v2969 = vpack.c.b16 %v2668, %v2661
    %v2970 = vpack.c.b16 %v2669, %v2662
    %v2971 = vpack.c.b16 %v2670, %v2663
    %v2972 = vpack.c.b16 %v2671, %v2664
    %v2973 = vpack.c.b16 %v2672, %v2665
    %v2974 = vpack.c.b16 %v2673, %v2666
    %v2975 = vpack.c.b16 %v2674, %v2667
    %v2976 = vpack.c.b16 %v2682, %v2675
    %v2977 = vpack.c.b16 %v2683, %v2676
    %v2978 = vpack.c.b16 %v2684, %v2677
    %v2979 = vpack.c.b16 %v2685, %v2678
    %v2980 = vpack.c.b16 %v2686, %v2679
    %v2981 = vpack.c.b16 %v2687, %v2680
    %v2982 = vpack.c.b16 %v2688, %v2681
    %v2983 = vpack.c.b16 %v2696, %v2689
    %v2984 = vpack.c.b16 %v2697, %v2690
    %v2985 = vpack.c.b16 %v2698, %v2691
    %v2986 = vpack.c.b16 %v2699, %v2692
    %v2987 = vpack.c.b16 %v2700, %v2693
    %v2988 = vpack.c.b16 %v2701, %v2694
    %v2989 = vpack.c.b16 %v2702, %v2695
    %v2990 = vpack.c.b16 %v2710, %v2703
    %v2991 = vpack.c.b16 %v2711, %v2704
    %v2992 = vpack.c.b16 %v2712, %v2705
    %v2993 = vpack.c.b16 %v2713, %v2706
    %v2994 = vpack.c.b16 %v2714, %v2707
    %v2995 = vpack.c.b16 %v2715, %v2708
    %v2996 = vpack.c.b16 %v2716, %v2709
    %v2997 = vpack.c.b16 %v2724, %v2717
    %v2998 = vpack.c.b16 %v2725, %v2718
    %v2999 = vpack.c.b16 %v2726, %v2719
    %v3000 = vpack.c.b16 %v2727, %v2720
    %v3001 = vpack.c.b16 %v2728, %v2721
    %v3002 = vpack.c.b16 %v2729, %v2722
    %v3003 = vpack.c.b16 %v2730, %v2723
    %v3004 = vpack.c.b16 %v2738, %v2731
    %v3005 = vpack.c.b16 %v2739, %v2732
    %v3006 = vpack.c.b16 %v2740, %v2733
    %v3007 = vpack.c.b16 %v2741, %v2734
    %v3008 = vpack.c.b16 %v2742, %v2735
    %v3009 = vpack.c.b16 %v2743, %v2736
    %v3010 = vpack.c.b16 %v2744, %v2737
    %v3011 = vpack.c.b16 %v2752, %v2745
    %v3012 = vpack.c.b16 %v2753, %v2746
    %v3013 = vpack.c.b16 %v2754, %v2747
    %v3014 = vpack.c.b16 %v2755, %v2748
    %v3015 = vpack.c.b16 %v2756, %v2749
    %v3016 = vpack.c.b16 %v2757, %v2750
    %v3017 = vpack.c.b16 %v2758, %v2751
    %v3018 = vpack.c.b16 %v2766, %v2759
    %v3019 = vpack.c.b16 %v2767, %v2760
    %v3020 = vpack.c.b16 %v2768, %v2761
    %v3021 = vpack.c.b16 %v2769, %v2762
    %v3022 = vpack.c.b16 %v2770, %v2763
    %v3023 = vpack.c.b16 %v2771, %v2764
    %v3024 = vpack.c.b16 %v2772, %v2765
    %v3025 = vpack.c.b16 %v2780, %v2773
    %v3026 = vpack.c.b16 %v2781, %v2774
    %v3027 = vpack.c.b16 %v2782, %v2775
    %v3028 = vpack.c.b16 %v2783, %v2776
    %v3029 = vpack.c.b16 %v2784, %v2777
    %v3030 = vpack.c.b16 %v2785, %v2778
    %v3031 = vpack.c.b16 %v2786, %v2779
    %v3032 = vpack.c.b16 %v2794, %v2787
    %v3033 = vpack.c.b16 %v2795, %v2788
    %v3034 = vpack.c.b16 %v2796, %v2789
    %v3035 = vpack.c.b16 %v2797, %v2790
    %v3036 = vpack.c.b16 %v2798, %v2791
    %v3037 = vpack.c.b16 %v2799, %v2792
    %v3038 = vpack.c.b16 %v2800, %v2793
    %v3039 = vpack.c.b16 %v2808, %v2801
    %v3040 = vpack.c.b16 %v2809, %v2802
    %v3041 = vpack.c.b16 %v2810, %v2803
    %v3042 = vpack.c.b16 %v2811, %v2804
    %v3043 = vpack.c.b16 %v2812, %v2805
    %v3044 = vpack.c.b16 %v2813, %v2806
    %v3045 = vpack.c.b16 %v2814, %v2807
    %v3046 = vpack.c.b16 %v2822, %v2815
    %v3047 = vpack.c.b16 %v2823, %v2816
    %v3048 = vpack.c.b16 %v2824, %v2817
    %v3049 = vpack.c.b16 %v2825, %v2818
    %v3050 = vpack.c.b16 %v2826, %v2819
    %v3051 = vpack.c.b16 %v2827, %v2820
    %v3052 = vpack.c.b16 %v2828, %v2821
    %v3053 = vpack.c.b16 %v2836, %v2829
    %v3054 = vpack.c.b16 %v2837, %v2830
    %v3055 = vpack.c.b16 %v2838, %v2831
    %v3056 = vpack.c.b16 %v2839, %v2832
    %v3057 = vpack.c.b16 %v2840, %v2833
    %v3058 = vpack.c.b16 %v2841, %v2834
    %v3059 = vpack.c.b16 %v2842, %v2835
    %v3060 = vpack.c.b16 %v2850, %v2843
    %v3061 = vpack.c.b16 %v2851, %v2844
    %v3062 = vpack.c.b16 %v2852, %v2845
    %v3063 = vpack.c.b16 %v2853, %v2846
    %v3064 = vpack.c.b16 %v2854, %v2847
    %v3065 = vpack.c.b16 %v2855, %v2848
    %v3066 = vpack.c.b16 %v2856, %v2849
    %v3067 = vpack.c.b16 %v2864, %v2857
    %v3068 = vpack.c.b16 %v2865, %v2858
    %v3069 = vpack.c.b16 %v2866, %v2859
    %v3070 = vpack.c.b16 %v2867, %v2860
    %v3071 = vpack.c.b16 %v2868, %v2861
    %v3072 = vpack.c.b16 %v2869, %v2862
    %v3073 = vpack.c.b16 %v2870, %v2863
    %v3074 = vpack.c.b16 %v2878, %v2871
    %v3075 = vpack.c.b16 %v2879, %v2872
    %v3076 = vpack.c.b16 %v2880, %v2873
    %v3077 = vpack.c.b16 %v2881, %v2874
    %v3078 = vpack.c.b16 %v2882, %v2875
    %v3079 = vpack.c.b16 %v2883, %v2876
    %v3080 = vpack.c.b16 %v2884, %v2877
    %v3081 = vpack.c.b16 %v2892, %v2885
    %v3082 = vpack.c.b16 %v2893, %v2886
    %v3083 = vpack.c.b16 %v2894, %v2887
    %v3084 = vpack.c.b16 %v2895, %v2888
    %v3085 = vpack.c.b16 %v2896, %v2889
    %v3086 = vpack.c.b16 %v2897, %v2890
    %v3087 = vpack.c.b16 %v2898, %v2891
    %v3088 = vpack.c.b16 %v2906, %v2899
    %v3089 = vpack.c.b16 %v2907, %v2900
    %v3090 = vpack.c.b16 %v2908, %v2901
    %v3091 = vpack.c.b16 %v2909, %v2902
    %v3092 = vpack.c.b16 %v2910, %v2903
    %v3093 = vpack.c.b16 %v2911, %v2904
    %v3094 = vpack.c.b16 %v2912, %v2905
    %v3095 = vpack.c.b16 %v2920, %v2913
    %v3096 = vpack.c.b16 %v2921, %v2914
    %v3097 = vpack.c.b16 %v2922, %v2915
    %v3098 = vpack.c.b16 %v2923, %v2916
    %v3099 = vpack.c.b16 %v2924, %v2917
    %v3100 = vpack.c.b16 %v2925, %v2918
    %v3101 = vpack.c.b16 %v2926, %v2919
    %v3278 = vsel %vm1243, %v2160, 0
    %3280 = vmatpush.bf16.msra.mxu0 %v2976
    %3281 = vmatpush.bf16.msra.mxu0 %v2969
    %3282 = vmatpush.bf16.msra.mxu0 %v2962
    %3283 = vmatpush.bf16.msra.mxu0 %v2955
    %3284 = vmatpush.bf16.msra.mxu0 %v2948
    %3285 = vmatpush.bf16.msra.mxu0 %v2941
    %3286 = vmatpush.bf16.msra.mxu0 %v2934
    %3287 = vmatpush.bf16.msra.mxu0 %v2927
    %3288 = vmatmul.bf16.gmra.mxu0 %v2157
    %v3289 = vpop.f32.mrf.mxu0
    %v3290 = vadd.f32 %v2363, %v3289
    %v3291 = vpop.f32.mrf.mxu0
    %3292 = vdwg.mxu0
    %3293 = vmatpush.bf16.msra.mxu0 %v3032
    %3294 = vmatpush.bf16.msra.mxu0 %v3025
    %3295 = vmatpush.bf16.msra.mxu0 %v3018
    %3296 = vmatpush.bf16.msra.mxu0 %v3011
    %3297 = vmatpush.bf16.msra.mxu0 %v3004
    %3298 = vmatpush.bf16.msra.mxu0 %v2997
    %3299 = vmatpush.bf16.msra.mxu0 %v2990
    %3300 = vmatpush.bf16.msra.mxu0 %v2983
    %3301 = vmatmul.bf16.gmra.mxu0 %v2158
    %v3302 = vpop.f32.mrf.mxu0
    %v3303 = vadd.f32 %v3290, %v3302
    %v3304 = vpop.f32.mrf.mxu0
    %3305 = vdwg.mxu0
    %3306 = vmatpush.bf16.msra.mxu0 %v3088
    %3307 = vmatpush.bf16.msra.mxu0 %v3081
    %3308 = vmatpush.bf16.msra.mxu0 %v3074
    %3309 = vmatpush.bf16.msra.mxu0 %v3067
    %3310 = vmatpush.bf16.msra.mxu0 %v3060
    %3311 = vmatpush.bf16.msra.mxu0 %v3053
    %3312 = vmatpush.bf16.msra.mxu0 %v3046
    %3313 = vmatpush.bf16.msra.mxu0 %v3039
    %3314 = vmatmul.bf16.gmra.mxu0 %v2159
    %v3315 = vpop.f32.mrf.mxu0
    %v3316 = vadd.f32 %v3303, %v3315
    %v3317 = vpop.f32.mrf.mxu0
    %3318 = vdwg.mxu0
    %3319 = vmatpush.bf16.msra.mxu0 0
    %3320 = vmatpush.bf16.msra.mxu0 0
    %3321 = vmatpush.bf16.msra.mxu0 0
    %3322 = vmatpush.bf16.msra.mxu0 0
    %3323 = vmatpush.bf16.msra.mxu0 0
    %3324 = vmatpush.bf16.msra.mxu0 0
    %3325 = vmatpush.bf16.msra.mxu0 0
    %3326 = vmatpush.bf16.msra.mxu0 %v3095
    %3327 = vmatmul.bf16.gmra.mxu0 %v3278
    %v3328 = vpop.f32.mrf.mxu0
    %v3329 = vadd.f32 %v3316, %v3328
    %v3330 = vpop.f32.mrf.mxu0
    %3331 = vdwg.mxu0
    %3332 = vmatpush.bf16.msra.mxu0 %v2977
    %3333 = vmatpush.bf16.msra.mxu0 %v2970
    %3334 = vmatpush.bf16.msra.mxu0 %v2963
    %3335 = vmatpush.bf16.msra.mxu0 %v2956
    %3336 = vmatpush.bf16.msra.mxu0 %v2949
    %3337 = vmatpush.bf16.msra.mxu0 %v2942
    %3338 = vmatpush.bf16.msra.mxu0 %v2935
    %3339 = vmatpush.bf16.msra.mxu0 %v2928
    %3340 = vmatmul.bf16.gmra.mxu0 %v2157
    %v3341 = vpop.f32.mrf.mxu0
    %v3342 = vadd.f32 %v2364, %v3341
    %v3343 = vpop.f32.mrf.mxu0
    %3344 = vdwg.mxu0
    %3345 = vmatpush.bf16.msra.mxu0 %v3033
    %3346 = vmatpush.bf16.msra.mxu0 %v3026
    %3347 = vmatpush.bf16.msra.mxu0 %v3019
    %3348 = vmatpush.bf16.msra.mxu0 %v3012
    %3349 = vmatpush.bf16.msra.mxu0 %v3005
    %3350 = vmatpush.bf16.msra.mxu0 %v2998
    %3351 = vmatpush.bf16.msra.mxu0 %v2991
    %3352 = vmatpush.bf16.msra.mxu0 %v2984
    %3353 = vmatmul.bf16.gmra.mxu0 %v2158
    %v3354 = vpop.f32.mrf.mxu0
    %v3355 = vadd.f32 %v3342, %v3354
    %v3356 = vpop.f32.mrf.mxu0
    %3357 = vdwg.mxu0
    %3358 = vmatpush.bf16.msra.mxu0 %v3089
    %3359 = vmatpush.bf16.msra.mxu0 %v3082
    %3360 = vmatpush.bf16.msra.mxu0 %v3075
    %3361 = vmatpush.bf16.msra.mxu0 %v3068
    %3362 = vmatpush.bf16.msra.mxu0 %v3061
    %3363 = vmatpush.bf16.msra.mxu0 %v3054
    %3364 = vmatpush.bf16.msra.mxu0 %v3047
    %3365 = vmatpush.bf16.msra.mxu0 %v3040
    %3366 = vmatmul.bf16.gmra.mxu0 %v2159
    %v3367 = vpop.f32.mrf.mxu0
    %v3368 = vadd.f32 %v3355, %v3367
    %v3369 = vpop.f32.mrf.mxu0
    %3370 = vdwg.mxu0
    %3371 = vmatpush.bf16.msra.mxu0 0
    %3372 = vmatpush.bf16.msra.mxu0 0
    %3373 = vmatpush.bf16.msra.mxu0 0
    %3374 = vmatpush.bf16.msra.mxu0 0
    %3375 = vmatpush.bf16.msra.mxu0 0
    %3376 = vmatpush.bf16.msra.mxu0 0
    %3377 = vmatpush.bf16.msra.mxu0 0
    %3378 = vmatpush.bf16.msra.mxu0 %v3096
    %3379 = vmatmul.bf16.gmra.mxu0 %v3278
    %v3380 = vpop.f32.mrf.mxu0
    %v3381 = vadd.f32 %v3368, %v3380
    %v3382 = vpop.f32.mrf.mxu0
    %3383 = vdwg.mxu0
    %3384 = vmatpush.bf16.msra.mxu0 %v2978
    %3385 = vmatpush.bf16.msra.mxu0 %v2971
    %3386 = vmatpush.bf16.msra.mxu0 %v2964
    %3387 = vmatpush.bf16.msra.mxu0 %v2957
    %3388 = vmatpush.bf16.msra.mxu0 %v2950
    %3389 = vmatpush.bf16.msra.mxu0 %v2943
    %3390 = vmatpush.bf16.msra.mxu0 %v2936
    %3391 = vmatpush.bf16.msra.mxu0 %v2929
    %3392 = vmatmul.bf16.gmra.mxu0 %v2157
    %v3393 = vpop.f32.mrf.mxu0
    %v3394 = vadd.f32 %v2365, %v3393
    %v3395 = vpop.f32.mrf.mxu0
    %3396 = vdwg.mxu0
    %3397 = vmatpush.bf16.msra.mxu0 %v3034
    %3398 = vmatpush.bf16.msra.mxu0 %v3027
    %3399 = vmatpush.bf16.msra.mxu0 %v3020
    %3400 = vmatpush.bf16.msra.mxu0 %v3013
    %3401 = vmatpush.bf16.msra.mxu0 %v3006
    %3402 = vmatpush.bf16.msra.mxu0 %v2999
    %3403 = vmatpush.bf16.msra.mxu0 %v2992
    %3404 = vmatpush.bf16.msra.mxu0 %v2985
    %3405 = vmatmul.bf16.gmra.mxu0 %v2158
    %v3406 = vpop.f32.mrf.mxu0
    %v3407 = vadd.f32 %v3394, %v3406
    %v3408 = vpop.f32.mrf.mxu0
    %3409 = vdwg.mxu0
    %3410 = vmatpush.bf16.msra.mxu0 %v3090
    %3411 = vmatpush.bf16.msra.mxu0 %v3083
    %3412 = vmatpush.bf16.msra.mxu0 %v3076
    %3413 = vmatpush.bf16.msra.mxu0 %v3069
    %3414 = vmatpush.bf16.msra.mxu0 %v3062
    %3415 = vmatpush.bf16.msra.mxu0 %v3055
    %3416 = vmatpush.bf16.msra.mxu0 %v3048
    %3417 = vmatpush.bf16.msra.mxu0 %v3041
    %3418 = vmatmul.bf16.gmra.mxu0 %v2159
    %v3419 = vpop.f32.mrf.mxu0
    %v3420 = vadd.f32 %v3407, %v3419
    %v3421 = vpop.f32.mrf.mxu0
    %3422 = vdwg.mxu0
    %3423 = vmatpush.bf16.msra.mxu0 0
    %3424 = vmatpush.bf16.msra.mxu0 0
    %3425 = vmatpush.bf16.msra.mxu0 0
    %3426 = vmatpush.bf16.msra.mxu0 0
    %3427 = vmatpush.bf16.msra.mxu0 0
    %3428 = vmatpush.bf16.msra.mxu0 0
    %3429 = vmatpush.bf16.msra.mxu0 0
    %3430 = vmatpush.bf16.msra.mxu0 %v3097
    %3431 = vmatmul.bf16.gmra.mxu0 %v3278
    %v3432 = vpop.f32.mrf.mxu0
    %v3433 = vadd.f32 %v3420, %v3432
    %v3434 = vpop.f32.mrf.mxu0
    %3435 = vdwg.mxu0
    %3436 = vmatpush.bf16.msra.mxu0 %v2979
    %3437 = vmatpush.bf16.msra.mxu0 %v2972
    %3438 = vmatpush.bf16.msra.mxu0 %v2965
    %3439 = vmatpush.bf16.msra.mxu0 %v2958
    %3440 = vmatpush.bf16.msra.mxu0 %v2951
    %3441 = vmatpush.bf16.msra.mxu0 %v2944
    %3442 = vmatpush.bf16.msra.mxu0 %v2937
    %3443 = vmatpush.bf16.msra.mxu0 %v2930
    %3444 = vmatmul.bf16.gmra.mxu0 %v2157
    %v3445 = vpop.f32.mrf.mxu0
    %v3446 = vadd.f32 %v2366, %v3445
    %v3447 = vpop.f32.mrf.mxu0
    %3448 = vdwg.mxu0
    %3449 = vmatpush.bf16.msra.mxu0 %v3035
    %3450 = vmatpush.bf16.msra.mxu0 %v3028
    %3451 = vmatpush.bf16.msra.mxu0 %v3021
    %3452 = vmatpush.bf16.msra.mxu0 %v3014
    %3453 = vmatpush.bf16.msra.mxu0 %v3007
    %3454 = vmatpush.bf16.msra.mxu0 %v3000
    %3455 = vmatpush.bf16.msra.mxu0 %v2993
    %3456 = vmatpush.bf16.msra.mxu0 %v2986
    %3457 = vmatmul.bf16.gmra.mxu0 %v2158
    %v3458 = vpop.f32.mrf.mxu0
    %v3459 = vadd.f32 %v3446, %v3458
    %v3460 = vpop.f32.mrf.mxu0
    %3461 = vdwg.mxu0
    %3462 = vmatpush.bf16.msra.mxu0 %v3091
    %3463 = vmatpush.bf16.msra.mxu0 %v3084
    %3464 = vmatpush.bf16.msra.mxu0 %v3077
    %3465 = vmatpush.bf16.msra.mxu0 %v3070
    %3466 = vmatpush.bf16.msra.mxu0 %v3063
    %3467 = vmatpush.bf16.msra.mxu0 %v3056
    %3468 = vmatpush.bf16.msra.mxu0 %v3049
    %3469 = vmatpush.bf16.msra.mxu0 %v3042
    %3470 = vmatmul.bf16.gmra.mxu0 %v2159
    %v3471 = vpop.f32.mrf.mxu0
    %v3472 = vadd.f32 %v3459, %v3471
    %v3473 = vpop.f32.mrf.mxu0
    %3474 = vdwg.mxu0
    %3475 = vmatpush.bf16.msra.mxu0 0
    %3476 = vmatpush.bf16.msra.mxu0 0
    %3477 = vmatpush.bf16.msra.mxu0 0
    %3478 = vmatpush.bf16.msra.mxu0 0
    %3479 = vmatpush.bf16.msra.mxu0 0
    %3480 = vmatpush.bf16.msra.mxu0 0
    %3481 = vmatpush.bf16.msra.mxu0 0
    %3482 = vmatpush.bf16.msra.mxu0 %v3098
    %3483 = vmatmul.bf16.gmra.mxu0 %v3278
    %v3484 = vpop.f32.mrf.mxu0
    %v3485 = vadd.f32 %v3472, %v3484
    %v3486 = vpop.f32.mrf.mxu0
    %3487 = vdwg.mxu0
    %3488 = vmatpush.bf16.msra.mxu0 %v2980
    %3489 = vmatpush.bf16.msra.mxu0 %v2973
    %3490 = vmatpush.bf16.msra.mxu0 %v2966
    %3491 = vmatpush.bf16.msra.mxu0 %v2959
    %3492 = vmatpush.bf16.msra.mxu0 %v2952
    %3493 = vmatpush.bf16.msra.mxu0 %v2945
    %3494 = vmatpush.bf16.msra.mxu0 %v2938
    %3495 = vmatpush.bf16.msra.mxu0 %v2931
    %3496 = vmatmul.bf16.gmra.mxu0 %v2157
    %v3497 = vpop.f32.mrf.mxu0
    %v3498 = vadd.f32 %v2367, %v3497
    %v3499 = vpop.f32.mrf.mxu0
    %3500 = vdwg.mxu0
    %3501 = vmatpush.bf16.msra.mxu0 %v3036
    %3502 = vmatpush.bf16.msra.mxu0 %v3029
    %3503 = vmatpush.bf16.msra.mxu0 %v3022
    %3504 = vmatpush.bf16.msra.mxu0 %v3015
    %3505 = vmatpush.bf16.msra.mxu0 %v3008
    %3506 = vmatpush.bf16.msra.mxu0 %v3001
    %3507 = vmatpush.bf16.msra.mxu0 %v2994
    %3508 = vmatpush.bf16.msra.mxu0 %v2987
    %3509 = vmatmul.bf16.gmra.mxu0 %v2158
    %v3510 = vpop.f32.mrf.mxu0
    %v3511 = vadd.f32 %v3498, %v3510
    %v3512 = vpop.f32.mrf.mxu0
    %3513 = vdwg.mxu0
    %3514 = vmatpush.bf16.msra.mxu0 %v3092
    %3515 = vmatpush.bf16.msra.mxu0 %v3085
    %3516 = vmatpush.bf16.msra.mxu0 %v3078
    %3517 = vmatpush.bf16.msra.mxu0 %v3071
    %3518 = vmatpush.bf16.msra.mxu0 %v3064
    %3519 = vmatpush.bf16.msra.mxu0 %v3057
    %3520 = vmatpush.bf16.msra.mxu0 %v3050
    %3521 = vmatpush.bf16.msra.mxu0 %v3043
    %3522 = vmatmul.bf16.gmra.mxu0 %v2159
    %v3523 = vpop.f32.mrf.mxu0
    %v3524 = vadd.f32 %v3511, %v3523
    %v3525 = vpop.f32.mrf.mxu0
    %3526 = vdwg.mxu0
    %3527 = vmatpush.bf16.msra.mxu0 0
    %3528 = vmatpush.bf16.msra.mxu0 0
    %3529 = vmatpush.bf16.msra.mxu0 0
    %3530 = vmatpush.bf16.msra.mxu0 0
    %3531 = vmatpush.bf16.msra.mxu0 0
    %3532 = vmatpush.bf16.msra.mxu0 0
    %3533 = vmatpush.bf16.msra.mxu0 0
    %3534 = vmatpush.bf16.msra.mxu0 %v3099
    %3535 = vmatmul.bf16.gmra.mxu0 %v3278
    %v3536 = vpop.f32.mrf.mxu0
    %v3537 = vadd.f32 %v3524, %v3536
    %v3538 = vpop.f32.mrf.mxu0
    %3539 = vdwg.mxu0
    %3540 = vmatpush.bf16.msra.mxu0 %v2981
    %3541 = vmatpush.bf16.msra.mxu0 %v2974
    %3542 = vmatpush.bf16.msra.mxu0 %v2967
    %3543 = vmatpush.bf16.msra.mxu0 %v2960
    %3544 = vmatpush.bf16.msra.mxu0 %v2953
    %3545 = vmatpush.bf16.msra.mxu0 %v2946
    %3546 = vmatpush.bf16.msra.mxu0 %v2939
    %3547 = vmatpush.bf16.msra.mxu0 %v2932
    %3548 = vmatmul.bf16.gmra.mxu0 %v2157
    %v3549 = vpop.f32.mrf.mxu0
    %v3550 = vadd.f32 %v2368, %v3549
    %v3551 = vpop.f32.mrf.mxu0
    %3552 = vdwg.mxu0
    %3553 = vmatpush.bf16.msra.mxu0 %v3037
    %3554 = vmatpush.bf16.msra.mxu0 %v3030
    %3555 = vmatpush.bf16.msra.mxu0 %v3023
    %3556 = vmatpush.bf16.msra.mxu0 %v3016
    %3557 = vmatpush.bf16.msra.mxu0 %v3009
    %3558 = vmatpush.bf16.msra.mxu0 %v3002
    %3559 = vmatpush.bf16.msra.mxu0 %v2995
    %3560 = vmatpush.bf16.msra.mxu0 %v2988
    %3561 = vmatmul.bf16.gmra.mxu0 %v2158
    %v3562 = vpop.f32.mrf.mxu0
    %v3563 = vadd.f32 %v3550, %v3562
    %v3564 = vpop.f32.mrf.mxu0
    %3565 = vdwg.mxu0
    %3566 = vmatpush.bf16.msra.mxu0 %v3093
    %3567 = vmatpush.bf16.msra.mxu0 %v3086
    %3568 = vmatpush.bf16.msra.mxu0 %v3079
    %3569 = vmatpush.bf16.msra.mxu0 %v3072
    %3570 = vmatpush.bf16.msra.mxu0 %v3065
    %3571 = vmatpush.bf16.msra.mxu0 %v3058
    %3572 = vmatpush.bf16.msra.mxu0 %v3051
    %3573 = vmatpush.bf16.msra.mxu0 %v3044
    %3574 = vmatmul.bf16.gmra.mxu0 %v2159
    %v3575 = vpop.f32.mrf.mxu0
    %v3576 = vadd.f32 %v3563, %v3575
    %v3577 = vpop.f32.mrf.mxu0
    %3578 = vdwg.mxu0
    %3579 = vmatpush.bf16.msra.mxu0 0
    %3580 = vmatpush.bf16.msra.mxu0 0
    %3581 = vmatpush.bf16.msra.mxu0 0
    %3582 = vmatpush.bf16.msra.mxu0 0
    %3583 = vmatpush.bf16.msra.mxu0 0
    %3584 = vmatpush.bf16.msra.mxu0 0
    %3585 = vmatpush.bf16.msra.mxu0 0
    %3586 = vmatpush.bf16.msra.mxu0 %v3100
    %3587 = vmatmul.bf16.gmra.mxu0 %v3278
    %v3588 = vpop.f32.mrf.mxu0
    %v3589 = vadd.f32 %v3576, %v3588
    %v3590 = vpop.f32.mrf.mxu0
    %3591 = vdwg.mxu0
    %3592 = vmatpush.bf16.msra.mxu0 %v2982
    %3593 = vmatpush.bf16.msra.mxu0 %v2975
    %3594 = vmatpush.bf16.msra.mxu0 %v2968
    %3595 = vmatpush.bf16.msra.mxu0 %v2961
    %3596 = vmatpush.bf16.msra.mxu0 %v2954
    %3597 = vmatpush.bf16.msra.mxu0 %v2947
    %3598 = vmatpush.bf16.msra.mxu0 %v2940
    %3599 = vmatpush.bf16.msra.mxu0 %v2933
    %3600 = vmatmul.bf16.gmra.mxu0 %v2157
    %v3601 = vpop.f32.mrf.mxu0
    %v3602 = vadd.f32 %v2369, %v3601
    %v3603 = vpop.f32.mrf.mxu0
    %3604 = vdwg.mxu0
    %3605 = vmatpush.bf16.msra.mxu0 %v3038
    %3606 = vmatpush.bf16.msra.mxu0 %v3031
    %3607 = vmatpush.bf16.msra.mxu0 %v3024
    %3608 = vmatpush.bf16.msra.mxu0 %v3017
    %3609 = vmatpush.bf16.msra.mxu0 %v3010
    %3610 = vmatpush.bf16.msra.mxu0 %v3003
    %3611 = vmatpush.bf16.msra.mxu0 %v2996
    %3612 = vmatpush.bf16.msra.mxu0 %v2989
    %3613 = vmatmul.bf16.gmra.mxu0 %v2158
    %v3614 = vpop.f32.mrf.mxu0
    %v3615 = vadd.f32 %v3602, %v3614
    %v3616 = vpop.f32.mrf.mxu0
    %3617 = vdwg.mxu0
    %3618 = vmatpush.bf16.msra.mxu0 %v3094
    %3619 = vmatpush.bf16.msra.mxu0 %v3087
    %3620 = vmatpush.bf16.msra.mxu0 %v3080
    %3621 = vmatpush.bf16.msra.mxu0 %v3073
    %3622 = vmatpush.bf16.msra.mxu0 %v3066
    %3623 = vmatpush.bf16.msra.mxu0 %v3059
    %3624 = vmatpush.bf16.msra.mxu0 %v3052
    %3625 = vmatpush.bf16.msra.mxu0 %v3045
    %3626 = vmatmul.bf16.gmra.mxu0 %v2159
    %v3627 = vpop.f32.mrf.mxu0
    %v3628 = vadd.f32 %v3615, %v3627
    %v3629 = vpop.f32.mrf.mxu0
    %3630 = vdwg.mxu0
    %3631 = vmatpush.bf16.msra.mxu0 0
    %3632 = vmatpush.bf16.msra.mxu0 0
    %3633 = vmatpush.bf16.msra.mxu0 0
    %3634 = vmatpush.bf16.msra.mxu0 0
    %3635 = vmatpush.bf16.msra.mxu0 0
    %3636 = vmatpush.bf16.msra.mxu0 0
    %3637 = vmatpush.bf16.msra.mxu0 0
    %3638 = vmatpush.bf16.msra.mxu0 %v3101
    %3639 = vmatmul.bf16.gmra.mxu0 %v3278
    %v3640 = vpop.f32.mrf.mxu0
    %v3641 = vadd.f32 %v3628, %v3640
    %v3642 = vpop.f32.mrf.mxu0
    %3643 = vdwg.mxu0
    %v3644 = vxor.u32 %v3329, 2147483648
    %v3645 = vxor.u32 %v3381, 2147483648
    %v3646 = vxor.u32 %v3433, 2147483648
    %v3647 = vxor.u32 %v3485, 2147483648
    %v3648 = vxor.u32 %v3537, 2147483648
    %v3649 = vxor.u32 %v3589, 2147483648
    %v3650 = vxor.u32 %v3641, 2147483648
    %v3651 = vmul.f32 %v3644, 1.442695
    %v3652 = vpow.pop %v3651
    %v3653 = vmul.f32 %v3645, 1.442695
    %v3654 = vpow.pop %v3653
    %v3655 = vmul.f32 %v3646, 1.442695
    %v3656 = vpow.pop %v3655
    %v3657 = vmul.f32 %v3647, 1.442695
    %v3658 = vpow.pop %v3657
    %v3659 = vmul.f32 %v3648, 1.442695
    %v3660 = vpow.pop %v3659
    %v3661 = vmul.f32 %v3649, 1.442695
    %v3662 = vpow.pop %v3661
    %v3663 = vmul.f32 %v3650, 1.442695
    %v3664 = vpow.pop %v3663
    %v3665 = vadd.f32 %v3652, 1.0
    %v3666 = vadd.f32 %v3654, 1.0
    %v3667 = vadd.f32 %v3656, 1.0
    %v3668 = vadd.f32 %v3658, 1.0
    %v3669 = vadd.f32 %v3660, 1.0
    %v3670 = vadd.f32 %v3662, 1.0
    %v3671 = vadd.f32 %v3664, 1.0
    %v3672 = vrcp.pop %v3665
    %v3673 = vmul.f32 %v3665, %v3672
    %v3674 = vsub.f32 1.0, %v3673
    %v3675 = vmul.f32 %v3672, %v3674
    %v3676 = vadd.f32 %v3672, %v3675
    %vm3677 = vweird.f32 %v3665
    %vm3678 = vweird.f32 %v3672
    %vm3679 = vmor %vm3677, %vm3678
    %v3680 = vsel %vm3679, %v3672, %v3676
    %v3681 = vand.u32 2147483647, %v3665
    %vm3682 = vcmp.eq.f32.partialorder %v3681, 8.507059e+37
    %v3683 = vand.u32 %v3665, 2147483648
    %v3684 = vor.u32 1.1754944e-38, %v3683
    %v3685 = vsel %vm3682, %v3684, %v3680
    %v3686 = vmul.f32 1.0, %v3685
    %v3687 = vrcp.pop %v3666
    %v3688 = vmul.f32 %v3666, %v3687
    %v3689 = vsub.f32 1.0, %v3688
    %v3690 = vmul.f32 %v3687, %v3689
    %v3691 = vadd.f32 %v3687, %v3690
    %vm3692 = vweird.f32 %v3666
    %vm3693 = vweird.f32 %v3687
    %vm3694 = vmor %vm3692, %vm3693
    %v3695 = vsel %vm3694, %v3687, %v3691
    %v3696 = vand.u32 2147483647, %v3666
    %vm3697 = vcmp.eq.f32.partialorder %v3696, 8.507059e+37
    %v3698 = vand.u32 %v3666, 2147483648
    %v3699 = vor.u32 1.1754944e-38, %v3698
    %v3700 = vsel %vm3697, %v3699, %v3695
    %v3701 = vmul.f32 1.0, %v3700
    %v3702 = vrcp.pop %v3667
    %v3703 = vmul.f32 %v3667, %v3702
    %v3704 = vsub.f32 1.0, %v3703
    %v3705 = vmul.f32 %v3702, %v3704
    %v3706 = vadd.f32 %v3702, %v3705
    %vm3707 = vweird.f32 %v3667
    %vm3708 = vweird.f32 %v3702
    %vm3709 = vmor %vm3707, %vm3708
    %v3710 = vsel %vm3709, %v3702, %v3706
    %v3711 = vand.u32 2147483647, %v3667
    %vm3712 = vcmp.eq.f32.partialorder %v3711, 8.507059e+37
    %v3713 = vand.u32 %v3667, 2147483648
    %v3714 = vor.u32 1.1754944e-38, %v3713
    %v3715 = vsel %vm3712, %v3714, %v3710
    %v3716 = vmul.f32 1.0, %v3715
    %v3717 = vrcp.pop %v3668
    %v3718 = vmul.f32 %v3668, %v3717
    %v3719 = vsub.f32 1.0, %v3718
    %v3720 = vmul.f32 %v3717, %v3719
    %v3721 = vadd.f32 %v3717, %v3720
    %vm3722 = vweird.f32 %v3668
    %vm3723 = vweird.f32 %v3717
    %vm3724 = vmor %vm3722, %vm3723
    %v3725 = vsel %vm3724, %v3717, %v3721
    %v3726 = vand.u32 2147483647, %v3668
    %vm3727 = vcmp.eq.f32.partialorder %v3726, 8.507059e+37
    %v3728 = vand.u32 %v3668, 2147483648
    %v3729 = vor.u32 1.1754944e-38, %v3728
    %v3730 = vsel %vm3727, %v3729, %v3725
    %v3731 = vmul.f32 1.0, %v3730
    %v3732 = vrcp.pop %v3669
    %v3733 = vmul.f32 %v3669, %v3732
    %v3734 = vsub.f32 1.0, %v3733
    %v3735 = vmul.f32 %v3732, %v3734
    %v3736 = vadd.f32 %v3732, %v3735
    %vm3737 = vweird.f32 %v3669
    %vm3738 = vweird.f32 %v3732
    %vm3739 = vmor %vm3737, %vm3738
    %v3740 = vsel %vm3739, %v3732, %v3736
    %v3741 = vand.u32 2147483647, %v3669
    %vm3742 = vcmp.eq.f32.partialorder %v3741, 8.507059e+37
    %v3743 = vand.u32 %v3669, 2147483648
    %v3744 = vor.u32 1.1754944e-38, %v3743
    %v3745 = vsel %vm3742, %v3744, %v3740
    %v3746 = vmul.f32 1.0, %v3745
    %v3747 = vrcp.pop %v3670
    %v3748 = vmul.f32 %v3670, %v3747
    %v3749 = vsub.f32 1.0, %v3748
    %v3750 = vmul.f32 %v3747, %v3749
    %v3751 = vadd.f32 %v3747, %v3750
    %vm3752 = vweird.f32 %v3670
    %vm3753 = vweird.f32 %v3747
    %vm3754 = vmor %vm3752, %vm3753
    %v3755 = vsel %vm3754, %v3747, %v3751
    %v3756 = vand.u32 2147483647, %v3670
    %vm3757 = vcmp.eq.f32.partialorder %v3756, 8.507059e+37
    %v3758 = vand.u32 %v3670, 2147483648
    %v3759 = vor.u32 1.1754944e-38, %v3758
    %v3760 = vsel %vm3757, %v3759, %v3755
    %v3761 = vmul.f32 1.0, %v3760
    %v3762 = vrcp.pop %v3671
    %v3763 = vmul.f32 %v3671, %v3762
    %v3764 = vsub.f32 1.0, %v3763
    %v3765 = vmul.f32 %v3762, %v3764
    %v3766 = vadd.f32 %v3762, %v3765
    %vm3767 = vweird.f32 %v3671
    %vm3768 = vweird.f32 %v3762
    %vm3769 = vmor %vm3767, %vm3768
    %v3770 = vsel %vm3769, %v3762, %v3766
    %v3771 = vand.u32 2147483647, %v3671
    %vm3772 = vcmp.eq.f32.partialorder %v3771, 8.507059e+37
    %v3773 = vand.u32 %v3671, 2147483648
    %v3774 = vor.u32 1.1754944e-38, %v3773
    %v3775 = vsel %vm3772, %v3774, %v3770
    %v3776 = vmul.f32 1.0, %v3775
    %v3777 = vpack.c.bf16 %v3701, %v3686
    %v3778 = vpack.c.bf16 %v3731, %v3716
    %v3779 = vpack.c.bf16 %v3761, %v3746
    %v3780 = vpack.c.bf16 %v3776, %v3776
    %v3785 = vrot.slane %v3777, 2
    %v3786 = vrot.slane %v3778, 4
    %v3787 = vrot.slane %v3778, 6
    %v3788 = vrot.slane %v3779, 2
    %v3789 = vrot.slane %v3780, 4
    %v3790 = vrot.slane %v3780, 6
    %v3793 = vsel %vm2088, %v3777, %v3785
    %vm3794 = vcmask 1045508
    %v3797 = vsel %vm3794, %v3786, %v3787
    %vm3798 = vcmask 1043456
    %v3799 = vsel %vm3798, %v3793, %v3797
    %v3802 = vsel %vm2088, %v3779, %v3788
    %v3805 = vsel %vm3794, %v3789, %v3790
    %v3806 = vsel %vm3798, %v3802, %v3805
    %3809 = vst [vmem:[#allocation2] sm:$0xff] %v3799
    %vm3810 = vcmask 1043458
    %vm3811 = vmor %vm3810, %vm2088
    %vm3812 = vcmask 128004
    %vm3813 = vmor %vm3812, %vm3811
    %3814 = vst.msk [vmem:[#allocation2 + $0x8] sm:$0x3f] %vm3813, %v3806
    // Predicated region
    $region42: #{tpu_custom_call.1} parent=1 // pred_check
      _
    $region43: #{tpu_custom_call.1} parent=1 // pred_check_branch
      %3816 = sbr.rel (0) target = $region45
    $region44: #{tpu_custom_call.1} parent=1 // pred_region
      %3818 = vsyncadd [#allocation3], 0
      %s3820 = sshll.u32 [#allocation2], 4
      %s3821 = int_to_ptr.vmem [resolvable:$true] %s3820
      %s3822 = sshll.u32 %s10, 4
      %s3823 = int_to_ptr.hbm [resolvable:$true] %s3822
      %3825 = dma.vmem_to_hbm [thread:$0]  %s3821, 224, %s3823, [#allocation3]
    $region45: #{tpu_custom_call.1} parent=1 // pred_fallthru
      _
    // Predicated region
    $region46: #{tpu_custom_call.1} parent=1 // pred_check
      _
    $region47: #{tpu_custom_call.1} parent=1 // pred_check_branch
      %3827 = sbr.rel (0) target = $region49
    $region48: #{tpu_custom_call.1} parent=1 // pred_region
      %3829 = dma.done [#allocation3], 224
    $region49: #{tpu_custom_call.1} parent=1 // pred_fallthru
      _
    %3830 = vsyncpa [#allocation3], 1

</llo_original>
